<compile_context>
chip_gen: v6e
topology: v6e:2x2x1
jax: 0.10.0
libtpu: 0.0.40
codegen_flags: <defaults>
</compile_context>

<pallas_src>
import math

import jax
import jax.numpy as jnp
from jax import lax
from jax.experimental import pallas as pl
from jax.experimental.pallas import tpu as pltpu

INPUT_GRID_DIMENSION = 5
MOVEMENT_INFO_BOOL = True
MOVEMENT_INFO_TYPE = "vector_displacement"

HIDDEN = 128
INPUT_SIZE = 128 + int(MOVEMENT_INFO_BOOL) + int(
    MOVEMENT_INFO_TYPE == "vector_displacement" or MOVEMENT_INFO_TYPE == "x_y_displacement"
)  # = 130
SEQ_LEN = INPUT_GRID_DIMENSION * INPUT_GRID_DIMENSION  # = 25
NUM_CLASSES = 10
FC_PAD = 128          # lane-dense output width; real classes live in [:, :NUM_CLASSES]
MAX_BATCH_TILE = 128  # rows per grid step cap


def _ceil_to(a, m):
    return ((a + m - 1) // m) * m


def _make_lstm_fc_kernel(n_chains):
    """Build the recurrence kernel for a static number of interleaved batch chains."""

    def lstm_fc_kernel(gx_ref, w_hh_ref, w_fc_ref, b_fc_ref, out_ref):
        """One batch tile: LSTM recurrence over time + final (lane-padded) linear layer.

        gx_ref:   (T, B, 4H) float32   precomputed x @ W_ih + b, gate order [i, f, o, g]
        w_hh_ref: (H, 4H)    bfloat16  gate order [i, f, o, g]
        w_fc_ref: (H, FC_PAD) bfloat16 zero-padded beyond NUM_CLASSES
        b_fc_ref: (1, FC_PAD) float32  zero-padded beyond NUM_CLASSES
        out_ref:  (B, FC_PAD) float32
        """
        T, B, _ = gx_ref.shape
        H = HIDDEN
        Bc = B // n_chains  # rows per chain (multiple of 8 by construction)

        w_hh = w_hh_ref[...]  # bf16, loop-invariant

        def step(t, carry):
            gx_t = gx_ref[t]  # (B, 4H) fp32, static-per-unrolled-step slab
            new = []
            for ci in range(n_chains):
                h, c = carry[2 * ci], carry[2 * ci + 1]
                # bf16 MXU operands, fp32 accumulation; fp32 gate math.
                gates = gx_t[ci * Bc:(ci + 1) * Bc, :] + jnp.dot(
                    h.astype(jnp.bfloat16), w_hh, preferred_element_type=jnp.float32
                )  # (Bc, 4H), gate order [i, f, o, g]
                sig = jax.nn.sigmoid(gates[:, : 3 * H])  # one contiguous EUP slab: i, f, o
                g_g = jnp.tanh(gates[:, 3 * H:])
                i_g = sig[:, 0:H]
                f_g = sig[:, H:2 * H]
                o_g = sig[:, 2 * H:3 * H]
                c_new = f_g * c + i_g * g_g              # fp32 cell state
                h_new = o_g * jnp.tanh(c_new)
                new.extend([h_new, c_new])
            return tuple(new)

        init = tuple(jnp.zeros((Bc, H), jnp.float32) for _ in range(2 * n_chains))
        # T = 25 is static: fully unroll for cross-step / cross-chain VLIW scheduling.
        final = lax.fori_loop(0, T, step, init, unroll=True)

        w_fc = w_fc_ref[...]   # bf16
        b_fc = b_fc_ref[...]   # fp32
        for ci in range(n_chains):
            h_T = final[2 * ci]
            out_ref[ci * Bc:(ci + 1) * Bc, :] = (
                jnp.dot(h_T.astype(jnp.bfloat16), w_fc, preferred_element_type=jnp.float32)
                + b_fc
            )

    return lstm_fc_kernel


def rnn_model_forward(x, params):
    """Mirrors RNNModel.forward. x is any shape that reshapes to (-1, 130, 25)."""
    w_ih, w_hh, b, w_fc, b_fc = params
    x = x.reshape(-1, INPUT_SIZE, SEQ_LEN)                # (B, 130, 25)
    x = jnp.moveaxis(x, 2, 1)                             # (B, 25, 130) == torch moveaxis(x, 2, 1)
    x = jnp.transpose(x, (1, 0, 2)).astype(jnp.float32)   # (T, B, D)
    T, B, D = x.shape

    # Hoisted input projection in XLA (off the serial recurrence path); bf16 MXU, fp32 accum.
    gx = jnp.einsum(
        "tbd,dg->tbg", x.astype(jnp.bfloat16), w_ih, preferred_element_type=jnp.float32
    ) + b.reshape(1, 1, 4 * HIDDEN)                       # (T, B, 4H) fp32, gate order [i,f,o,g]

    # Batch tiling: multiple of 8 sublanes; >= 2 grid blocks when padded batch > 8 rows so the
    # "parallel" axis shards across both v7x TensorCores; cap at 128 rows per tile.
    B8 = _ceil_to(max(B, 1), 8)
    half = _ceil_to(-(-B8 // 2), 8)
    b_tile = min(MAX_BATCH_TILE, half)
    b_pad = _ceil_to(B8, b_tile)
    if b_pad != B:
        gx = jnp.pad(gx, ((0, 0), (0, b_pad - B), (0, 0)))
    # Two interleaved recurrence chains per tile when the halves stay 8-row aligned.
    n_chains = 2 if (b_tile >= 16 and b_tile % 16 == 0) else 1

    const2d = lambda i: (0, 0)
    out = pl.pallas_call(
        _make_lstm_fc_kernel(n_chains),
        out_shape=jax.ShapeDtypeStruct((b_pad, FC_PAD), jnp.float32),
        grid_spec=pltpu.PrefetchScalarGridSpec(
            num_scalar_prefetch=0,
            grid=(b_pad // b_tile,),
            in_specs=[
                pl.BlockSpec((T, b_tile, 4 * HIDDEN), lambda i: (0, i, 0)),  # gx, pipelined
                pl.BlockSpec((HIDDEN, 4 * HIDDEN), const2d),                 # w_hh (bf16)
                pl.BlockSpec((HIDDEN, FC_PAD), const2d),                     # w_fc (bf16)
                pl.BlockSpec((1, FC_PAD), const2d),                          # b_fc
            ],
            out_specs=pl.BlockSpec((b_tile, FC_PAD), lambda i: (i, 0)),
        ),
        compiler_params=pltpu.CompilerParams(
            dimension_semantics=("parallel",),        # megacore batch sharding on v7x
            vmem_limit_bytes=48 * 1024 * 1024,        # safe within v7x's 64 MiB VMEM
        ),
    )(gx, w_hh, w_fc, b_fc)
    return out[:B, :NUM_CLASSES]


def _reorder_gate_rows(v):
    """torch gate order [i, f, g, o] -> kernel order [i, f, o, g] along axis 0."""
    H = HIDDEN
    return jnp.concatenate([v[: 2 * H], v[3 * H:], v[2 * H:3 * H]], axis=0)


def prepare_params(w_ih_t, w_hh_t, b_ih, b_hh, w_fc_t, b_fc):
    """Convert torch-layout params into kernel layout.

    w_ih_t: (4H, D), w_hh_t: (4H, H), b_ih/b_hh: (4H,), w_fc_t: (C, H), b_fc: (C,)
    Returns (w_ih bf16 (D,4H), w_hh bf16 (H,4H), b f32 (1,4H), w_fc bf16 (H,FC_PAD),
    b_fc f32 (1,FC_PAD)) with gate order [i, f, o, g], biases pre-summed, fc zero-padded.
    """
    w_ih = jnp.transpose(_reorder_gate_rows(w_ih_t)).astype(jnp.bfloat16)
    w_hh = jnp.transpose(_reorder_gate_rows(w_hh_t)).astype(jnp.bfloat16)
    b = _reorder_gate_rows(b_ih + b_hh).reshape(1, 4 * HIDDEN).astype(jnp.float32)
    w_fc = (
        jnp.zeros((HIDDEN, FC_PAD), jnp.float32)
        .at[:, :NUM_CLASSES]
        .set(jnp.transpose(w_fc_t).astype(jnp.float32))
        .astype(jnp.bfloat16)
    )
    b_fc_p = jnp.zeros((1, FC_PAD), jnp.float32).at[0, :NUM_CLASSES].set(b_fc.astype(jnp.float32))
    return (w_ih, w_hh, b, w_fc, b_fc_p)


def init_raw_params(key):
    """Deterministic synthetic parameters with torch.nn.LSTM/Linear-style init + shapes."""
    k1, k2, k3, k4, k5, k6 = jax.random.split(key, 6)
    scale = 1.0 / math.sqrt(HIDDEN)
    w_ih_t = jax.random.uniform(k1, (4 * HIDDEN, INPUT_SIZE), jnp.float32, -scale, scale)
    w_hh_t = jax.random.uniform(k2, (4 * HIDDEN, HIDDEN), jnp.float32, -scale, scale)
    b_ih = jax.random.uniform(k3, (4 * HIDDEN,), jnp.float32, -scale, scale)
    b_hh = jax.random.uniform(k4, (4 * HIDDEN,), jnp.float32, -scale, scale)
    w_fc_t = jax.random.uniform(k5, (NUM_CLASSES, HIDDEN), jnp.float32, -scale, scale)
    b_fc = jax.random.uniform(k6, (NUM_CLASSES,), jnp.float32, -scale, scale)
    return (w_ih_t, w_hh_t, b_ih, b_hh, w_fc_t, b_fc)


def reference_forward(x, raw):
    """Pure-JAX fp32 LSTM + FC reference in torch layout/gate order [i, f, g, o]."""
    w_ih_t, w_hh_t, b_ih, b_hh, w_fc_t, b_fc = raw
    H = HIDDEN
    x = x.reshape(-1, INPUT_SIZE, SEQ_LEN)
    x = jnp.moveaxis(x, 2, 1).astype(jnp.float32)   # (B, T, D)
    B = x.shape[0]

    def cell(carry, x_t):
        h, c = carry
        z = x_t @ w_ih_t.T + b_ih + h @ w_hh_t.T + b_hh
        i = jax.nn.sigmoid(z[:, :H])
        f = jax.nn.sigmoid(z[:, H:2 * H])
        g = jnp.tanh(z[:, 2 * H:3 * H])
        o = jax.nn.sigmoid(z[:, 3 * H:])
        c = f * c + i * g
        h = o * jnp.tanh(c)
        return (h, c), None

    h0 = jnp.zeros((B, H), jnp.float32)
    c0 = jnp.zeros((B, H), jnp.float32)
    (h_T, _), _ = lax.scan(cell, (h0, c0), jnp.transpose(x, (1, 0, 2)))
    return h_T @ w_fc_t.T + b_fc


if __name__ == "__main__":
    key = jax.random.PRNGKey(0)
    pkey, xkey = jax.random.split(key)
    raw = init_raw_params(pkey)
    params = prepare_params(*raw)

    # batch=2  -> single 8-row tile, 1 chain.  batch=64 -> two 32-row tiles, 2 chains each.
    for batch in (2, 64):
        x = jax.random.normal(
            jax.random.fold_in(xkey, batch), (batch, INPUT_SIZE, SEQ_LEN), jnp.float32
        )
        out = jax.block_until_ready(rnn_model_forward(x, params))
        assert out.shape == (batch, NUM_CLASSES)
        assert bool(jnp.all(jnp.isfinite(out)))
        ref = reference_forward(x, raw)
        err = float(jnp.max(jnp.abs(out - ref)))
        assert err < 2e-2, f"batch={batch}: max abs error {err} vs fp32 reference"
    print("KERNEL_OK")
</pallas_src>

<mosaic_0001>
module attributes {stable_mosaic.version = 11 : i64} {
  func.func @lstm_fc_kernel(%arg0: i32, %arg1: memref<25x8x512xf32, #tpu.memory_space<vmem>>, %arg2: memref<128x512xbf16, #tpu.memory_space<vmem>>, %arg3: memref<128x128xbf16, #tpu.memory_space<vmem>>, %arg4: memref<1x128xf32, #tpu.memory_space<vmem>>, %arg5: memref<8x128xf32, #tpu.memory_space<vmem>>) attributes {dimension_semantics = [#tpu.dimension_semantics<parallel>], iteration_bounds = array<i64: 1>, scalar_prefetch = 0 : i64, scratch_operands = 0 : i64, tpu.core_type = #tpu.core_type<tc>, window_params = [{transform_indices = @transform_0, window_bounds = array<i64: 25, 8, 512>}, {pipeline_mode = #tpu.pipeline_mode<synchronous>, transform_indices = @transform_1, window_bounds = array<i64: 128, 512>}, {pipeline_mode = #tpu.pipeline_mode<synchronous>, transform_indices = @transform_2, window_bounds = array<i64: 128, 128>}, {pipeline_mode = #tpu.pipeline_mode<synchronous>, transform_indices = @transform_3, window_bounds = array<i64: 1, 128>}, {transform_indices = @transform_4, window_bounds = array<i64: 8, 128>}]} {
    %c0 = arith.constant 0 : index
    %c0_0 = arith.constant 0 : index
    %0 = vector.load %arg2[%c0, %c0_0] : memref<128x512xbf16, #tpu.memory_space<vmem>>, vector<128x512xbf16>
    %cst = arith.constant 0.000000e+00 : f32
    %1 = vector.broadcast %cst : f32 to vector<8x128xf32>
    %cst_1 = arith.constant 0.000000e+00 : f32
    %2 = vector.broadcast %cst_1 : f32 to vector<8x128xf32>
    %c0_i32 = arith.constant 0 : i32
    %3 = arith.index_cast %c0_i32 : i32 to index
    %c0_2 = arith.constant 0 : index
    %c0_3 = arith.constant 0 : index
    %4 = vector.load %arg1[%3, %c0_2, %c0_3] : memref<25x8x512xf32, #tpu.memory_space<vmem>>, vector<1x8x512xf32>
    %5 = vector.shape_cast %4 : vector<1x8x512xf32> to vector<8x512xf32>
    %6 = arith.truncf %1 : vector<8x128xf32> to vector<8x128xbf16>
    %cst_4 = arith.constant dense<0.000000e+00> : vector<8x512xf32>
    %7 = tpu.matmul %6, %0, %cst_4 {dimension_numbers = #tpu.dot_dimension_numbers<[1], [0], [0], [1], [0, 0, 1, 1], [], []>} : vector<8x128xbf16>, vector<128x512xbf16>, vector<8x512xf32> -> vector<8x512xf32>
    %8 = arith.addf %5, %7 : vector<8x512xf32>
    %9 = vector.extract_strided_slice %8 {offsets = [0, 0], sizes = [8, 384], strides = [1, 1]} : vector<8x512xf32> to vector<8x384xf32>
    %10 = arith.negf %9 : vector<8x384xf32>
    %11 = math.exp %10 : vector<8x384xf32>
    %cst_5 = arith.constant 1.000000e+00 : f32
    %12 = vector.broadcast %cst_5 : f32 to vector<8x384xf32>
    %13 = arith.addf %12, %11 : vector<8x384xf32>
    %14 = arith.divf %12, %13 : vector<8x384xf32>
    %15 = vector.extract_strided_slice %8 {offsets = [0, 384], sizes = [8, 128], strides = [1, 1]} : vector<8x512xf32> to vector<8x128xf32>
    %16 = math.tanh %15 : vector<8x128xf32>
    %17 = vector.extract_strided_slice %14 {offsets = [0, 0], sizes = [8, 128], strides = [1, 1]} : vector<8x384xf32> to vector<8x128xf32>
    %18 = vector.extract_strided_slice %14 {offsets = [0, 128], sizes = [8, 128], strides = [1, 1]} : vector<8x384xf32> to vector<8x128xf32>
    %19 = vector.extract_strided_slice %14 {offsets = [0, 256], sizes = [8, 128], strides = [1, 1]} : vector<8x384xf32> to vector<8x128xf32>
    %20 = arith.mulf %18, %2 : vector<8x128xf32>
    %21 = arith.mulf %17, %16 : vector<8x128xf32>
    %22 = arith.addf %20, %21 : vector<8x128xf32>
    %23 = math.tanh %22 : vector<8x128xf32>
    %24 = arith.mulf %19, %23 : vector<8x128xf32>
    %c1_i32 = arith.constant 1 : i32
    %25 = arith.index_cast %c1_i32 : i32 to index
    %c0_6 = arith.constant 0 : index
    %c0_7 = arith.constant 0 : index
    %26 = vector.load %arg1[%25, %c0_6, %c0_7] : memref<25x8x512xf32, #tpu.memory_space<vmem>>, vector<1x8x512xf32>
    %27 = vector.shape_cast %26 : vector<1x8x512xf32> to vector<8x512xf32>
    %28 = arith.truncf %24 : vector<8x128xf32> to vector<8x128xbf16>
    %cst_8 = arith.constant dense<0.000000e+00> : vector<8x512xf32>
    %29 = tpu.matmul %28, %0, %cst_8 {dimension_numbers = #tpu.dot_dimension_numbers<[1], [0], [0], [1], [0, 0, 1, 1], [], []>} : vector<8x128xbf16>, vector<128x512xbf16>, vector<8x512xf32> -> vector<8x512xf32>
    %30 = arith.addf %27, %29 : vector<8x512xf32>
    %31 = vector.extract_strided_slice %30 {offsets = [0, 0], sizes = [8, 384], strides = [1, 1]} : vector<8x512xf32> to vector<8x384xf32>
    %32 = arith.negf %31 : vector<8x384xf32>
    %33 = math.exp %32 : vector<8x384xf32>
    %cst_9 = arith.constant 1.000000e+00 : f32
    %34 = vector.broadcast %cst_9 : f32 to vector<8x384xf32>
    %35 = arith.addf %34, %33 : vector<8x384xf32>
    %36 = arith.divf %34, %35 : vector<8x384xf32>
    %37 = vector.extract_strided_slice %30 {offsets = [0, 384], sizes = [8, 128], strides = [1, 1]} : vector<8x512xf32> to vector<8x128xf32>
    %38 = math.tanh %37 : vector<8x128xf32>
    %39 = vector.extract_strided_slice %36 {offsets = [0, 0], sizes = [8, 128], strides = [1, 1]} : vector<8x384xf32> to vector<8x128xf32>
    %40 = vector.extract_strided_slice %36 {offsets = [0, 128], sizes = [8, 128], strides = [1, 1]} : vector<8x384xf32> to vector<8x128xf32>
    %41 = vector.extract_strided_slice %36 {offsets = [0, 256], sizes = [8, 128], strides = [1, 1]} : vector<8x384xf32> to vector<8x128xf32>
    %42 = arith.mulf %40, %22 : vector<8x128xf32>
    %43 = arith.mulf %39, %38 : vector<8x128xf32>
    %44 = arith.addf %42, %43 : vector<8x128xf32>
    %45 = math.tanh %44 : vector<8x128xf32>
    %46 = arith.mulf %41, %45 : vector<8x128xf32>
    %c2_i32 = arith.constant 2 : i32
    %47 = arith.index_cast %c2_i32 : i32 to index
    %c0_10 = arith.constant 0 : index
    %c0_11 = arith.constant 0 : index
    %48 = vector.load %arg1[%47, %c0_10, %c0_11] : memref<25x8x512xf32, #tpu.memory_space<vmem>>, vector<1x8x512xf32>
    %49 = vector.shape_cast %48 : vector<1x8x512xf32> to vector<8x512xf32>
    %50 = arith.truncf %46 : vector<8x128xf32> to vector<8x128xbf16>
    %cst_12 = arith.constant dense<0.000000e+00> : vector<8x512xf32>
    %51 = tpu.matmul %50, %0, %cst_12 {dimension_numbers = #tpu.dot_dimension_numbers<[1], [0], [0], [1], [0, 0, 1, 1], [], []>} : vector<8x128xbf16>, vector<128x512xbf16>, vector<8x512xf32> -> vector<8x512xf32>
    %52 = arith.addf %49, %51 : vector<8x512xf32>
    %53 = vector.extract_strided_slice %52 {offsets = [0, 0], sizes = [8, 384], strides = [1, 1]} : vector<8x512xf32> to vector<8x384xf32>
    %54 = arith.negf %53 : vector<8x384xf32>
    %55 = math.exp %54 : vector<8x384xf32>
    %cst_13 = arith.constant 1.000000e+00 : f32
    %56 = vector.broadcast %cst_13 : f32 to vector<8x384xf32>
    %57 = arith.addf %56, %55 : vector<8x384xf32>
    %58 = arith.divf %56, %57 : vector<8x384xf32>
    %59 = vector.extract_strided_slice %52 {offsets = [0, 384], sizes = [8, 128], strides = [1, 1]} : vector<8x512xf32> to vector<8x128xf32>
    %60 = math.tanh %59 : vector<8x128xf32>
    %61 = vector.extract_strided_slice %58 {offsets = [0, 0], sizes = [8, 128], strides = [1, 1]} : vector<8x384xf32> to vector<8x128xf32>
    %62 = vector.extract_strided_slice %58 {offsets = [0, 128], sizes = [8, 128], strides = [1, 1]} : vector<8x384xf32> to vector<8x128xf32>
    %63 = vector.extract_strided_slice %58 {offsets = [0, 256], sizes = [8, 128], strides = [1, 1]} : vector<8x384xf32> to vector<8x128xf32>
    %64 = arith.mulf %62, %44 : vector<8x128xf32>
    %65 = arith.mulf %61, %60 : vector<8x128xf32>
    %66 = arith.addf %64, %65 : vector<8x128xf32>
    %67 = math.tanh %66 : vector<8x128xf32>
    %68 = arith.mulf %63, %67 : vector<8x128xf32>
    %c3_i32 = arith.constant 3 : i32
    %69 = arith.index_cast %c3_i32 : i32 to index
    %c0_14 = arith.constant 0 : index
    %c0_15 = arith.constant 0 : index
    %70 = vector.load %arg1[%69, %c0_14, %c0_15] : memref<25x8x512xf32, #tpu.memory_space<vmem>>, vector<1x8x512xf32>
    %71 = vector.shape_cast %70 : vector<1x8x512xf32> to vector<8x512xf32>
    %72 = arith.truncf %68 : vector<8x128xf32> to vector<8x128xbf16>
    %cst_16 = arith.constant dense<0.000000e+00> : vector<8x512xf32>
    %73 = tpu.matmul %72, %0, %cst_16 {dimension_numbers = #tpu.dot_dimension_numbers<[1], [0], [0], [1], [0, 0, 1, 1], [], []>} : vector<8x128xbf16>, vector<128x512xbf16>, vector<8x512xf32> -> vector<8x512xf32>
    %74 = arith.addf %71, %73 : vector<8x512xf32>
    %75 = vector.extract_strided_slice %74 {offsets = [0, 0], sizes = [8, 384], strides = [1, 1]} : vector<8x512xf32> to vector<8x384xf32>
    %76 = arith.negf %75 : vector<8x384xf32>
    %77 = math.exp %76 : vector<8x384xf32>
    %cst_17 = arith.constant 1.000000e+00 : f32
    %78 = vector.broadcast %cst_17 : f32 to vector<8x384xf32>
    %79 = arith.addf %78, %77 : vector<8x384xf32>
    %80 = arith.divf %78, %79 : vector<8x384xf32>
    %81 = vector.extract_strided_slice %74 {offsets = [0, 384], sizes = [8, 128], strides = [1, 1]} : vector<8x512xf32> to vector<8x128xf32>
    %82 = math.tanh %81 : vector<8x128xf32>
    %83 = vector.extract_strided_slice %80 {offsets = [0, 0], sizes = [8, 128], strides = [1, 1]} : vector<8x384xf32> to vector<8x128xf32>
    %84 = vector.extract_strided_slice %80 {offsets = [0, 128], sizes = [8, 128], strides = [1, 1]} : vector<8x384xf32> to vector<8x128xf32>
    %85 = vector.extract_strided_slice %80 {offsets = [0, 256], sizes = [8, 128], strides = [1, 1]} : vector<8x384xf32> to vector<8x128xf32>
    %86 = arith.mulf %84, %66 : vector<8x128xf32>
    %87 = arith.mulf %83, %82 : vector<8x128xf32>
    %88 = arith.addf %86, %87 : vector<8x128xf32>
    %89 = math.tanh %88 : vector<8x128xf32>
    %90 = arith.mulf %85, %89 : vector<8x128xf32>
    %c4_i32 = arith.constant 4 : i32
    %91 = arith.index_cast %c4_i32 : i32 to index
    %c0_18 = arith.constant 0 : index
    %c0_19 = arith.constant 0 : index
    %92 = vector.load %arg1[%91, %c0_18, %c0_19] : memref<25x8x512xf32, #tpu.memory_space<vmem>>, vector<1x8x512xf32>
    %93 = vector.shape_cast %92 : vector<1x8x512xf32> to vector<8x512xf32>
    %94 = arith.truncf %90 : vector<8x128xf32> to vector<8x128xbf16>
    %cst_20 = arith.constant dense<0.000000e+00> : vector<8x512xf32>
    %95 = tpu.matmul %94, %0, %cst_20 {dimension_numbers = #tpu.dot_dimension_numbers<[1], [0], [0], [1], [0, 0, 1, 1], [], []>} : vector<8x128xbf16>, vector<128x512xbf16>, vector<8x512xf32> -> vector<8x512xf32>
    %96 = arith.addf %93, %95 : vector<8x512xf32>
    %97 = vector.extract_strided_slice %96 {offsets = [0, 0], sizes = [8, 384], strides = [1, 1]} : vector<8x512xf32> to vector<8x384xf32>
    %98 = arith.negf %97 : vector<8x384xf32>
    %99 = math.exp %98 : vector<8x384xf32>
    %cst_21 = arith.constant 1.000000e+00 : f32
    %100 = vector.broadcast %cst_21 : f32 to vector<8x384xf32>
    %101 = arith.addf %100, %99 : vector<8x384xf32>
    %102 = arith.divf %100, %101 : vector<8x384xf32>
    %103 = vector.extract_strided_slice %96 {offsets = [0, 384], sizes = [8, 128], strides = [1, 1]} : vector<8x512xf32> to vector<8x128xf32>
    %104 = math.tanh %103 : vector<8x128xf32>
    %105 = vector.extract_strided_slice %102 {offsets = [0, 0], sizes = [8, 128], strides = [1, 1]} : vector<8x384xf32> to vector<8x128xf32>
    %106 = vector.extract_strided_slice %102 {offsets = [0, 128], sizes = [8, 128], strides = [1, 1]} : vector<8x384xf32> to vector<8x128xf32>
    %107 = vector.extract_strided_slice %102 {offsets = [0, 256], sizes = [8, 128], strides = [1, 1]} : vector<8x384xf32> to vector<8x128xf32>
    %108 = arith.mulf %106, %88 : vector<8x128xf32>
    %109 = arith.mulf %105, %104 : vector<8x128xf32>
    %110 = arith.addf %108, %109 : vector<8x128xf32>
    %111 = math.tanh %110 : vector<8x128xf32>
    %112 = arith.mulf %107, %111 : vector<8x128xf32>
    %c5_i32 = arith.constant 5 : i32
    %113 = arith.index_cast %c5_i32 : i32 to index
    %c0_22 = arith.constant 0 : index
    %c0_23 = arith.constant 0 : index
    %114 = vector.load %arg1[%113, %c0_22, %c0_23] : memref<25x8x512xf32, #tpu.memory_space<vmem>>, vector<1x8x512xf32>
    %115 = vector.shape_cast %114 : vector<1x8x512xf32> to vector<8x512xf32>
    %116 = arith.truncf %112 : vector<8x128xf32> to vector<8x128xbf16>
    %cst_24 = arith.constant dense<0.000000e+00> : vector<8x512xf32>
    %117 = tpu.matmul %116, %0, %cst_24 {dimension_numbers = #tpu.dot_dimension_numbers<[1], [0], [0], [1], [0, 0, 1, 1], [], []>} : vector<8x128xbf16>, vector<128x512xbf16>, vector<8x512xf32> -> vector<8x512xf32>
    %118 = arith.addf %115, %117 : vector<8x512xf32>
    %119 = vector.extract_strided_slice %118 {offsets = [0, 0], sizes = [8, 384], strides = [1, 1]} : vector<8x512xf32> to vector<8x384xf32>
    %120 = arith.negf %119 : vector<8x384xf32>
    %121 = math.exp %120 : vector<8x384xf32>
    %cst_25 = arith.constant 1.000000e+00 : f32
    %122 = vector.broadcast %cst_25 : f32 to vector<8x384xf32>
    %123 = arith.addf %122, %121 : vector<8x384xf32>
    %124 = arith.divf %122, %123 : vector<8x384xf32>
    %125 = vector.extract_strided_slice %118 {offsets = [0, 384], sizes = [8, 128], strides = [1, 1]} : vector<8x512xf32> to vector<8x128xf32>
    %126 = math.tanh %125 : vector<8x128xf32>
    %127 = vector.extract_strided_slice %124 {offsets = [0, 0], sizes = [8, 128], strides = [1, 1]} : vector<8x384xf32> to vector<8x128xf32>
    %128 = vector.extract_strided_slice %124 {offsets = [0, 128], sizes = [8, 128], strides = [1, 1]} : vector<8x384xf32> to vector<8x128xf32>
    %129 = vector.extract_strided_slice %124 {offsets = [0, 256], sizes = [8, 128], strides = [1, 1]} : vector<8x384xf32> to vector<8x128xf32>
    %130 = arith.mulf %128, %110 : vector<8x128xf32>
    %131 = arith.mulf %127, %126 : vector<8x128xf32>
    %132 = arith.addf %130, %131 : vector<8x128xf32>
    %133 = math.tanh %132 : vector<8x128xf32>
    %134 = arith.mulf %129, %133 : vector<8x128xf32>
    %c6_i32 = arith.constant 6 : i32
    %135 = arith.index_cast %c6_i32 : i32 to index
    %c0_26 = arith.constant 0 : index
    %c0_27 = arith.constant 0 : index
    %136 = vector.load %arg1[%135, %c0_26, %c0_27] : memref<25x8x512xf32, #tpu.memory_space<vmem>>, vector<1x8x512xf32>
    %137 = vector.shape_cast %136 : vector<1x8x512xf32> to vector<8x512xf32>
    %138 = arith.truncf %134 : vector<8x128xf32> to vector<8x128xbf16>
    %cst_28 = arith.constant dense<0.000000e+00> : vector<8x512xf32>
    %139 = tpu.matmul %138, %0, %cst_28 {dimension_numbers = #tpu.dot_dimension_numbers<[1], [0], [0], [1], [0, 0, 1, 1], [], []>} : vector<8x128xbf16>, vector<128x512xbf16>, vector<8x512xf32> -> vector<8x512xf32>
    %140 = arith.addf %137, %139 : vector<8x512xf32>
    %141 = vector.extract_strided_slice %140 {offsets = [0, 0], sizes = [8, 384], strides = [1, 1]} : vector<8x512xf32> to vector<8x384xf32>
    %142 = arith.negf %141 : vector<8x384xf32>
    %143 = math.exp %142 : vector<8x384xf32>
    %cst_29 = arith.constant 1.000000e+00 : f32
    %144 = vector.broadcast %cst_29 : f32 to vector<8x384xf32>
    %145 = arith.addf %144, %143 : vector<8x384xf32>
    %146 = arith.divf %144, %145 : vector<8x384xf32>
    %147 = vector.extract_strided_slice %140 {offsets = [0, 384], sizes = [8, 128], strides = [1, 1]} : vector<8x512xf32> to vector<8x128xf32>
    %148 = math.tanh %147 : vector<8x128xf32>
    %149 = vector.extract_strided_slice %146 {offsets = [0, 0], sizes = [8, 128], strides = [1, 1]} : vector<8x384xf32> to vector<8x128xf32>
    %150 = vector.extract_strided_slice %146 {offsets = [0, 128], sizes = [8, 128], strides = [1, 1]} : vector<8x384xf32> to vector<8x128xf32>
    %151 = vector.extract_strided_slice %146 {offsets = [0, 256], sizes = [8, 128], strides = [1, 1]} : vector<8x384xf32> to vector<8x128xf32>
    %152 = arith.mulf %150, %132 : vector<8x128xf32>
    %153 = arith.mulf %149, %148 : vector<8x128xf32>
    %154 = arith.addf %152, %153 : vector<8x128xf32>
    %155 = math.tanh %154 : vector<8x128xf32>
    %156 = arith.mulf %151, %155 : vector<8x128xf32>
    %c7_i32 = arith.constant 7 : i32
    %157 = arith.index_cast %c7_i32 : i32 to index
    %c0_30 = arith.constant 0 : index
    %c0_31 = arith.constant 0 : index
    %158 = vector.load %arg1[%157, %c0_30, %c0_31] : memref<25x8x512xf32, #tpu.memory_space<vmem>>, vector<1x8x512xf32>
    %159 = vector.shape_cast %158 : vector<1x8x512xf32> to vector<8x512xf32>
    %160 = arith.truncf %156 : vector<8x128xf32> to vector<8x128xbf16>
    %cst_32 = arith.constant dense<0.000000e+00> : vector<8x512xf32>
    %161 = tpu.matmul %160, %0, %cst_32 {dimension_numbers = #tpu.dot_dimension_numbers<[1], [0], [0], [1], [0, 0, 1, 1], [], []>} : vector<8x128xbf16>, vector<128x512xbf16>, vector<8x512xf32> -> vector<8x512xf32>
    %162 = arith.addf %159, %161 : vector<8x512xf32>
    %163 = vector.extract_strided_slice %162 {offsets = [0, 0], sizes = [8, 384], strides = [1, 1]} : vector<8x512xf32> to vector<8x384xf32>
    %164 = arith.negf %163 : vector<8x384xf32>
    %165 = math.exp %164 : vector<8x384xf32>
    %cst_33 = arith.constant 1.000000e+00 : f32
    %166 = vector.broadcast %cst_33 : f32 to vector<8x384xf32>
    %167 = arith.addf %166, %165 : vector<8x384xf32>
    %168 = arith.divf %166, %167 : vector<8x384xf32>
    %169 = vector.extract_strided_slice %162 {offsets = [0, 384], sizes = [8, 128], strides = [1, 1]} : vector<8x512xf32> to vector<8x128xf32>
    %170 = math.tanh %169 : vector<8x128xf32>
    %171 = vector.extract_strided_slice %168 {offsets = [0, 0], sizes = [8, 128], strides = [1, 1]} : vector<8x384xf32> to vector<8x128xf32>
    %172 = vector.extract_strided_slice %168 {offsets = [0, 128], sizes = [8, 128], strides = [1, 1]} : vector<8x384xf32> to vector<8x128xf32>
    %173 = vector.extract_strided_slice %168 {offsets = [0, 256], sizes = [8, 128], strides = [1, 1]} : vector<8x384xf32> to vector<8x128xf32>
    %174 = arith.mulf %172, %154 : vector<8x128xf32>
    %175 = arith.mulf %171, %170 : vector<8x128xf32>
    %176 = arith.addf %174, %175 : vector<8x128xf32>
    %177 = math.tanh %176 : vector<8x128xf32>
    %178 = arith.mulf %173, %177 : vector<8x128xf32>
    %c8_i32 = arith.constant 8 : i32
    %179 = arith.index_cast %c8_i32 : i32 to index
    %c0_34 = arith.constant 0 : index
    %c0_35 = arith.constant 0 : index
    %180 = vector.load %arg1[%179, %c0_34, %c0_35] : memref<25x8x512xf32, #tpu.memory_space<vmem>>, vector<1x8x512xf32>
    %181 = vector.shape_cast %180 : vector<1x8x512xf32> to vector<8x512xf32>
    %182 = arith.truncf %178 : vector<8x128xf32> to vector<8x128xbf16>
    %cst_36 = arith.constant dense<0.000000e+00> : vector<8x512xf32>
    %183 = tpu.matmul %182, %0, %cst_36 {dimension_numbers = #tpu.dot_dimension_numbers<[1], [0], [0], [1], [0, 0, 1, 1], [], []>} : vector<8x128xbf16>, vector<128x512xbf16>, vector<8x512xf32> -> vector<8x512xf32>
    %184 = arith.addf %181, %183 : vector<8x512xf32>
    %185 = vector.extract_strided_slice %184 {offsets = [0, 0], sizes = [8, 384], strides = [1, 1]} : vector<8x512xf32> to vector<8x384xf32>
    %186 = arith.negf %185 : vector<8x384xf32>
    %187 = math.exp %186 : vector<8x384xf32>
    %cst_37 = arith.constant 1.000000e+00 : f32
    %188 = vector.broadcast %cst_37 : f32 to vector<8x384xf32>
    %189 = arith.addf %188, %187 : vector<8x384xf32>
    %190 = arith.divf %188, %189 : vector<8x384xf32>
    %191 = vector.extract_strided_slice %184 {offsets = [0, 384], sizes = [8, 128], strides = [1, 1]} : vector<8x512xf32> to vector<8x128xf32>
    %192 = math.tanh %191 : vector<8x128xf32>
    %193 = vector.extract_strided_slice %190 {offsets = [0, 0], sizes = [8, 128], strides = [1, 1]} : vector<8x384xf32> to vector<8x128xf32>
    %194 = vector.extract_strided_slice %190 {offsets = [0, 128], sizes = [8, 128], strides = [1, 1]} : vector<8x384xf32> to vector<8x128xf32>
    %195 = vector.extract_strided_slice %190 {offsets = [0, 256], sizes = [8, 128], strides = [1, 1]} : vector<8x384xf32> to vector<8x128xf32>
    %196 = arith.mulf %194, %176 : vector<8x128xf32>
    %197 = arith.mulf %193, %192 : vector<8x128xf32>
    %198 = arith.addf %196, %197 : vector<8x128xf32>
    %199 = math.tanh %198 : vector<8x128xf32>
    %200 = arith.mulf %195, %199 : vector<8x128xf32>
    %c9_i32 = arith.constant 9 : i32
    %201 = arith.index_cast %c9_i32 : i32 to index
    %c0_38 = arith.constant 0 : index
    %c0_39 = arith.constant 0 : index
    %202 = vector.load %arg1[%201, %c0_38, %c0_39] : memref<25x8x512xf32, #tpu.memory_space<vmem>>, vector<1x8x512xf32>
    %203 = vector.shape_cast %202 : vector<1x8x512xf32> to vector<8x512xf32>
    %204 = arith.truncf %200 : vector<8x128xf32> to vector<8x128xbf16>
    %cst_40 = arith.constant dense<0.000000e+00> : vector<8x512xf32>
    %205 = tpu.matmul %204, %0, %cst_40 {dimension_numbers = #tpu.dot_dimension_numbers<[1], [0], [0], [1], [0, 0, 1, 1], [], []>} : vector<8x128xbf16>, vector<128x512xbf16>, vector<8x512xf32> -> vector<8x512xf32>
    %206 = arith.addf %203, %205 : vector<8x512xf32>
    %207 = vector.extract_strided_slice %206 {offsets = [0, 0], sizes = [8, 384], strides = [1, 1]} : vector<8x512xf32> to vector<8x384xf32>
    %208 = arith.negf %207 : vector<8x384xf32>
    %209 = math.exp %208 : vector<8x384xf32>
    %cst_41 = arith.constant 1.000000e+00 : f32
    %210 = vector.broadcast %cst_41 : f32 to vector<8x384xf32>
    %211 = arith.addf %210, %209 : vector<8x384xf32>
    %212 = arith.divf %210, %211 : vector<8x384xf32>
    %213 = vector.extract_strided_slice %206 {offsets = [0, 384], sizes = [8, 128], strides = [1, 1]} : vector<8x512xf32> to vector<8x128xf32>
    %214 = math.tanh %213 : vector<8x128xf32>
    %215 = vector.extract_strided_slice %212 {offsets = [0, 0], sizes = [8, 128], strides = [1, 1]} : vector<8x384xf32> to vector<8x128xf32>
    %216 = vector.extract_strided_slice %212 {offsets = [0, 128], sizes = [8, 128], strides = [1, 1]} : vector<8x384xf32> to vector<8x128xf32>
    %217 = vector.extract_strided_slice %212 {offsets = [0, 256], sizes = [8, 128], strides = [1, 1]} : vector<8x384xf32> to vector<8x128xf32>
    %218 = arith.mulf %216, %198 : vector<8x128xf32>
    %219 = arith.mulf %215, %214 : vector<8x128xf32>
    %220 = arith.addf %218, %219 : vector<8x128xf32>
    %221 = math.tanh %220 : vector<8x128xf32>
    %222 = arith.mulf %217, %221 : vector<8x128xf32>
    %c10_i32 = arith.constant 10 : i32
    %223 = arith.index_cast %c10_i32 : i32 to index
    %c0_42 = arith.constant 0 : index
    %c0_43 = arith.constant 0 : index
    %224 = vector.load %arg1[%223, %c0_42, %c0_43] : memref<25x8x512xf32, #tpu.memory_space<vmem>>, vector<1x8x512xf32>
    %225 = vector.shape_cast %224 : vector<1x8x512xf32> to vector<8x512xf32>
    %226 = arith.truncf %222 : vector<8x128xf32> to vector<8x128xbf16>
    %cst_44 = arith.constant dense<0.000000e+00> : vector<8x512xf32>
    %227 = tpu.matmul %226, %0, %cst_44 {dimension_numbers = #tpu.dot_dimension_numbers<[1], [0], [0], [1], [0, 0, 1, 1], [], []>} : vector<8x128xbf16>, vector<128x512xbf16>, vector<8x512xf32> -> vector<8x512xf32>
    %228 = arith.addf %225, %227 : vector<8x512xf32>
    %229 = vector.extract_strided_slice %228 {offsets = [0, 0], sizes = [8, 384], strides = [1, 1]} : vector<8x512xf32> to vector<8x384xf32>
    %230 = arith.negf %229 : vector<8x384xf32>
    %231 = math.exp %230 : vector<8x384xf32>
    %cst_45 = arith.constant 1.000000e+00 : f32
    %232 = vector.broadcast %cst_45 : f32 to vector<8x384xf32>
    %233 = arith.addf %232, %231 : vector<8x384xf32>
    %234 = arith.divf %232, %233 : vector<8x384xf32>
    %235 = vector.extract_strided_slice %228 {offsets = [0, 384], sizes = [8, 128], strides = [1, 1]} : vector<8x512xf32> to vector<8x128xf32>
    %236 = math.tanh %235 : vector<8x128xf32>
    %237 = vector.extract_strided_slice %234 {offsets = [0, 0], sizes = [8, 128], strides = [1, 1]} : vector<8x384xf32> to vector<8x128xf32>
    %238 = vector.extract_strided_slice %234 {offsets = [0, 128], sizes = [8, 128], strides = [1, 1]} : vector<8x384xf32> to vector<8x128xf32>
    %239 = vector.extract_strided_slice %234 {offsets = [0, 256], sizes = [8, 128], strides = [1, 1]} : vector<8x384xf32> to vector<8x128xf32>
    %240 = arith.mulf %238, %220 : vector<8x128xf32>
    %241 = arith.mulf %237, %236 : vector<8x128xf32>
    %242 = arith.addf %240, %241 : vector<8x128xf32>
    %243 = math.tanh %242 : vector<8x128xf32>
    %244 = arith.mulf %239, %243 : vector<8x128xf32>
    %c11_i32 = arith.constant 11 : i32
    %245 = arith.index_cast %c11_i32 : i32 to index
    %c0_46 = arith.constant 0 : index
    %c0_47 = arith.constant 0 : index
    %246 = vector.load %arg1[%245, %c0_46, %c0_47] : memref<25x8x512xf32, #tpu.memory_space<vmem>>, vector<1x8x512xf32>
    %247 = vector.shape_cast %246 : vector<1x8x512xf32> to vector<8x512xf32>
    %248 = arith.truncf %244 : vector<8x128xf32> to vector<8x128xbf16>
    %cst_48 = arith.constant dense<0.000000e+00> : vector<8x512xf32>
    %249 = tpu.matmul %248, %0, %cst_48 {dimension_numbers = #tpu.dot_dimension_numbers<[1], [0], [0], [1], [0, 0, 1, 1], [], []>} : vector<8x128xbf16>, vector<128x512xbf16>, vector<8x512xf32> -> vector<8x512xf32>
    %250 = arith.addf %247, %249 : vector<8x512xf32>
    %251 = vector.extract_strided_slice %250 {offsets = [0, 0], sizes = [8, 384], strides = [1, 1]} : vector<8x512xf32> to vector<8x384xf32>
    %252 = arith.negf %251 : vector<8x384xf32>
    %253 = math.exp %252 : vector<8x384xf32>
    %cst_49 = arith.constant 1.000000e+00 : f32
    %254 = vector.broadcast %cst_49 : f32 to vector<8x384xf32>
    %255 = arith.addf %254, %253 : vector<8x384xf32>
    %256 = arith.divf %254, %255 : vector<8x384xf32>
    %257 = vector.extract_strided_slice %250 {offsets = [0, 384], sizes = [8, 128], strides = [1, 1]} : vector<8x512xf32> to vector<8x128xf32>
    %258 = math.tanh %257 : vector<8x128xf32>
    %259 = vector.extract_strided_slice %256 {offsets = [0, 0], sizes = [8, 128], strides = [1, 1]} : vector<8x384xf32> to vector<8x128xf32>
    %260 = vector.extract_strided_slice %256 {offsets = [0, 128], sizes = [8, 128], strides = [1, 1]} : vector<8x384xf32> to vector<8x128xf32>
    %261 = vector.extract_strided_slice %256 {offsets = [0, 256], sizes = [8, 128], strides = [1, 1]} : vector<8x384xf32> to vector<8x128xf32>
    %262 = arith.mulf %260, %242 : vector<8x128xf32>
    %263 = arith.mulf %259, %258 : vector<8x128xf32>
    %264 = arith.addf %262, %263 : vector<8x128xf32>
    %265 = math.tanh %264 : vector<8x128xf32>
    %266 = arith.mulf %261, %265 : vector<8x128xf32>
    %c12_i32 = arith.constant 12 : i32
    %267 = arith.index_cast %c12_i32 : i32 to index
    %c0_50 = arith.constant 0 : index
    %c0_51 = arith.constant 0 : index
    %268 = vector.load %arg1[%267, %c0_50, %c0_51] : memref<25x8x512xf32, #tpu.memory_space<vmem>>, vector<1x8x512xf32>
    %269 = vector.shape_cast %268 : vector<1x8x512xf32> to vector<8x512xf32>
    %270 = arith.truncf %266 : vector<8x128xf32> to vector<8x128xbf16>
    %cst_52 = arith.constant dense<0.000000e+00> : vector<8x512xf32>
    %271 = tpu.matmul %270, %0, %cst_52 {dimension_numbers = #tpu.dot_dimension_numbers<[1], [0], [0], [1], [0, 0, 1, 1], [], []>} : vector<8x128xbf16>, vector<128x512xbf16>, vector<8x512xf32> -> vector<8x512xf32>
    %272 = arith.addf %269, %271 : vector<8x512xf32>
    %273 = vector.extract_strided_slice %272 {offsets = [0, 0], sizes = [8, 384], strides = [1, 1]} : vector<8x512xf32> to vector<8x384xf32>
    %274 = arith.negf %273 : vector<8x384xf32>
    %275 = math.exp %274 : vector<8x384xf32>
    %cst_53 = arith.constant 1.000000e+00 : f32
    %276 = vector.broadcast %cst_53 : f32 to vector<8x384xf32>
    %277 = arith.addf %276, %275 : vector<8x384xf32>
    %278 = arith.divf %276, %277 : vector<8x384xf32>
    %279 = vector.extract_strided_slice %272 {offsets = [0, 384], sizes = [8, 128], strides = [1, 1]} : vector<8x512xf32> to vector<8x128xf32>
    %280 = math.tanh %279 : vector<8x128xf32>
    %281 = vector.extract_strided_slice %278 {offsets = [0, 0], sizes = [8, 128], strides = [1, 1]} : vector<8x384xf32> to vector<8x128xf32>
    %282 = vector.extract_strided_slice %278 {offsets = [0, 128], sizes = [8, 128], strides = [1, 1]} : vector<8x384xf32> to vector<8x128xf32>
    %283 = vector.extract_strided_slice %278 {offsets = [0, 256], sizes = [8, 128], strides = [1, 1]} : vector<8x384xf32> to vector<8x128xf32>
    %284 = arith.mulf %282, %264 : vector<8x128xf32>
    %285 = arith.mulf %281, %280 : vector<8x128xf32>
    %286 = arith.addf %284, %285 : vector<8x128xf32>
    %287 = math.tanh %286 : vector<8x128xf32>
    %288 = arith.mulf %283, %287 : vector<8x128xf32>
    %c13_i32 = arith.constant 13 : i32
    %289 = arith.index_cast %c13_i32 : i32 to index
    %c0_54 = arith.constant 0 : index
    %c0_55 = arith.constant 0 : index
    %290 = vector.load %arg1[%289, %c0_54, %c0_55] : memref<25x8x512xf32, #tpu.memory_space<vmem>>, vector<1x8x512xf32>
    %291 = vector.shape_cast %290 : vector<1x8x512xf32> to vector<8x512xf32>
    %292 = arith.truncf %288 : vector<8x128xf32> to vector<8x128xbf16>
    %cst_56 = arith.constant dense<0.000000e+00> : vector<8x512xf32>
    %293 = tpu.matmul %292, %0, %cst_56 {dimension_numbers = #tpu.dot_dimension_numbers<[1], [0], [0], [1], [0, 0, 1, 1], [], []>} : vector<8x128xbf16>, vector<128x512xbf16>, vector<8x512xf32> -> vector<8x512xf32>
    %294 = arith.addf %291, %293 : vector<8x512xf32>
    %295 = vector.extract_strided_slice %294 {offsets = [0, 0], sizes = [8, 384], strides = [1, 1]} : vector<8x512xf32> to vector<8x384xf32>
    %296 = arith.negf %295 : vector<8x384xf32>
    %297 = math.exp %296 : vector<8x384xf32>
    %cst_57 = arith.constant 1.000000e+00 : f32
    %298 = vector.broadcast %cst_57 : f32 to vector<8x384xf32>
    %299 = arith.addf %298, %297 : vector<8x384xf32>
    %300 = arith.divf %298, %299 : vector<8x384xf32>
    %301 = vector.extract_strided_slice %294 {offsets = [0, 384], sizes = [8, 128], strides = [1, 1]} : vector<8x512xf32> to vector<8x128xf32>
    %302 = math.tanh %301 : vector<8x128xf32>
    %303 = vector.extract_strided_slice %300 {offsets = [0, 0], sizes = [8, 128], strides = [1, 1]} : vector<8x384xf32> to vector<8x128xf32>
    %304 = vector.extract_strided_slice %300 {offsets = [0, 128], sizes = [8, 128], strides = [1, 1]} : vector<8x384xf32> to vector<8x128xf32>
    %305 = vector.extract_strided_slice %300 {offsets = [0, 256], sizes = [8, 128], strides = [1, 1]} : vector<8x384xf32> to vector<8x128xf32>
    %306 = arith.mulf %304, %286 : vector<8x128xf32>
    %307 = arith.mulf %303, %302 : vector<8x128xf32>
    %308 = arith.addf %306, %307 : vector<8x128xf32>
    %309 = math.tanh %308 : vector<8x128xf32>
    %310 = arith.mulf %305, %309 : vector<8x128xf32>
    %c14_i32 = arith.constant 14 : i32
    %311 = arith.index_cast %c14_i32 : i32 to index
    %c0_58 = arith.constant 0 : index
    %c0_59 = arith.constant 0 : index
    %312 = vector.load %arg1[%311, %c0_58, %c0_59] : memref<25x8x512xf32, #tpu.memory_space<vmem>>, vector<1x8x512xf32>
    %313 = vector.shape_cast %312 : vector<1x8x512xf32> to vector<8x512xf32>
    %314 = arith.truncf %310 : vector<8x128xf32> to vector<8x128xbf16>
    %cst_60 = arith.constant dense<0.000000e+00> : vector<8x512xf32>
    %315 = tpu.matmul %314, %0, %cst_60 {dimension_numbers = #tpu.dot_dimension_numbers<[1], [0], [0], [1], [0, 0, 1, 1], [], []>} : vector<8x128xbf16>, vector<128x512xbf16>, vector<8x512xf32> -> vector<8x512xf32>
    %316 = arith.addf %313, %315 : vector<8x512xf32>
    %317 = vector.extract_strided_slice %316 {offsets = [0, 0], sizes = [8, 384], strides = [1, 1]} : vector<8x512xf32> to vector<8x384xf32>
    %318 = arith.negf %317 : vector<8x384xf32>
    %319 = math.exp %318 : vector<8x384xf32>
    %cst_61 = arith.constant 1.000000e+00 : f32
    %320 = vector.broadcast %cst_61 : f32 to vector<8x384xf32>
    %321 = arith.addf %320, %319 : vector<8x384xf32>
    %322 = arith.divf %320, %321 : vector<8x384xf32>
    %323 = vector.extract_strided_slice %316 {offsets = [0, 384], sizes = [8, 128], strides = [1, 1]} : vector<8x512xf32> to vector<8x128xf32>
    %324 = math.tanh %323 : vector<8x128xf32>
    %325 = vector.extract_strided_slice %322 {offsets = [0, 0], sizes = [8, 128], strides = [1, 1]} : vector<8x384xf32> to vector<8x128xf32>
    %326 = vector.extract_strided_slice %322 {offsets = [0, 128], sizes = [8, 128], strides = [1, 1]} : vector<8x384xf32> to vector<8x128xf32>
    %327 = vector.extract_strided_slice %322 {offsets = [0, 256], sizes = [8, 128], strides = [1, 1]} : vector<8x384xf32> to vector<8x128xf32>
    %328 = arith.mulf %326, %308 : vector<8x128xf32>
    %329 = arith.mulf %325, %324 : vector<8x128xf32>
    %330 = arith.addf %328, %329 : vector<8x128xf32>
    %331 = math.tanh %330 : vector<8x128xf32>
    %332 = arith.mulf %327, %331 : vector<8x128xf32>
    %c15_i32 = arith.constant 15 : i32
    %333 = arith.index_cast %c15_i32 : i32 to index
    %c0_62 = arith.constant 0 : index
    %c0_63 = arith.constant 0 : index
    %334 = vector.load %arg1[%333, %c0_62, %c0_63] : memref<25x8x512xf32, #tpu.memory_space<vmem>>, vector<1x8x512xf32>
    %335 = vector.shape_cast %334 : vector<1x8x512xf32> to vector<8x512xf32>
    %336 = arith.truncf %332 : vector<8x128xf32> to vector<8x128xbf16>
    %cst_64 = arith.constant dense<0.000000e+00> : vector<8x512xf32>
    %337 = tpu.matmul %336, %0, %cst_64 {dimension_numbers = #tpu.dot_dimension_numbers<[1], [0], [0], [1], [0, 0, 1, 1], [], []>} : vector<8x128xbf16>, vector<128x512xbf16>, vector<8x512xf32> -> vector<8x512xf32>
    %338 = arith.addf %335, %337 : vector<8x512xf32>
    %339 = vector.extract_strided_slice %338 {offsets = [0, 0], sizes = [8, 384], strides = [1, 1]} : vector<8x512xf32> to vector<8x384xf32>
    %340 = arith.negf %339 : vector<8x384xf32>
    %341 = math.exp %340 : vector<8x384xf32>
    %cst_65 = arith.constant 1.000000e+00 : f32
    %342 = vector.broadcast %cst_65 : f32 to vector<8x384xf32>
    %343 = arith.addf %342, %341 : vector<8x384xf32>
    %344 = arith.divf %342, %343 : vector<8x384xf32>
    %345 = vector.extract_strided_slice %338 {offsets = [0, 384], sizes = [8, 128], strides = [1, 1]} : vector<8x512xf32> to vector<8x128xf32>
    %346 = math.tanh %345 : vector<8x128xf32>
    %347 = vector.extract_strided_slice %344 {offsets = [0, 0], sizes = [8, 128], strides = [1, 1]} : vector<8x384xf32> to vector<8x128xf32>
    %348 = vector.extract_strided_slice %344 {offsets = [0, 128], sizes = [8, 128], strides = [1, 1]} : vector<8x384xf32> to vector<8x128xf32>
    %349 = vector.extract_strided_slice %344 {offsets = [0, 256], sizes = [8, 128], strides = [1, 1]} : vector<8x384xf32> to vector<8x128xf32>
    %350 = arith.mulf %348, %330 : vector<8x128xf32>
    %351 = arith.mulf %347, %346 : vector<8x128xf32>
    %352 = arith.addf %350, %351 : vector<8x128xf32>
    %353 = math.tanh %352 : vector<8x128xf32>
    %354 = arith.mulf %349, %353 : vector<8x128xf32>
    %c16_i32 = arith.constant 16 : i32
    %355 = arith.index_cast %c16_i32 : i32 to index
    %c0_66 = arith.constant 0 : index
    %c0_67 = arith.constant 0 : index
    %356 = vector.load %arg1[%355, %c0_66, %c0_67] : memref<25x8x512xf32, #tpu.memory_space<vmem>>, vector<1x8x512xf32>
    %357 = vector.shape_cast %356 : vector<1x8x512xf32> to vector<8x512xf32>
    %358 = arith.truncf %354 : vector<8x128xf32> to vector<8x128xbf16>
    %cst_68 = arith.constant dense<0.000000e+00> : vector<8x512xf32>
    %359 = tpu.matmul %358, %0, %cst_68 {dimension_numbers = #tpu.dot_dimension_numbers<[1], [0], [0], [1], [0, 0, 1, 1], [], []>} : vector<8x128xbf16>, vector<128x512xbf16>, vector<8x512xf32> -> vector<8x512xf32>
    %360 = arith.addf %357, %359 : vector<8x512xf32>
    %361 = vector.extract_strided_slice %360 {offsets = [0, 0], sizes = [8, 384], strides = [1, 1]} : vector<8x512xf32> to vector<8x384xf32>
    %362 = arith.negf %361 : vector<8x384xf32>
    %363 = math.exp %362 : vector<8x384xf32>
    %cst_69 = arith.constant 1.000000e+00 : f32
    %364 = vector.broadcast %cst_69 : f32 to vector<8x384xf32>
    %365 = arith.addf %364, %363 : vector<8x384xf32>
    %366 = arith.divf %364, %365 : vector<8x384xf32>
    %367 = vector.extract_strided_slice %360 {offsets = [0, 384], sizes = [8, 128], strides = [1, 1]} : vector<8x512xf32> to vector<8x128xf32>
    %368 = math.tanh %367 : vector<8x128xf32>
    %369 = vector.extract_strided_slice %366 {offsets = [0, 0], sizes = [8, 128], strides = [1, 1]} : vector<8x384xf32> to vector<8x128xf32>
    %370 = vector.extract_strided_slice %366 {offsets = [0, 128], sizes = [8, 128], strides = [1, 1]} : vector<8x384xf32> to vector<8x128xf32>
    %371 = vector.extract_strided_slice %366 {offsets = [0, 256], sizes = [8, 128], strides = [1, 1]} : vector<8x384xf32> to vector<8x128xf32>
    %372 = arith.mulf %370, %352 : vector<8x128xf32>
    %373 = arith.mulf %369, %368 : vector<8x128xf32>
    %374 = arith.addf %372, %373 : vector<8x128xf32>
    %375 = math.tanh %374 : vector<8x128xf32>
    %376 = arith.mulf %371, %375 : vector<8x128xf32>
    %c17_i32 = arith.constant 17 : i32
    %377 = arith.index_cast %c17_i32 : i32 to index
    %c0_70 = arith.constant 0 : index
    %c0_71 = arith.constant 0 : index
    %378 = vector.load %arg1[%377, %c0_70, %c0_71] : memref<25x8x512xf32, #tpu.memory_space<vmem>>, vector<1x8x512xf32>
    %379 = vector.shape_cast %378 : vector<1x8x512xf32> to vector<8x512xf32>
    %380 = arith.truncf %376 : vector<8x128xf32> to vector<8x128xbf16>
    %cst_72 = arith.constant dense<0.000000e+00> : vector<8x512xf32>
    %381 = tpu.matmul %380, %0, %cst_72 {dimension_numbers = #tpu.dot_dimension_numbers<[1], [0], [0], [1], [0, 0, 1, 1], [], []>} : vector<8x128xbf16>, vector<128x512xbf16>, vector<8x512xf32> -> vector<8x512xf32>
    %382 = arith.addf %379, %381 : vector<8x512xf32>
    %383 = vector.extract_strided_slice %382 {offsets = [0, 0], sizes = [8, 384], strides = [1, 1]} : vector<8x512xf32> to vector<8x384xf32>
    %384 = arith.negf %383 : vector<8x384xf32>
    %385 = math.exp %384 : vector<8x384xf32>
    %cst_73 = arith.constant 1.000000e+00 : f32
    %386 = vector.broadcast %cst_73 : f32 to vector<8x384xf32>
    %387 = arith.addf %386, %385 : vector<8x384xf32>
    %388 = arith.divf %386, %387 : vector<8x384xf32>
    %389 = vector.extract_strided_slice %382 {offsets = [0, 384], sizes = [8, 128], strides = [1, 1]} : vector<8x512xf32> to vector<8x128xf32>
    %390 = math.tanh %389 : vector<8x128xf32>
    %391 = vector.extract_strided_slice %388 {offsets = [0, 0], sizes = [8, 128], strides = [1, 1]} : vector<8x384xf32> to vector<8x128xf32>
    %392 = vector.extract_strided_slice %388 {offsets = [0, 128], sizes = [8, 128], strides = [1, 1]} : vector<8x384xf32> to vector<8x128xf32>
    %393 = vector.extract_strided_slice %388 {offsets = [0, 256], sizes = [8, 128], strides = [1, 1]} : vector<8x384xf32> to vector<8x128xf32>
    %394 = arith.mulf %392, %374 : vector<8x128xf32>
    %395 = arith.mulf %391, %390 : vector<8x128xf32>
    %396 = arith.addf %394, %395 : vector<8x128xf32>
    %397 = math.tanh %396 : vector<8x128xf32>
    %398 = arith.mulf %393, %397 : vector<8x128xf32>
    %c18_i32 = arith.constant 18 : i32
    %399 = arith.index_cast %c18_i32 : i32 to index
    %c0_74 = arith.constant 0 : index
    %c0_75 = arith.constant 0 : index
    %400 = vector.load %arg1[%399, %c0_74, %c0_75] : memref<25x8x512xf32, #tpu.memory_space<vmem>>, vector<1x8x512xf32>
    %401 = vector.shape_cast %400 : vector<1x8x512xf32> to vector<8x512xf32>
    %402 = arith.truncf %398 : vector<8x128xf32> to vector<8x128xbf16>
    %cst_76 = arith.constant dense<0.000000e+00> : vector<8x512xf32>
    %403 = tpu.matmul %402, %0, %cst_76 {dimension_numbers = #tpu.dot_dimension_numbers<[1], [0], [0], [1], [0, 0, 1, 1], [], []>} : vector<8x128xbf16>, vector<128x512xbf16>, vector<8x512xf32> -> vector<8x512xf32>
    %404 = arith.addf %401, %403 : vector<8x512xf32>
    %405 = vector.extract_strided_slice %404 {offsets = [0, 0], sizes = [8, 384], strides = [1, 1]} : vector<8x512xf32> to vector<8x384xf32>
    %406 = arith.negf %405 : vector<8x384xf32>
    %407 = math.exp %406 : vector<8x384xf32>
    %cst_77 = arith.constant 1.000000e+00 : f32
    %408 = vector.broadcast %cst_77 : f32 to vector<8x384xf32>
    %409 = arith.addf %408, %407 : vector<8x384xf32>
    %410 = arith.divf %408, %409 : vector<8x384xf32>
    %411 = vector.extract_strided_slice %404 {offsets = [0, 384], sizes = [8, 128], strides = [1, 1]} : vector<8x512xf32> to vector<8x128xf32>
    %412 = math.tanh %411 : vector<8x128xf32>
    %413 = vector.extract_strided_slice %410 {offsets = [0, 0], sizes = [8, 128], strides = [1, 1]} : vector<8x384xf32> to vector<8x128xf32>
    %414 = vector.extract_strided_slice %410 {offsets = [0, 128], sizes = [8, 128], strides = [1, 1]} : vector<8x384xf32> to vector<8x128xf32>
    %415 = vector.extract_strided_slice %410 {offsets = [0, 256], sizes = [8, 128], strides = [1, 1]} : vector<8x384xf32> to vector<8x128xf32>
    %416 = arith.mulf %414, %396 : vector<8x128xf32>
    %417 = arith.mulf %413, %412 : vector<8x128xf32>
    %418 = arith.addf %416, %417 : vector<8x128xf32>
    %419 = math.tanh %418 : vector<8x128xf32>
    %420 = arith.mulf %415, %419 : vector<8x128xf32>
    %c19_i32 = arith.constant 19 : i32
    %421 = arith.index_cast %c19_i32 : i32 to index
    %c0_78 = arith.constant 0 : index
    %c0_79 = arith.constant 0 : index
    %422 = vector.load %arg1[%421, %c0_78, %c0_79] : memref<25x8x512xf32, #tpu.memory_space<vmem>>, vector<1x8x512xf32>
    %423 = vector.shape_cast %422 : vector<1x8x512xf32> to vector<8x512xf32>
    %424 = arith.truncf %420 : vector<8x128xf32> to vector<8x128xbf16>
    %cst_80 = arith.constant dense<0.000000e+00> : vector<8x512xf32>
    %425 = tpu.matmul %424, %0, %cst_80 {dimension_numbers = #tpu.dot_dimension_numbers<[1], [0], [0], [1], [0, 0, 1, 1], [], []>} : vector<8x128xbf16>, vector<128x512xbf16>, vector<8x512xf32> -> vector<8x512xf32>
    %426 = arith.addf %423, %425 : vector<8x512xf32>
    %427 = vector.extract_strided_slice %426 {offsets = [0, 0], sizes = [8, 384], strides = [1, 1]} : vector<8x512xf32> to vector<8x384xf32>
    %428 = arith.negf %427 : vector<8x384xf32>
    %429 = math.exp %428 : vector<8x384xf32>
    %cst_81 = arith.constant 1.000000e+00 : f32
    %430 = vector.broadcast %cst_81 : f32 to vector<8x384xf32>
    %431 = arith.addf %430, %429 : vector<8x384xf32>
    %432 = arith.divf %430, %431 : vector<8x384xf32>
    %433 = vector.extract_strided_slice %426 {offsets = [0, 384], sizes = [8, 128], strides = [1, 1]} : vector<8x512xf32> to vector<8x128xf32>
    %434 = math.tanh %433 : vector<8x128xf32>
    %435 = vector.extract_strided_slice %432 {offsets = [0, 0], sizes = [8, 128], strides = [1, 1]} : vector<8x384xf32> to vector<8x128xf32>
    %436 = vector.extract_strided_slice %432 {offsets = [0, 128], sizes = [8, 128], strides = [1, 1]} : vector<8x384xf32> to vector<8x128xf32>
    %437 = vector.extract_strided_slice %432 {offsets = [0, 256], sizes = [8, 128], strides = [1, 1]} : vector<8x384xf32> to vector<8x128xf32>
    %438 = arith.mulf %436, %418 : vector<8x128xf32>
    %439 = arith.mulf %435, %434 : vector<8x128xf32>
    %440 = arith.addf %438, %439 : vector<8x128xf32>
    %441 = math.tanh %440 : vector<8x128xf32>
    %442 = arith.mulf %437, %441 : vector<8x128xf32>
    %c20_i32 = arith.constant 20 : i32
    %443 = arith.index_cast %c20_i32 : i32 to index
    %c0_82 = arith.constant 0 : index
    %c0_83 = arith.constant 0 : index
    %444 = vector.load %arg1[%443, %c0_82, %c0_83] : memref<25x8x512xf32, #tpu.memory_space<vmem>>, vector<1x8x512xf32>
    %445 = vector.shape_cast %444 : vector<1x8x512xf32> to vector<8x512xf32>
    %446 = arith.truncf %442 : vector<8x128xf32> to vector<8x128xbf16>
    %cst_84 = arith.constant dense<0.000000e+00> : vector<8x512xf32>
    %447 = tpu.matmul %446, %0, %cst_84 {dimension_numbers = #tpu.dot_dimension_numbers<[1], [0], [0], [1], [0, 0, 1, 1], [], []>} : vector<8x128xbf16>, vector<128x512xbf16>, vector<8x512xf32> -> vector<8x512xf32>
    %448 = arith.addf %445, %447 : vector<8x512xf32>
    %449 = vector.extract_strided_slice %448 {offsets = [0, 0], sizes = [8, 384], strides = [1, 1]} : vector<8x512xf32> to vector<8x384xf32>
    %450 = arith.negf %449 : vector<8x384xf32>
    %451 = math.exp %450 : vector<8x384xf32>
    %cst_85 = arith.constant 1.000000e+00 : f32
    %452 = vector.broadcast %cst_85 : f32 to vector<8x384xf32>
    %453 = arith.addf %452, %451 : vector<8x384xf32>
    %454 = arith.divf %452, %453 : vector<8x384xf32>
    %455 = vector.extract_strided_slice %448 {offsets = [0, 384], sizes = [8, 128], strides = [1, 1]} : vector<8x512xf32> to vector<8x128xf32>
    %456 = math.tanh %455 : vector<8x128xf32>
    %457 = vector.extract_strided_slice %454 {offsets = [0, 0], sizes = [8, 128], strides = [1, 1]} : vector<8x384xf32> to vector<8x128xf32>
    %458 = vector.extract_strided_slice %454 {offsets = [0, 128], sizes = [8, 128], strides = [1, 1]} : vector<8x384xf32> to vector<8x128xf32>
    %459 = vector.extract_strided_slice %454 {offsets = [0, 256], sizes = [8, 128], strides = [1, 1]} : vector<8x384xf32> to vector<8x128xf32>
    %460 = arith.mulf %458, %440 : vector<8x128xf32>
    %461 = arith.mulf %457, %456 : vector<8x128xf32>
    %462 = arith.addf %460, %461 : vector<8x128xf32>
    %463 = math.tanh %462 : vector<8x128xf32>
    %464 = arith.mulf %459, %463 : vector<8x128xf32>
    %c21_i32 = arith.constant 21 : i32
    %465 = arith.index_cast %c21_i32 : i32 to index
    %c0_86 = arith.constant 0 : index
    %c0_87 = arith.constant 0 : index
    %466 = vector.load %arg1[%465, %c0_86, %c0_87] : memref<25x8x512xf32, #tpu.memory_space<vmem>>, vector<1x8x512xf32>
    %467 = vector.shape_cast %466 : vector<1x8x512xf32> to vector<8x512xf32>
    %468 = arith.truncf %464 : vector<8x128xf32> to vector<8x128xbf16>
    %cst_88 = arith.constant dense<0.000000e+00> : vector<8x512xf32>
    %469 = tpu.matmul %468, %0, %cst_88 {dimension_numbers = #tpu.dot_dimension_numbers<[1], [0], [0], [1], [0, 0, 1, 1], [], []>} : vector<8x128xbf16>, vector<128x512xbf16>, vector<8x512xf32> -> vector<8x512xf32>
    %470 = arith.addf %467, %469 : vector<8x512xf32>
    %471 = vector.extract_strided_slice %470 {offsets = [0, 0], sizes = [8, 384], strides = [1, 1]} : vector<8x512xf32> to vector<8x384xf32>
    %472 = arith.negf %471 : vector<8x384xf32>
    %473 = math.exp %472 : vector<8x384xf32>
    %cst_89 = arith.constant 1.000000e+00 : f32
    %474 = vector.broadcast %cst_89 : f32 to vector<8x384xf32>
    %475 = arith.addf %474, %473 : vector<8x384xf32>
    %476 = arith.divf %474, %475 : vector<8x384xf32>
    %477 = vector.extract_strided_slice %470 {offsets = [0, 384], sizes = [8, 128], strides = [1, 1]} : vector<8x512xf32> to vector<8x128xf32>
    %478 = math.tanh %477 : vector<8x128xf32>
    %479 = vector.extract_strided_slice %476 {offsets = [0, 0], sizes = [8, 128], strides = [1, 1]} : vector<8x384xf32> to vector<8x128xf32>
    %480 = vector.extract_strided_slice %476 {offsets = [0, 128], sizes = [8, 128], strides = [1, 1]} : vector<8x384xf32> to vector<8x128xf32>
    %481 = vector.extract_strided_slice %476 {offsets = [0, 256], sizes = [8, 128], strides = [1, 1]} : vector<8x384xf32> to vector<8x128xf32>
    %482 = arith.mulf %480, %462 : vector<8x128xf32>
    %483 = arith.mulf %479, %478 : vector<8x128xf32>
    %484 = arith.addf %482, %483 : vector<8x128xf32>
    %485 = math.tanh %484 : vector<8x128xf32>
    %486 = arith.mulf %481, %485 : vector<8x128xf32>
    %c22_i32 = arith.constant 22 : i32
    %487 = arith.index_cast %c22_i32 : i32 to index
    %c0_90 = arith.constant 0 : index
    %c0_91 = arith.constant 0 : index
    %488 = vector.load %arg1[%487, %c0_90, %c0_91] : memref<25x8x512xf32, #tpu.memory_space<vmem>>, vector<1x8x512xf32>
    %489 = vector.shape_cast %488 : vector<1x8x512xf32> to vector<8x512xf32>
    %490 = arith.truncf %486 : vector<8x128xf32> to vector<8x128xbf16>
    %cst_92 = arith.constant dense<0.000000e+00> : vector<8x512xf32>
    %491 = tpu.matmul %490, %0, %cst_92 {dimension_numbers = #tpu.dot_dimension_numbers<[1], [0], [0], [1], [0, 0, 1, 1], [], []>} : vector<8x128xbf16>, vector<128x512xbf16>, vector<8x512xf32> -> vector<8x512xf32>
    %492 = arith.addf %489, %491 : vector<8x512xf32>
    %493 = vector.extract_strided_slice %492 {offsets = [0, 0], sizes = [8, 384], strides = [1, 1]} : vector<8x512xf32> to vector<8x384xf32>
    %494 = arith.negf %493 : vector<8x384xf32>
    %495 = math.exp %494 : vector<8x384xf32>
    %cst_93 = arith.constant 1.000000e+00 : f32
    %496 = vector.broadcast %cst_93 : f32 to vector<8x384xf32>
    %497 = arith.addf %496, %495 : vector<8x384xf32>
    %498 = arith.divf %496, %497 : vector<8x384xf32>
    %499 = vector.extract_strided_slice %492 {offsets = [0, 384], sizes = [8, 128], strides = [1, 1]} : vector<8x512xf32> to vector<8x128xf32>
    %500 = math.tanh %499 : vector<8x128xf32>
    %501 = vector.extract_strided_slice %498 {offsets = [0, 0], sizes = [8, 128], strides = [1, 1]} : vector<8x384xf32> to vector<8x128xf32>
    %502 = vector.extract_strided_slice %498 {offsets = [0, 128], sizes = [8, 128], strides = [1, 1]} : vector<8x384xf32> to vector<8x128xf32>
    %503 = vector.extract_strided_slice %498 {offsets = [0, 256], sizes = [8, 128], strides = [1, 1]} : vector<8x384xf32> to vector<8x128xf32>
    %504 = arith.mulf %502, %484 : vector<8x128xf32>
    %505 = arith.mulf %501, %500 : vector<8x128xf32>
    %506 = arith.addf %504, %505 : vector<8x128xf32>
    %507 = math.tanh %506 : vector<8x128xf32>
    %508 = arith.mulf %503, %507 : vector<8x128xf32>
    %c23_i32 = arith.constant 23 : i32
    %509 = arith.index_cast %c23_i32 : i32 to index
    %c0_94 = arith.constant 0 : index
    %c0_95 = arith.constant 0 : index
    %510 = vector.load %arg1[%509, %c0_94, %c0_95] : memref<25x8x512xf32, #tpu.memory_space<vmem>>, vector<1x8x512xf32>
    %511 = vector.shape_cast %510 : vector<1x8x512xf32> to vector<8x512xf32>
    %512 = arith.truncf %508 : vector<8x128xf32> to vector<8x128xbf16>
    %cst_96 = arith.constant dense<0.000000e+00> : vector<8x512xf32>
    %513 = tpu.matmul %512, %0, %cst_96 {dimension_numbers = #tpu.dot_dimension_numbers<[1], [0], [0], [1], [0, 0, 1, 1], [], []>} : vector<8x128xbf16>, vector<128x512xbf16>, vector<8x512xf32> -> vector<8x512xf32>
    %514 = arith.addf %511, %513 : vector<8x512xf32>
    %515 = vector.extract_strided_slice %514 {offsets = [0, 0], sizes = [8, 384], strides = [1, 1]} : vector<8x512xf32> to vector<8x384xf32>
    %516 = arith.negf %515 : vector<8x384xf32>
    %517 = math.exp %516 : vector<8x384xf32>
    %cst_97 = arith.constant 1.000000e+00 : f32
    %518 = vector.broadcast %cst_97 : f32 to vector<8x384xf32>
    %519 = arith.addf %518, %517 : vector<8x384xf32>
    %520 = arith.divf %518, %519 : vector<8x384xf32>
    %521 = vector.extract_strided_slice %514 {offsets = [0, 384], sizes = [8, 128], strides = [1, 1]} : vector<8x512xf32> to vector<8x128xf32>
    %522 = math.tanh %521 : vector<8x128xf32>
    %523 = vector.extract_strided_slice %520 {offsets = [0, 0], sizes = [8, 128], strides = [1, 1]} : vector<8x384xf32> to vector<8x128xf32>
    %524 = vector.extract_strided_slice %520 {offsets = [0, 128], sizes = [8, 128], strides = [1, 1]} : vector<8x384xf32> to vector<8x128xf32>
    %525 = vector.extract_strided_slice %520 {offsets = [0, 256], sizes = [8, 128], strides = [1, 1]} : vector<8x384xf32> to vector<8x128xf32>
    %526 = arith.mulf %524, %506 : vector<8x128xf32>
    %527 = arith.mulf %523, %522 : vector<8x128xf32>
    %528 = arith.addf %526, %527 : vector<8x128xf32>
    %529 = math.tanh %528 : vector<8x128xf32>
    %530 = arith.mulf %525, %529 : vector<8x128xf32>
    %c24_i32 = arith.constant 24 : i32
    %531 = arith.index_cast %c24_i32 : i32 to index
    %c0_98 = arith.constant 0 : index
    %c0_99 = arith.constant 0 : index
    %532 = vector.load %arg1[%531, %c0_98, %c0_99] : memref<25x8x512xf32, #tpu.memory_space<vmem>>, vector<1x8x512xf32>
    %533 = vector.shape_cast %532 : vector<1x8x512xf32> to vector<8x512xf32>
    %534 = arith.truncf %530 : vector<8x128xf32> to vector<8x128xbf16>
    %cst_100 = arith.constant dense<0.000000e+00> : vector<8x512xf32>
    %535 = tpu.matmul %534, %0, %cst_100 {dimension_numbers = #tpu.dot_dimension_numbers<[1], [0], [0], [1], [0, 0, 1, 1], [], []>} : vector<8x128xbf16>, vector<128x512xbf16>, vector<8x512xf32> -> vector<8x512xf32>
    %536 = arith.addf %533, %535 : vector<8x512xf32>
    %537 = vector.extract_strided_slice %536 {offsets = [0, 0], sizes = [8, 384], strides = [1, 1]} : vector<8x512xf32> to vector<8x384xf32>
    %538 = arith.negf %537 : vector<8x384xf32>
    %539 = math.exp %538 : vector<8x384xf32>
    %cst_101 = arith.constant 1.000000e+00 : f32
    %540 = vector.broadcast %cst_101 : f32 to vector<8x384xf32>
    %541 = arith.addf %540, %539 : vector<8x384xf32>
    %542 = arith.divf %540, %541 : vector<8x384xf32>
    %543 = vector.extract_strided_slice %536 {offsets = [0, 384], sizes = [8, 128], strides = [1, 1]} : vector<8x512xf32> to vector<8x128xf32>
    %544 = math.tanh %543 : vector<8x128xf32>
    %545 = vector.extract_strided_slice %542 {offsets = [0, 0], sizes = [8, 128], strides = [1, 1]} : vector<8x384xf32> to vector<8x128xf32>
    %546 = vector.extract_strided_slice %542 {offsets = [0, 128], sizes = [8, 128], strides = [1, 1]} : vector<8x384xf32> to vector<8x128xf32>
    %547 = vector.extract_strided_slice %542 {offsets = [0, 256], sizes = [8, 128], strides = [1, 1]} : vector<8x384xf32> to vector<8x128xf32>
    %548 = arith.mulf %546, %528 : vector<8x128xf32>
    %549 = arith.mulf %545, %544 : vector<8x128xf32>
    %550 = arith.addf %548, %549 : vector<8x128xf32>
    %551 = math.tanh %550 : vector<8x128xf32>
    %552 = arith.mulf %547, %551 : vector<8x128xf32>
    %c25_i32 = arith.constant 25 : i32
    %c0_102 = arith.constant 0 : index
    %c0_103 = arith.constant 0 : index
    %553 = vector.load %arg3[%c0_102, %c0_103] : memref<128x128xbf16, #tpu.memory_space<vmem>>, vector<128x128xbf16>
    %c0_104 = arith.constant 0 : index
    %c0_105 = arith.constant 0 : index
    %554 = vector.load %arg4[%c0_104, %c0_105] : memref<1x128xf32, #tpu.memory_space<vmem>>, vector<1x128xf32>
    %555 = arith.truncf %552 : vector<8x128xf32> to vector<8x128xbf16>
    %cst_106 = arith.constant dense<0.000000e+00> : vector<8x128xf32>
    %556 = tpu.matmul %555, %553, %cst_106 {dimension_numbers = #tpu.dot_dimension_numbers<[1], [0], [0], [1], [0, 0, 1, 1], [], []>} : vector<8x128xbf16>, vector<128x128xbf16>, vector<8x128xf32> -> vector<8x128xf32>
    %557 = vector.broadcast %554 : vector<1x128xf32> to vector<8x128xf32>
    %558 = arith.addf %556, %557 : vector<8x128xf32>
    %c0_107 = arith.constant 0 : index
    %c0_108 = arith.constant 0 : index
    %559 = vector.load %arg5[%c0_107, %c0_108] : memref<8x128xf32, #tpu.memory_space<vmem>>, vector<8x128xf32>
    tpu.vector_store %arg5[%c0_107, %c0_108], %558 {strides = array<i32>} : memref<8x128xf32, #tpu.memory_space<vmem>>, vector<8x128xf32>,
    return
  }
  func.func @transform_0(%arg0: i32) -> (i32, i32, i32) {
    %c0_i32 = arith.constant 0 : i32
    %c0_i32_0 = arith.constant 0 : i32
    %c0_i32_1 = arith.constant 0 : i32
    return %c0_i32, %arg0, %c0_i32_0 : i32, i32, i32
  }
  func.func @transform_1(%arg0: i32) -> (i32, i32) {
    %c0_i32 = arith.constant 0 : i32
    %c0_i32_0 = arith.constant 0 : i32
    %c0_i32_1 = arith.constant 0 : i32
    return %c0_i32, %c0_i32_0 : i32, i32
  }
  func.func @transform_2(%arg0: i32) -> (i32, i32) {
    %c0_i32 = arith.constant 0 : i32
    %c0_i32_0 = arith.constant 0 : i32
    %c0_i32_1 = arith.constant 0 : i32
    return %c0_i32, %c0_i32_0 : i32, i32
  }
  func.func @transform_3(%arg0: i32) -> (i32, i32) {
    %c0_i32 = arith.constant 0 : i32
    %c0_i32_0 = arith.constant 0 : i32
    %c0_i32_1 = arith.constant 0 : i32
    return %c0_i32, %c0_i32_0 : i32, i32
  }
  func.func @transform_4(%arg0: i32) -> (i32, i32) {
    %c0_i32 = arith.constant 0 : i32
    %c0_i32_0 = arith.constant 0 : i32
    return %arg0, %c0_i32 : i32, i32
  }
}

</mosaic_0001>

<llo_original>
// kernel: tpu_custom_call.1
$region0: #{tpu_custom_call.1}
  #allocation0 [shape = 'u32[]', space=smem, size = 0x4, offset = 0x4, fixed_abs, tag = 'smem constant byte address 0x4 - core index']
  #allocation1 [shape = 'u32[144,128]{1,0:T(1,128)}', space=vmem, size = 0x12000, scoped, tag = 'internal scratch']
  %s0 = inlined_call_operand.hbm [shape: f32[25,8,512], index: 0, kind: input, shape index: {}]
  %s1 = inlined_call_operand.hbm [shape: bf16[128,512], index: 1, kind: input, shape index: {}]
  %s2 = inlined_call_operand.hbm [shape: bf16[128,128], index: 2, kind: input, shape index: {}]
  %s3 = inlined_call_operand.vmem [shape: f32[1,128], index: 3, kind: input, shape index: {}]
  %s4 = inlined_call_operand.hbm [shape: f32[8,128], index: 4, kind: output, shape index: {}]
  %s5 = sld [smem:[#allocation0]]
  $region38: #{tpu_custom_call.1} parent=0
    _
  %s7 = ssub.s32 1, %s5
  %s8 = scalar_select 0, %s7, %s5
  $region1: #{tpu_custom_call.1} parent=0
    #allocation2 [shape = 'u8[409600]{0}', space=vmem, size = 0x64000, scoped, tag = 'input window, operand 0, single buffered']
    #allocation3 [shape = 's32[1]{0}', space=sflag, size = 0x4, scoped, tag = 'scoped memory for tpu_custom_call.1']
    #allocation4 [shape = 's32[1]{0}', space=sflag, size = 0x4, scoped, tag = 'scoped memory for tpu_custom_call.1']
    #allocation5 [shape = 'u8[131072]{0}', space=vmem, size = 0x20000, scoped, tag = 'input window, operand 1, single buffered']
    #allocation6 [shape = 's32[1]{0}', space=sflag, size = 0x4, scoped, tag = 'scoped memory for tpu_custom_call.1']
    #allocation7 [shape = 'u8[32768]{0}', space=vmem, size = 0x8000, scoped, tag = 'input window, operand 2, single buffered']
    #allocation8 [shape = 'u8[4096]{0}', space=vmem, size = 0x1000, scoped, tag = 'output window, operand 0, single buffered']
    %9 = vsyncpa [#allocation3], 0
    %10 = vsyncpa [#allocation6], 0
    %11 = vsyncpa [#allocation4], 0
    // Predicated region
    $region2: #{tpu_custom_call.1} parent=1 // pred_check
      _
    $region3: #{tpu_custom_call.1} parent=1 // pred_check_branch
      %13 = sbr.rel (0) target = $region5
    $region4: #{tpu_custom_call.1} parent=1 // pred_region
      %s15 = ssub.s32 12800, 12800
      %16 = vsyncadd [#allocation3], %s15
      %s17 = sshll.u32 [#allocation2], 4
      %s18 = int_to_ptr.vmem [resolvable:$true] %s17
      %23 = dma.hbm_to_vmem [thread:$0]  %s0, 12800, %s18, [#allocation3], 512, 512, 32
    $region5: #{tpu_custom_call.1} parent=1 // pred_fallthru
      _
    // Predicated region
    $region6: #{tpu_custom_call.1} parent=1 // pred_check
      _
    $region7: #{tpu_custom_call.1} parent=1 // pred_check_branch
      %25 = sbr.rel (0) target = $region9
    $region8: #{tpu_custom_call.1} parent=1 // pred_region
      %s27 = ssub.s32 4096, 4096
      %28 = vsyncadd [#allocation6], %s27
      %s29 = sshll.u32 [#allocation5], 4
      %s30 = int_to_ptr.vmem [resolvable:$true] %s29
      %35 = dma.hbm_to_vmem [thread:$0]  %s1, 4096, %s30, [#allocation6], 256, 256, 16
    $region9: #{tpu_custom_call.1} parent=1 // pred_fallthru
      _
    // Predicated region
    $region10: #{tpu_custom_call.1} parent=1 // pred_check
      _
    $region11: #{tpu_custom_call.1} parent=1 // pred_check_branch
      %37 = sbr.rel (0) target = $region13
    $region12: #{tpu_custom_call.1} parent=1 // pred_region
      %s39 = ssub.s32 1024, 1024
      %40 = vsyncadd [#allocation6], %s39
      %s41 = sshll.u32 [#allocation7], 4
      %s42 = int_to_ptr.vmem [resolvable:$true] %s41
      %47 = dma.hbm_to_vmem [thread:$0]  %s2, 1024, %s42, [#allocation6], 64, 64, 4
    $region13: #{tpu_custom_call.1} parent=1 // pred_fallthru
      _
    // Predicated region
    $region14: #{tpu_custom_call.1} parent=1 // pred_check
      _
    $region15: #{tpu_custom_call.1} parent=1 // pred_check_branch
      %49 = sbr.rel (0) target = $region17
    $region16: #{tpu_custom_call.1} parent=1 // pred_region
      _
    $region17: #{tpu_custom_call.1} parent=1 // pred_fallthru
      _
    // Predicated region
    $region18: #{tpu_custom_call.1} parent=1 // pred_check
      _
    $region19: #{tpu_custom_call.1} parent=1 // pred_check_branch
      %51 = sbr.rel (0) target = $region21
    $region20: #{tpu_custom_call.1} parent=1 // pred_region
      %52 = dma.done [#allocation3], 12800
    $region21: #{tpu_custom_call.1} parent=1 // pred_fallthru
      _
    // Predicated region
    $region22: #{tpu_custom_call.1} parent=1 // pred_check
      _
    $region23: #{tpu_custom_call.1} parent=1 // pred_check_branch
      %54 = sbr.rel (0) target = $region25
    $region24: #{tpu_custom_call.1} parent=1 // pred_region
      %55 = dma.done [#allocation6], 4096
    $region25: #{tpu_custom_call.1} parent=1 // pred_fallthru
      _
    // Predicated region
    $region26: #{tpu_custom_call.1} parent=1 // pred_check
      _
    $region27: #{tpu_custom_call.1} parent=1 // pred_check_branch
      %57 = sbr.rel (0) target = $region29
    $region28: #{tpu_custom_call.1} parent=1 // pred_region
      %58 = dma.done [#allocation6], 1024
    $region29: #{tpu_custom_call.1} parent=1 // pred_fallthru
      _
    %v60 = vld [vmem:[#allocation5] sm:$0xff]
    %v61 = vld [vmem:[#allocation5 + $0x8] sm:$0xff]
    %v62 = vld [vmem:[#allocation5 + $0x10] sm:$0xff]
    %v63 = vld [vmem:[#allocation5 + $0x18] sm:$0xff]
    %v64 = vld [vmem:[#allocation5 + $0x20] sm:$0xff]
    %v65 = vld [vmem:[#allocation5 + $0x28] sm:$0xff]
    %v66 = vld [vmem:[#allocation5 + $0x30] sm:$0xff]
    %v67 = vld [vmem:[#allocation5 + $0x38] sm:$0xff]
    %v68 = vld [vmem:[#allocation5 + $0x40] sm:$0xff]
    %v69 = vld [vmem:[#allocation5 + $0x48] sm:$0xff]
    %v70 = vld [vmem:[#allocation5 + $0x50] sm:$0xff]
    %v71 = vld [vmem:[#allocation5 + $0x58] sm:$0xff]
    %v72 = vld [vmem:[#allocation5 + $0x60] sm:$0xff]
    %v73 = vld [vmem:[#allocation5 + $0x68] sm:$0xff]
    %v74 = vld [vmem:[#allocation5 + $0x70] sm:$0xff]
    %v75 = vld [vmem:[#allocation5 + $0x78] sm:$0xff]
    %v76 = vld [vmem:[#allocation5 + $0x80] sm:$0xff]
    %v77 = vld [vmem:[#allocation5 + $0x88] sm:$0xff]
    %v78 = vld [vmem:[#allocation5 + $0x90] sm:$0xff]
    %v79 = vld [vmem:[#allocation5 + $0x98] sm:$0xff]
    %v80 = vld [vmem:[#allocation5 + $0xa0] sm:$0xff]
    %v81 = vld [vmem:[#allocation5 + $0xa8] sm:$0xff]
    %v82 = vld [vmem:[#allocation5 + $0xb0] sm:$0xff]
    %v83 = vld [vmem:[#allocation5 + $0xb8] sm:$0xff]
    %v84 = vld [vmem:[#allocation5 + $0xc0] sm:$0xff]
    %v85 = vld [vmem:[#allocation5 + $0xc8] sm:$0xff]
    %v86 = vld [vmem:[#allocation5 + $0xd0] sm:$0xff]
    %v87 = vld [vmem:[#allocation5 + $0xd8] sm:$0xff]
    %v88 = vld [vmem:[#allocation5 + $0xe0] sm:$0xff]
    %v89 = vld [vmem:[#allocation5 + $0xe8] sm:$0xff]
    %v90 = vld [vmem:[#allocation5 + $0xf0] sm:$0xff]
    %v91 = vld [vmem:[#allocation5 + $0xf8] sm:$0xff]
    %v92 = vld [vmem:[#allocation2] sm:$0xff]
    %v93 = vld [vmem:[#allocation2 + $0x8] sm:$0xff]
    %v94 = vld [vmem:[#allocation2 + $0x10] sm:$0xff]
    %v95 = vld [vmem:[#allocation2 + $0x18] sm:$0xff]
    %v128 = vunpack.c.l.b16 %v60
    %v129 = vunpack.c.h.b16 %v60
    %v130 = vunpack.c.l.b16 %v61
    %v131 = vunpack.c.h.b16 %v61
    %v132 = vunpack.c.l.b16 %v62
    %v133 = vunpack.c.h.b16 %v62
    %v134 = vunpack.c.l.b16 %v63
    %v135 = vunpack.c.h.b16 %v63
    %v136 = vunpack.c.l.b16 %v64
    %v137 = vunpack.c.h.b16 %v64
    %v138 = vunpack.c.l.b16 %v65
    %v139 = vunpack.c.h.b16 %v65
    %v140 = vunpack.c.l.b16 %v66
    %v141 = vunpack.c.h.b16 %v66
    %v142 = vunpack.c.l.b16 %v67
    %v143 = vunpack.c.h.b16 %v67
    %v144 = vunpack.c.l.b16 %v68
    %v145 = vunpack.c.h.b16 %v68
    %v146 = vunpack.c.l.b16 %v69
    %v147 = vunpack.c.h.b16 %v69
    %v148 = vunpack.c.l.b16 %v70
    %v149 = vunpack.c.h.b16 %v70
    %v150 = vunpack.c.l.b16 %v71
    %v151 = vunpack.c.h.b16 %v71
    %v152 = vunpack.c.l.b16 %v72
    %v153 = vunpack.c.h.b16 %v72
    %v154 = vunpack.c.l.b16 %v73
    %v155 = vunpack.c.h.b16 %v73
    %v156 = vunpack.c.l.b16 %v74
    %v157 = vunpack.c.h.b16 %v74
    %v158 = vunpack.c.l.b16 %v75
    %v159 = vunpack.c.h.b16 %v75
    %v160 = vunpack.c.l.b16 %v76
    %v161 = vunpack.c.h.b16 %v76
    %v162 = vunpack.c.l.b16 %v77
    %v163 = vunpack.c.h.b16 %v77
    %v164 = vunpack.c.l.b16 %v78
    %v165 = vunpack.c.h.b16 %v78
    %v166 = vunpack.c.l.b16 %v79
    %v167 = vunpack.c.h.b16 %v79
    %v168 = vunpack.c.l.b16 %v80
    %v169 = vunpack.c.h.b16 %v80
    %v170 = vunpack.c.l.b16 %v81
    %v171 = vunpack.c.h.b16 %v81
    %v172 = vunpack.c.l.b16 %v82
    %v173 = vunpack.c.h.b16 %v82
    %v174 = vunpack.c.l.b16 %v83
    %v175 = vunpack.c.h.b16 %v83
    %v176 = vunpack.c.l.b16 %v84
    %v177 = vunpack.c.h.b16 %v84
    %v178 = vunpack.c.l.b16 %v85
    %v179 = vunpack.c.h.b16 %v85
    %v180 = vunpack.c.l.b16 %v86
    %v181 = vunpack.c.h.b16 %v86
    %v182 = vunpack.c.l.b16 %v87
    %v183 = vunpack.c.h.b16 %v87
    %v184 = vunpack.c.l.b16 %v88
    %v185 = vunpack.c.h.b16 %v88
    %v186 = vunpack.c.l.b16 %v89
    %v187 = vunpack.c.h.b16 %v89
    %v188 = vunpack.c.l.b16 %v90
    %v189 = vunpack.c.h.b16 %v90
    %v190 = vunpack.c.l.b16 %v91
    %v191 = vunpack.c.h.b16 %v91
    %v192 = vpack.c.b16 %v132, %v128
    %v193 = vpack.c.b16 %v133, %v129
    %v194 = vpack.c.b16 %v134, %v130
    %v195 = vpack.c.b16 %v135, %v131
    %v196 = vpack.c.b16 %v140, %v136
    %v197 = vpack.c.b16 %v141, %v137
    %v198 = vpack.c.b16 %v142, %v138
    %v199 = vpack.c.b16 %v143, %v139
    %v200 = vpack.c.b16 %v148, %v144
    %v201 = vpack.c.b16 %v149, %v145
    %v202 = vpack.c.b16 %v150, %v146
    %v203 = vpack.c.b16 %v151, %v147
    %v204 = vpack.c.b16 %v156, %v152
    %v205 = vpack.c.b16 %v157, %v153
    %v206 = vpack.c.b16 %v158, %v154
    %v207 = vpack.c.b16 %v159, %v155
    %v208 = vpack.c.b16 %v164, %v160
    %v209 = vpack.c.b16 %v165, %v161
    %v210 = vpack.c.b16 %v166, %v162
    %v211 = vpack.c.b16 %v167, %v163
    %v212 = vpack.c.b16 %v172, %v168
    %v213 = vpack.c.b16 %v173, %v169
    %v214 = vpack.c.b16 %v174, %v170
    %v215 = vpack.c.b16 %v175, %v171
    %v216 = vpack.c.b16 %v180, %v176
    %v217 = vpack.c.b16 %v181, %v177
    %v218 = vpack.c.b16 %v182, %v178
    %v219 = vpack.c.b16 %v183, %v179
    %v220 = vpack.c.b16 %v188, %v184
    %v221 = vpack.c.b16 %v189, %v185
    %v222 = vpack.c.b16 %v190, %v186
    %v223 = vpack.c.b16 %v191, %v187
    %256 = vmatprep.subr.bf16.mxu0 %v221
    %257 = vmatpush1.bf16.msra.mxu0 %v220
    %258 = vmatprep.subr.bf16.mxu0 %v217
    %259 = vmatpush1.bf16.msra.mxu0 %v216
    %260 = vmatprep.subr.bf16.mxu0 %v213
    %261 = vmatpush1.bf16.msra.mxu0 %v212
    %262 = vmatprep.subr.bf16.mxu0 %v209
    %263 = vmatpush1.bf16.msra.mxu0 %v208
    %264 = vmatprep.subr.bf16.mxu0 %v205
    %265 = vmatpush1.bf16.msra.mxu0 %v204
    %266 = vmatprep.subr.bf16.mxu0 %v201
    %267 = vmatpush1.bf16.msra.mxu0 %v200
    %268 = vmatprep.subr.bf16.mxu0 %v197
    %269 = vmatpush1.bf16.msra.mxu0 %v196
    %270 = vmatprep.subr.bf16.mxu0 %v193
    %271 = vmatpush1.bf16.msra.mxu0 %v192
    %272 = vmatprep.subr.bf16.mxu0 0
    %273 = vmatpush2.bf16.msra.mxu0 0
    %274 = vmatprep.subr.bf16.mxu0 0
    %275 = vmatpush2.bf16.msra.mxu0 0
    %276 = vmatprep.subr.bf16.mxu0 0
    %277 = vmatpush2.bf16.msra.mxu0 0
    %278 = vmatprep.subr.bf16.mxu0 0
    %279 = vmatpush2.bf16.msra.mxu0 0
    %280 = vmatprep.subr.bf16.mxu0 0
    %281 = vmatpush2.bf16.msra.mxu0 0
    %282 = vmatprep.subr.bf16.mxu0 0
    %283 = vmatpush2.bf16.msra.mxu0 0
    %284 = vmatprep.subr.bf16.mxu0 0
    %285 = vmatpush2.bf16.msra.mxu0 0
    %286 = vmatprep.subr.bf16.mxu0 0
    %287 = vmatpush2.bf16.msra.mxu0 0
    %288 = vmatprep.mubr.bf16.mxu0 0
    %289 = vmatmul.mubr.bf16.gmra.mxu0 0
    %v290 = vpop.f32.mrf.mxu0
    %v291 = vadd.f32 0.0, %v290
    %v292 = vpop.f32.mrf.mxu0
    %v293 = vadd.f32 0.0, %v292
    %v294 = vpop.f32.mrf.mxu0
    %v295 = vpop.f32.mrf.mxu0
    %296 = vdwg.mxu0
    %297 = vmatprep.subr.bf16.mxu0 %v223
    %298 = vmatpush1.bf16.msra.mxu0 %v222
    %299 = vmatprep.subr.bf16.mxu0 %v219
    %300 = vmatpush1.bf16.msra.mxu0 %v218
    %301 = vmatprep.subr.bf16.mxu0 %v215
    %302 = vmatpush1.bf16.msra.mxu0 %v214
    %303 = vmatprep.subr.bf16.mxu0 %v211
    %304 = vmatpush1.bf16.msra.mxu0 %v210
    %305 = vmatprep.subr.bf16.mxu0 %v207
    %306 = vmatpush1.bf16.msra.mxu0 %v206
    %307 = vmatprep.subr.bf16.mxu0 %v203
    %308 = vmatpush1.bf16.msra.mxu0 %v202
    %309 = vmatprep.subr.bf16.mxu0 %v199
    %310 = vmatpush1.bf16.msra.mxu0 %v198
    %311 = vmatprep.subr.bf16.mxu0 %v195
    %312 = vmatpush1.bf16.msra.mxu0 %v194
    %313 = vmatprep.subr.bf16.mxu0 0
    %314 = vmatpush2.bf16.msra.mxu0 0
    %315 = vmatprep.subr.bf16.mxu0 0
    %316 = vmatpush2.bf16.msra.mxu0 0
    %317 = vmatprep.subr.bf16.mxu0 0
    %318 = vmatpush2.bf16.msra.mxu0 0
    %319 = vmatprep.subr.bf16.mxu0 0
    %320 = vmatpush2.bf16.msra.mxu0 0
    %321 = vmatprep.subr.bf16.mxu0 0
    %322 = vmatpush2.bf16.msra.mxu0 0
    %323 = vmatprep.subr.bf16.mxu0 0
    %324 = vmatpush2.bf16.msra.mxu0 0
    %325 = vmatprep.subr.bf16.mxu0 0
    %326 = vmatpush2.bf16.msra.mxu0 0
    %327 = vmatprep.subr.bf16.mxu0 0
    %328 = vmatpush2.bf16.msra.mxu0 0
    %329 = vmatprep.mubr.bf16.mxu0 0
    %330 = vmatmul.mubr.bf16.gmra.mxu0 0
    %v331 = vpop.f32.mrf.mxu0
    %v332 = vadd.f32 0.0, %v331
    %v333 = vpop.f32.mrf.mxu0
    %v334 = vadd.f32 0.0, %v333
    %v335 = vpop.f32.mrf.mxu0
    %v336 = vpop.f32.mrf.mxu0
    %337 = vdwg.mxu0
    %v338 = vadd.f32 %v92, %v291
    %v339 = vadd.f32 %v93, %v293
    %v340 = vadd.f32 %v94, %v332
    %v341 = vadd.f32 %v95, %v334
    %v342 = vxor.u32 %v338, 2147483648
    %v343 = vxor.u32 %v339, 2147483648
    %v344 = vxor.u32 %v340, 2147483648
    %v345 = vmul.f32 %v342, 1.442695
    %v346 = vpow.pop %v345
    %v347 = vmul.f32 %v343, 1.442695
    %v348 = vpow.pop %v347
    %v349 = vmul.f32 %v344, 1.442695
    %v350 = vpow.pop %v349
    %v351 = vadd.f32 %v346, 1.0
    %v352 = vadd.f32 %v348, 1.0
    %v353 = vadd.f32 %v350, 1.0
    %v354 = vrcp.pop %v351
    %v355 = vmul.f32 1.0, %v354
    %v356 = vrcp.pop %v352
    %v357 = vmul.f32 1.0, %v356
    %v358 = vrcp.pop %v353
    %v359 = vmul.f32 1.0, %v358
    %v360 = vtanh.pop %v341
    %v361 = vmul.f32 %v357, 0.0
    %v362 = vmul.f32 %v355, %v360
    %v363 = vadd.f32 %v361, %v362
    %v364 = vtanh.pop %v363
    %v365 = vmul.f32 %v359, %v364
    %s366 = scalar_lea.vmem [#allocation2], 32
    %v367 = vld [vmem:[%s366] sm:$0xff]
    %v368 = vld [vmem:[%s366 + $0x8] sm:$0xff]
    %v369 = vld [vmem:[%s366 + $0x10] sm:$0xff]
    %v370 = vld [vmem:[%s366 + $0x18] sm:$0xff]
    %v371 = vpack.c.bf16 %v365, %v365
    %372 = vmatprep.subr.bf16.mxu0 %v221
    %373 = vmatpush1.bf16.msra.mxu0 %v220
    %374 = vmatprep.subr.bf16.mxu0 %v217
    %375 = vmatpush1.bf16.msra.mxu0 %v216
    %376 = vmatprep.subr.bf16.mxu0 %v213
    %377 = vmatpush1.bf16.msra.mxu0 %v212
    %378 = vmatprep.subr.bf16.mxu0 %v209
    %379 = vmatpush1.bf16.msra.mxu0 %v208
    %380 = vmatprep.subr.bf16.mxu0 %v205
    %381 = vmatpush1.bf16.msra.mxu0 %v204
    %382 = vmatprep.subr.bf16.mxu0 %v201
    %383 = vmatpush1.bf16.msra.mxu0 %v200
    %384 = vmatprep.subr.bf16.mxu0 %v197
    %385 = vmatpush1.bf16.msra.mxu0 %v196
    %386 = vmatprep.subr.bf16.mxu0 %v193
    %387 = vmatpush1.bf16.msra.mxu0 %v192
    %388 = vmatprep.subr.bf16.mxu0 0
    %389 = vmatpush2.bf16.msra.mxu0 0
    %390 = vmatprep.subr.bf16.mxu0 0
    %391 = vmatpush2.bf16.msra.mxu0 0
    %392 = vmatprep.subr.bf16.mxu0 0
    %393 = vmatpush2.bf16.msra.mxu0 0
    %394 = vmatprep.subr.bf16.mxu0 0
    %395 = vmatpush2.bf16.msra.mxu0 0
    %396 = vmatprep.subr.bf16.mxu0 0
    %397 = vmatpush2.bf16.msra.mxu0 0
    %398 = vmatprep.subr.bf16.mxu0 0
    %399 = vmatpush2.bf16.msra.mxu0 0
    %400 = vmatprep.subr.bf16.mxu0 0
    %401 = vmatpush2.bf16.msra.mxu0 0
    %402 = vmatprep.subr.bf16.mxu0 0
    %403 = vmatpush2.bf16.msra.mxu0 0
    %404 = vmatprep.mubr.bf16.mxu0 0
    %405 = vmatmul.mubr.bf16.gmra.mxu0 %v371
    %v406 = vpop.f32.mrf.mxu0
    %v407 = vadd.f32 0.0, %v406
    %v408 = vpop.f32.mrf.mxu0
    %v409 = vadd.f32 0.0, %v408
    %v410 = vpop.f32.mrf.mxu0
    %v411 = vpop.f32.mrf.mxu0
    %412 = vdwg.mxu0
    %413 = vmatprep.subr.bf16.mxu0 %v223
    %414 = vmatpush1.bf16.msra.mxu0 %v222
    %415 = vmatprep.subr.bf16.mxu0 %v219
    %416 = vmatpush1.bf16.msra.mxu0 %v218
    %417 = vmatprep.subr.bf16.mxu0 %v215
    %418 = vmatpush1.bf16.msra.mxu0 %v214
    %419 = vmatprep.subr.bf16.mxu0 %v211
    %420 = vmatpush1.bf16.msra.mxu0 %v210
    %421 = vmatprep.subr.bf16.mxu0 %v207
    %422 = vmatpush1.bf16.msra.mxu0 %v206
    %423 = vmatprep.subr.bf16.mxu0 %v203
    %424 = vmatpush1.bf16.msra.mxu0 %v202
    %425 = vmatprep.subr.bf16.mxu0 %v199
    %426 = vmatpush1.bf16.msra.mxu0 %v198
    %427 = vmatprep.subr.bf16.mxu0 %v195
    %428 = vmatpush1.bf16.msra.mxu0 %v194
    %429 = vmatprep.subr.bf16.mxu0 0
    %430 = vmatpush2.bf16.msra.mxu0 0
    %431 = vmatprep.subr.bf16.mxu0 0
    %432 = vmatpush2.bf16.msra.mxu0 0
    %433 = vmatprep.subr.bf16.mxu0 0
    %434 = vmatpush2.bf16.msra.mxu0 0
    %435 = vmatprep.subr.bf16.mxu0 0
    %436 = vmatpush2.bf16.msra.mxu0 0
    %437 = vmatprep.subr.bf16.mxu0 0
    %438 = vmatpush2.bf16.msra.mxu0 0
    %439 = vmatprep.subr.bf16.mxu0 0
    %440 = vmatpush2.bf16.msra.mxu0 0
    %441 = vmatprep.subr.bf16.mxu0 0
    %442 = vmatpush2.bf16.msra.mxu0 0
    %443 = vmatprep.subr.bf16.mxu0 0
    %444 = vmatpush2.bf16.msra.mxu0 0
    %445 = vmatprep.mubr.bf16.mxu0 0
    %446 = vmatmul.mubr.bf16.gmra.mxu0 %v371
    %v447 = vpop.f32.mrf.mxu0
    %v448 = vadd.f32 0.0, %v447
    %v449 = vpop.f32.mrf.mxu0
    %v450 = vadd.f32 0.0, %v449
    %v451 = vpop.f32.mrf.mxu0
    %v452 = vpop.f32.mrf.mxu0
    %453 = vdwg.mxu0
    %v454 = vadd.f32 %v367, %v407
    %v455 = vadd.f32 %v368, %v409
    %v456 = vadd.f32 %v369, %v448
    %v457 = vadd.f32 %v370, %v450
    %v458 = vxor.u32 %v454, 2147483648
    %v459 = vxor.u32 %v455, 2147483648
    %v460 = vxor.u32 %v456, 2147483648
    %v461 = vmul.f32 %v458, 1.442695
    %v462 = vpow.pop %v461
    %v463 = vmul.f32 %v459, 1.442695
    %v464 = vpow.pop %v463
    %v465 = vmul.f32 %v460, 1.442695
    %v466 = vpow.pop %v465
    %v467 = vadd.f32 %v462, 1.0
    %v468 = vadd.f32 %v464, 1.0
    %v469 = vadd.f32 %v466, 1.0
    %v470 = vrcp.pop %v467
    %v471 = vmul.f32 1.0, %v470
    %v472 = vrcp.pop %v468
    %v473 = vmul.f32 1.0, %v472
    %v474 = vrcp.pop %v469
    %v475 = vmul.f32 1.0, %v474
    %v476 = vtanh.pop %v457
    %v477 = vmul.f32 %v473, %v363
    %v478 = vmul.f32 %v471, %v476
    %v479 = vadd.f32 %v477, %v478
    %v480 = vtanh.pop %v479
    %v481 = vmul.f32 %v475, %v480
    %s482 = scalar_lea.vmem [#allocation2], 64
    %v483 = vld [vmem:[%s482] sm:$0xff]
    %v484 = vld [vmem:[%s482 + $0x8] sm:$0xff]
    %v485 = vld [vmem:[%s482 + $0x10] sm:$0xff]
    %v486 = vld [vmem:[%s482 + $0x18] sm:$0xff]
    %v487 = vpack.c.bf16 %v481, %v481
    %488 = vmatprep.subr.bf16.mxu0 %v221
    %489 = vmatpush1.bf16.msra.mxu0 %v220
    %490 = vmatprep.subr.bf16.mxu0 %v217
    %491 = vmatpush1.bf16.msra.mxu0 %v216
    %492 = vmatprep.subr.bf16.mxu0 %v213
    %493 = vmatpush1.bf16.msra.mxu0 %v212
    %494 = vmatprep.subr.bf16.mxu0 %v209
    %495 = vmatpush1.bf16.msra.mxu0 %v208
    %496 = vmatprep.subr.bf16.mxu0 %v205
    %497 = vmatpush1.bf16.msra.mxu0 %v204
    %498 = vmatprep.subr.bf16.mxu0 %v201
    %499 = vmatpush1.bf16.msra.mxu0 %v200
    %500 = vmatprep.subr.bf16.mxu0 %v197
    %501 = vmatpush1.bf16.msra.mxu0 %v196
    %502 = vmatprep.subr.bf16.mxu0 %v193
    %503 = vmatpush1.bf16.msra.mxu0 %v192
    %504 = vmatprep.subr.bf16.mxu0 0
    %505 = vmatpush2.bf16.msra.mxu0 0
    %506 = vmatprep.subr.bf16.mxu0 0
    %507 = vmatpush2.bf16.msra.mxu0 0
    %508 = vmatprep.subr.bf16.mxu0 0
    %509 = vmatpush2.bf16.msra.mxu0 0
    %510 = vmatprep.subr.bf16.mxu0 0
    %511 = vmatpush2.bf16.msra.mxu0 0
    %512 = vmatprep.subr.bf16.mxu0 0
    %513 = vmatpush2.bf16.msra.mxu0 0
    %514 = vmatprep.subr.bf16.mxu0 0
    %515 = vmatpush2.bf16.msra.mxu0 0
    %516 = vmatprep.subr.bf16.mxu0 0
    %517 = vmatpush2.bf16.msra.mxu0 0
    %518 = vmatprep.subr.bf16.mxu0 0
    %519 = vmatpush2.bf16.msra.mxu0 0
    %520 = vmatprep.mubr.bf16.mxu0 0
    %521 = vmatmul.mubr.bf16.gmra.mxu0 %v487
    %v522 = vpop.f32.mrf.mxu0
    %v523 = vadd.f32 0.0, %v522
    %v524 = vpop.f32.mrf.mxu0
    %v525 = vadd.f32 0.0, %v524
    %v526 = vpop.f32.mrf.mxu0
    %v527 = vpop.f32.mrf.mxu0
    %528 = vdwg.mxu0
    %529 = vmatprep.subr.bf16.mxu0 %v223
    %530 = vmatpush1.bf16.msra.mxu0 %v222
    %531 = vmatprep.subr.bf16.mxu0 %v219
    %532 = vmatpush1.bf16.msra.mxu0 %v218
    %533 = vmatprep.subr.bf16.mxu0 %v215
    %534 = vmatpush1.bf16.msra.mxu0 %v214
    %535 = vmatprep.subr.bf16.mxu0 %v211
    %536 = vmatpush1.bf16.msra.mxu0 %v210
    %537 = vmatprep.subr.bf16.mxu0 %v207
    %538 = vmatpush1.bf16.msra.mxu0 %v206
    %539 = vmatprep.subr.bf16.mxu0 %v203
    %540 = vmatpush1.bf16.msra.mxu0 %v202
    %541 = vmatprep.subr.bf16.mxu0 %v199
    %542 = vmatpush1.bf16.msra.mxu0 %v198
    %543 = vmatprep.subr.bf16.mxu0 %v195
    %544 = vmatpush1.bf16.msra.mxu0 %v194
    %545 = vmatprep.subr.bf16.mxu0 0
    %546 = vmatpush2.bf16.msra.mxu0 0
    %547 = vmatprep.subr.bf16.mxu0 0
    %548 = vmatpush2.bf16.msra.mxu0 0
    %549 = vmatprep.subr.bf16.mxu0 0
    %550 = vmatpush2.bf16.msra.mxu0 0
    %551 = vmatprep.subr.bf16.mxu0 0
    %552 = vmatpush2.bf16.msra.mxu0 0
    %553 = vmatprep.subr.bf16.mxu0 0
    %554 = vmatpush2.bf16.msra.mxu0 0
    %555 = vmatprep.subr.bf16.mxu0 0
    %556 = vmatpush2.bf16.msra.mxu0 0
    %557 = vmatprep.subr.bf16.mxu0 0
    %558 = vmatpush2.bf16.msra.mxu0 0
    %559 = vmatprep.subr.bf16.mxu0 0
    %560 = vmatpush2.bf16.msra.mxu0 0
    %561 = vmatprep.mubr.bf16.mxu0 0
    %562 = vmatmul.mubr.bf16.gmra.mxu0 %v487
    %v563 = vpop.f32.mrf.mxu0
    %v564 = vadd.f32 0.0, %v563
    %v565 = vpop.f32.mrf.mxu0
    %v566 = vadd.f32 0.0, %v565
    %v567 = vpop.f32.mrf.mxu0
    %v568 = vpop.f32.mrf.mxu0
    %569 = vdwg.mxu0
    %v570 = vadd.f32 %v483, %v523
    %v571 = vadd.f32 %v484, %v525
    %v572 = vadd.f32 %v485, %v564
    %v573 = vadd.f32 %v486, %v566
    %v574 = vxor.u32 %v570, 2147483648
    %v575 = vxor.u32 %v571, 2147483648
    %v576 = vxor.u32 %v572, 2147483648
    %v577 = vmul.f32 %v574, 1.442695
    %v578 = vpow.pop %v577
    %v579 = vmul.f32 %v575, 1.442695
    %v580 = vpow.pop %v579
    %v581 = vmul.f32 %v576, 1.442695
    %v582 = vpow.pop %v581
    %v583 = vadd.f32 %v578, 1.0
    %v584 = vadd.f32 %v580, 1.0
    %v585 = vadd.f32 %v582, 1.0
    %v586 = vrcp.pop %v583
    %v587 = vmul.f32 1.0, %v586
    %v588 = vrcp.pop %v584
    %v589 = vmul.f32 1.0, %v588
    %v590 = vrcp.pop %v585
    %v591 = vmul.f32 1.0, %v590
    %v592 = vtanh.pop %v573
    %v593 = vmul.f32 %v589, %v479
    %v594 = vmul.f32 %v587, %v592
    %v595 = vadd.f32 %v593, %v594
    %v596 = vtanh.pop %v595
    %v597 = vmul.f32 %v591, %v596
    %s598 = scalar_lea.vmem [#allocation2], 96
    %v599 = vld [vmem:[%s598] sm:$0xff]
    %v600 = vld [vmem:[%s598 + $0x8] sm:$0xff]
    %v601 = vld [vmem:[%s598 + $0x10] sm:$0xff]
    %v602 = vld [vmem:[%s598 + $0x18] sm:$0xff]
    %v603 = vpack.c.bf16 %v597, %v597
    %604 = vmatprep.subr.bf16.mxu0 %v221
    %605 = vmatpush1.bf16.msra.mxu0 %v220
    %606 = vmatprep.subr.bf16.mxu0 %v217
    %607 = vmatpush1.bf16.msra.mxu0 %v216
    %608 = vmatprep.subr.bf16.mxu0 %v213
    %609 = vmatpush1.bf16.msra.mxu0 %v212
    %610 = vmatprep.subr.bf16.mxu0 %v209
    %611 = vmatpush1.bf16.msra.mxu0 %v208
    %612 = vmatprep.subr.bf16.mxu0 %v205
    %613 = vmatpush1.bf16.msra.mxu0 %v204
    %614 = vmatprep.subr.bf16.mxu0 %v201
    %615 = vmatpush1.bf16.msra.mxu0 %v200
    %616 = vmatprep.subr.bf16.mxu0 %v197
    %617 = vmatpush1.bf16.msra.mxu0 %v196
    %618 = vmatprep.subr.bf16.mxu0 %v193
    %619 = vmatpush1.bf16.msra.mxu0 %v192
    %620 = vmatprep.subr.bf16.mxu0 0
    %621 = vmatpush2.bf16.msra.mxu0 0
    %622 = vmatprep.subr.bf16.mxu0 0
    %623 = vmatpush2.bf16.msra.mxu0 0
    %624 = vmatprep.subr.bf16.mxu0 0
    %625 = vmatpush2.bf16.msra.mxu0 0
    %626 = vmatprep.subr.bf16.mxu0 0
    %627 = vmatpush2.bf16.msra.mxu0 0
    %628 = vmatprep.subr.bf16.mxu0 0
    %629 = vmatpush2.bf16.msra.mxu0 0
    %630 = vmatprep.subr.bf16.mxu0 0
    %631 = vmatpush2.bf16.msra.mxu0 0
    %632 = vmatprep.subr.bf16.mxu0 0
    %633 = vmatpush2.bf16.msra.mxu0 0
    %634 = vmatprep.subr.bf16.mxu0 0
    %635 = vmatpush2.bf16.msra.mxu0 0
    %636 = vmatprep.mubr.bf16.mxu0 0
    %637 = vmatmul.mubr.bf16.gmra.mxu0 %v603
    %v638 = vpop.f32.mrf.mxu0
    %v639 = vadd.f32 0.0, %v638
    %v640 = vpop.f32.mrf.mxu0
    %v641 = vadd.f32 0.0, %v640
    %v642 = vpop.f32.mrf.mxu0
    %v643 = vpop.f32.mrf.mxu0
    %644 = vdwg.mxu0
    %645 = vmatprep.subr.bf16.mxu0 %v223
    %646 = vmatpush1.bf16.msra.mxu0 %v222
    %647 = vmatprep.subr.bf16.mxu0 %v219
    %648 = vmatpush1.bf16.msra.mxu0 %v218
    %649 = vmatprep.subr.bf16.mxu0 %v215
    %650 = vmatpush1.bf16.msra.mxu0 %v214
    %651 = vmatprep.subr.bf16.mxu0 %v211
    %652 = vmatpush1.bf16.msra.mxu0 %v210
    %653 = vmatprep.subr.bf16.mxu0 %v207
    %654 = vmatpush1.bf16.msra.mxu0 %v206
    %655 = vmatprep.subr.bf16.mxu0 %v203
    %656 = vmatpush1.bf16.msra.mxu0 %v202
    %657 = vmatprep.subr.bf16.mxu0 %v199
    %658 = vmatpush1.bf16.msra.mxu0 %v198
    %659 = vmatprep.subr.bf16.mxu0 %v195
    %660 = vmatpush1.bf16.msra.mxu0 %v194
    %661 = vmatprep.subr.bf16.mxu0 0
    %662 = vmatpush2.bf16.msra.mxu0 0
    %663 = vmatprep.subr.bf16.mxu0 0
    %664 = vmatpush2.bf16.msra.mxu0 0
    %665 = vmatprep.subr.bf16.mxu0 0
    %666 = vmatpush2.bf16.msra.mxu0 0
    %667 = vmatprep.subr.bf16.mxu0 0
    %668 = vmatpush2.bf16.msra.mxu0 0
    %669 = vmatprep.subr.bf16.mxu0 0
    %670 = vmatpush2.bf16.msra.mxu0 0
    %671 = vmatprep.subr.bf16.mxu0 0
    %672 = vmatpush2.bf16.msra.mxu0 0
    %673 = vmatprep.subr.bf16.mxu0 0
    %674 = vmatpush2.bf16.msra.mxu0 0
    %675 = vmatprep.subr.bf16.mxu0 0
    %676 = vmatpush2.bf16.msra.mxu0 0
    %677 = vmatprep.mubr.bf16.mxu0 0
    %678 = vmatmul.mubr.bf16.gmra.mxu0 %v603
    %v679 = vpop.f32.mrf.mxu0
    %v680 = vadd.f32 0.0, %v679
    %v681 = vpop.f32.mrf.mxu0
    %v682 = vadd.f32 0.0, %v681
    %v683 = vpop.f32.mrf.mxu0
    %v684 = vpop.f32.mrf.mxu0
    %685 = vdwg.mxu0
    %v686 = vadd.f32 %v599, %v639
    %v687 = vadd.f32 %v600, %v641
    %v688 = vadd.f32 %v601, %v680
    %v689 = vadd.f32 %v602, %v682
    %v690 = vxor.u32 %v686, 2147483648
    %v691 = vxor.u32 %v687, 2147483648
    %v692 = vxor.u32 %v688, 2147483648
    %v693 = vmul.f32 %v690, 1.442695
    %v694 = vpow.pop %v693
    %v695 = vmul.f32 %v691, 1.442695
    %v696 = vpow.pop %v695
    %v697 = vmul.f32 %v692, 1.442695
    %v698 = vpow.pop %v697
    %v699 = vadd.f32 %v694, 1.0
    %v700 = vadd.f32 %v696, 1.0
    %v701 = vadd.f32 %v698, 1.0
    %v702 = vrcp.pop %v699
    %v703 = vmul.f32 1.0, %v702
    %v704 = vrcp.pop %v700
    %v705 = vmul.f32 1.0, %v704
    %v706 = vrcp.pop %v701
    %v707 = vmul.f32 1.0, %v706
    %v708 = vtanh.pop %v689
    %v709 = vmul.f32 %v705, %v595
    %v710 = vmul.f32 %v703, %v708
    %v711 = vadd.f32 %v709, %v710
    %v712 = vtanh.pop %v711
    %v713 = vmul.f32 %v707, %v712
    %s714 = scalar_lea.vmem [#allocation2], 128
    %v715 = vld [vmem:[%s714] sm:$0xff]
    %v716 = vld [vmem:[%s714 + $0x8] sm:$0xff]
    %v717 = vld [vmem:[%s714 + $0x10] sm:$0xff]
    %v718 = vld [vmem:[%s714 + $0x18] sm:$0xff]
    %v719 = vpack.c.bf16 %v713, %v713
    %720 = vmatprep.subr.bf16.mxu0 %v221
    %721 = vmatpush1.bf16.msra.mxu0 %v220
    %722 = vmatprep.subr.bf16.mxu0 %v217
    %723 = vmatpush1.bf16.msra.mxu0 %v216
    %724 = vmatprep.subr.bf16.mxu0 %v213
    %725 = vmatpush1.bf16.msra.mxu0 %v212
    %726 = vmatprep.subr.bf16.mxu0 %v209
    %727 = vmatpush1.bf16.msra.mxu0 %v208
    %728 = vmatprep.subr.bf16.mxu0 %v205
    %729 = vmatpush1.bf16.msra.mxu0 %v204
    %730 = vmatprep.subr.bf16.mxu0 %v201
    %731 = vmatpush1.bf16.msra.mxu0 %v200
    %732 = vmatprep.subr.bf16.mxu0 %v197
    %733 = vmatpush1.bf16.msra.mxu0 %v196
    %734 = vmatprep.subr.bf16.mxu0 %v193
    %735 = vmatpush1.bf16.msra.mxu0 %v192
    %736 = vmatprep.subr.bf16.mxu0 0
    %737 = vmatpush2.bf16.msra.mxu0 0
    %738 = vmatprep.subr.bf16.mxu0 0
    %739 = vmatpush2.bf16.msra.mxu0 0
    %740 = vmatprep.subr.bf16.mxu0 0
    %741 = vmatpush2.bf16.msra.mxu0 0
    %742 = vmatprep.subr.bf16.mxu0 0
    %743 = vmatpush2.bf16.msra.mxu0 0
    %744 = vmatprep.subr.bf16.mxu0 0
    %745 = vmatpush2.bf16.msra.mxu0 0
    %746 = vmatprep.subr.bf16.mxu0 0
    %747 = vmatpush2.bf16.msra.mxu0 0
    %748 = vmatprep.subr.bf16.mxu0 0
    %749 = vmatpush2.bf16.msra.mxu0 0
    %750 = vmatprep.subr.bf16.mxu0 0
    %751 = vmatpush2.bf16.msra.mxu0 0
    %752 = vmatprep.mubr.bf16.mxu0 0
    %753 = vmatmul.mubr.bf16.gmra.mxu0 %v719
    %v754 = vpop.f32.mrf.mxu0
    %v755 = vadd.f32 0.0, %v754
    %v756 = vpop.f32.mrf.mxu0
    %v757 = vadd.f32 0.0, %v756
    %v758 = vpop.f32.mrf.mxu0
    %v759 = vpop.f32.mrf.mxu0
    %760 = vdwg.mxu0
    %761 = vmatprep.subr.bf16.mxu0 %v223
    %762 = vmatpush1.bf16.msra.mxu0 %v222
    %763 = vmatprep.subr.bf16.mxu0 %v219
    %764 = vmatpush1.bf16.msra.mxu0 %v218
    %765 = vmatprep.subr.bf16.mxu0 %v215
    %766 = vmatpush1.bf16.msra.mxu0 %v214
    %767 = vmatprep.subr.bf16.mxu0 %v211
    %768 = vmatpush1.bf16.msra.mxu0 %v210
    %769 = vmatprep.subr.bf16.mxu0 %v207
    %770 = vmatpush1.bf16.msra.mxu0 %v206
    %771 = vmatprep.subr.bf16.mxu0 %v203
    %772 = vmatpush1.bf16.msra.mxu0 %v202
    %773 = vmatprep.subr.bf16.mxu0 %v199
    %774 = vmatpush1.bf16.msra.mxu0 %v198
    %775 = vmatprep.subr.bf16.mxu0 %v195
    %776 = vmatpush1.bf16.msra.mxu0 %v194
    %777 = vmatprep.subr.bf16.mxu0 0
    %778 = vmatpush2.bf16.msra.mxu0 0
    %779 = vmatprep.subr.bf16.mxu0 0
    %780 = vmatpush2.bf16.msra.mxu0 0
    %781 = vmatprep.subr.bf16.mxu0 0
    %782 = vmatpush2.bf16.msra.mxu0 0
    %783 = vmatprep.subr.bf16.mxu0 0
    %784 = vmatpush2.bf16.msra.mxu0 0
    %785 = vmatprep.subr.bf16.mxu0 0
    %786 = vmatpush2.bf16.msra.mxu0 0
    %787 = vmatprep.subr.bf16.mxu0 0
    %788 = vmatpush2.bf16.msra.mxu0 0
    %789 = vmatprep.subr.bf16.mxu0 0
    %790 = vmatpush2.bf16.msra.mxu0 0
    %791 = vmatprep.subr.bf16.mxu0 0
    %792 = vmatpush2.bf16.msra.mxu0 0
    %793 = vmatprep.mubr.bf16.mxu0 0
    %794 = vmatmul.mubr.bf16.gmra.mxu0 %v719
    %v795 = vpop.f32.mrf.mxu0
    %v796 = vadd.f32 0.0, %v795
    %v797 = vpop.f32.mrf.mxu0
    %v798 = vadd.f32 0.0, %v797
    %v799 = vpop.f32.mrf.mxu0
    %v800 = vpop.f32.mrf.mxu0
    %801 = vdwg.mxu0
    %v802 = vadd.f32 %v715, %v755
    %v803 = vadd.f32 %v716, %v757
    %v804 = vadd.f32 %v717, %v796
    %v805 = vadd.f32 %v718, %v798
    %v806 = vxor.u32 %v802, 2147483648
    %v807 = vxor.u32 %v803, 2147483648
    %v808 = vxor.u32 %v804, 2147483648
    %v809 = vmul.f32 %v806, 1.442695
    %v810 = vpow.pop %v809
    %v811 = vmul.f32 %v807, 1.442695
    %v812 = vpow.pop %v811
    %v813 = vmul.f32 %v808, 1.442695
    %v814 = vpow.pop %v813
    %v815 = vadd.f32 %v810, 1.0
    %v816 = vadd.f32 %v812, 1.0
    %v817 = vadd.f32 %v814, 1.0
    %v818 = vrcp.pop %v815
    %v819 = vmul.f32 1.0, %v818
    %v820 = vrcp.pop %v816
    %v821 = vmul.f32 1.0, %v820
    %v822 = vrcp.pop %v817
    %v823 = vmul.f32 1.0, %v822
    %v824 = vtanh.pop %v805
    %v825 = vmul.f32 %v821, %v711
    %v826 = vmul.f32 %v819, %v824
    %v827 = vadd.f32 %v825, %v826
    %v828 = vtanh.pop %v827
    %v829 = vmul.f32 %v823, %v828
    %s830 = scalar_lea.vmem [#allocation2], 160
    %v831 = vld [vmem:[%s830] sm:$0xff]
    %v832 = vld [vmem:[%s830 + $0x8] sm:$0xff]
    %v833 = vld [vmem:[%s830 + $0x10] sm:$0xff]
    %v834 = vld [vmem:[%s830 + $0x18] sm:$0xff]
    %v835 = vpack.c.bf16 %v829, %v829
    %836 = vmatprep.subr.bf16.mxu0 %v221
    %837 = vmatpush1.bf16.msra.mxu0 %v220
    %838 = vmatprep.subr.bf16.mxu0 %v217
    %839 = vmatpush1.bf16.msra.mxu0 %v216
    %840 = vmatprep.subr.bf16.mxu0 %v213
    %841 = vmatpush1.bf16.msra.mxu0 %v212
    %842 = vmatprep.subr.bf16.mxu0 %v209
    %843 = vmatpush1.bf16.msra.mxu0 %v208
    %844 = vmatprep.subr.bf16.mxu0 %v205
    %845 = vmatpush1.bf16.msra.mxu0 %v204
    %846 = vmatprep.subr.bf16.mxu0 %v201
    %847 = vmatpush1.bf16.msra.mxu0 %v200
    %848 = vmatprep.subr.bf16.mxu0 %v197
    %849 = vmatpush1.bf16.msra.mxu0 %v196
    %850 = vmatprep.subr.bf16.mxu0 %v193
    %851 = vmatpush1.bf16.msra.mxu0 %v192
    %852 = vmatprep.subr.bf16.mxu0 0
    %853 = vmatpush2.bf16.msra.mxu0 0
    %854 = vmatprep.subr.bf16.mxu0 0
    %855 = vmatpush2.bf16.msra.mxu0 0
    %856 = vmatprep.subr.bf16.mxu0 0
    %857 = vmatpush2.bf16.msra.mxu0 0
    %858 = vmatprep.subr.bf16.mxu0 0
    %859 = vmatpush2.bf16.msra.mxu0 0
    %860 = vmatprep.subr.bf16.mxu0 0
    %861 = vmatpush2.bf16.msra.mxu0 0
    %862 = vmatprep.subr.bf16.mxu0 0
    %863 = vmatpush2.bf16.msra.mxu0 0
    %864 = vmatprep.subr.bf16.mxu0 0
    %865 = vmatpush2.bf16.msra.mxu0 0
    %866 = vmatprep.subr.bf16.mxu0 0
    %867 = vmatpush2.bf16.msra.mxu0 0
    %868 = vmatprep.mubr.bf16.mxu0 0
    %869 = vmatmul.mubr.bf16.gmra.mxu0 %v835
    %v870 = vpop.f32.mrf.mxu0
    %v871 = vadd.f32 0.0, %v870
    %v872 = vpop.f32.mrf.mxu0
    %v873 = vadd.f32 0.0, %v872
    %v874 = vpop.f32.mrf.mxu0
    %v875 = vpop.f32.mrf.mxu0
    %876 = vdwg.mxu0
    %877 = vmatprep.subr.bf16.mxu0 %v223
    %878 = vmatpush1.bf16.msra.mxu0 %v222
    %879 = vmatprep.subr.bf16.mxu0 %v219
    %880 = vmatpush1.bf16.msra.mxu0 %v218
    %881 = vmatprep.subr.bf16.mxu0 %v215
    %882 = vmatpush1.bf16.msra.mxu0 %v214
    %883 = vmatprep.subr.bf16.mxu0 %v211
    %884 = vmatpush1.bf16.msra.mxu0 %v210
    %885 = vmatprep.subr.bf16.mxu0 %v207
    %886 = vmatpush1.bf16.msra.mxu0 %v206
    %887 = vmatprep.subr.bf16.mxu0 %v203
    %888 = vmatpush1.bf16.msra.mxu0 %v202
    %889 = vmatprep.subr.bf16.mxu0 %v199
    %890 = vmatpush1.bf16.msra.mxu0 %v198
    %891 = vmatprep.subr.bf16.mxu0 %v195
    %892 = vmatpush1.bf16.msra.mxu0 %v194
    %893 = vmatprep.subr.bf16.mxu0 0
    %894 = vmatpush2.bf16.msra.mxu0 0
    %895 = vmatprep.subr.bf16.mxu0 0
    %896 = vmatpush2.bf16.msra.mxu0 0
    %897 = vmatprep.subr.bf16.mxu0 0
    %898 = vmatpush2.bf16.msra.mxu0 0
    %899 = vmatprep.subr.bf16.mxu0 0
    %900 = vmatpush2.bf16.msra.mxu0 0
    %901 = vmatprep.subr.bf16.mxu0 0
    %902 = vmatpush2.bf16.msra.mxu0 0
    %903 = vmatprep.subr.bf16.mxu0 0
    %904 = vmatpush2.bf16.msra.mxu0 0
    %905 = vmatprep.subr.bf16.mxu0 0
    %906 = vmatpush2.bf16.msra.mxu0 0
    %907 = vmatprep.subr.bf16.mxu0 0
    %908 = vmatpush2.bf16.msra.mxu0 0
    %909 = vmatprep.mubr.bf16.mxu0 0
    %910 = vmatmul.mubr.bf16.gmra.mxu0 %v835
    %v911 = vpop.f32.mrf.mxu0
    %v912 = vadd.f32 0.0, %v911
    %v913 = vpop.f32.mrf.mxu0
    %v914 = vadd.f32 0.0, %v913
    %v915 = vpop.f32.mrf.mxu0
    %v916 = vpop.f32.mrf.mxu0
    %917 = vdwg.mxu0
    %v918 = vadd.f32 %v831, %v871
    %v919 = vadd.f32 %v832, %v873
    %v920 = vadd.f32 %v833, %v912
    %v921 = vadd.f32 %v834, %v914
    %v922 = vxor.u32 %v918, 2147483648
    %v923 = vxor.u32 %v919, 2147483648
    %v924 = vxor.u32 %v920, 2147483648
    %v925 = vmul.f32 %v922, 1.442695
    %v926 = vpow.pop %v925
    %v927 = vmul.f32 %v923, 1.442695
    %v928 = vpow.pop %v927
    %v929 = vmul.f32 %v924, 1.442695
    %v930 = vpow.pop %v929
    %v931 = vadd.f32 %v926, 1.0
    %v932 = vadd.f32 %v928, 1.0
    %v933 = vadd.f32 %v930, 1.0
    %v934 = vrcp.pop %v931
    %v935 = vmul.f32 1.0, %v934
    %v936 = vrcp.pop %v932
    %v937 = vmul.f32 1.0, %v936
    %v938 = vrcp.pop %v933
    %v939 = vmul.f32 1.0, %v938
    %v940 = vtanh.pop %v921
    %v941 = vmul.f32 %v937, %v827
    %v942 = vmul.f32 %v935, %v940
    %v943 = vadd.f32 %v941, %v942
    %v944 = vtanh.pop %v943
    %v945 = vmul.f32 %v939, %v944
    %s946 = scalar_lea.vmem [#allocation2], 192
    %v947 = vld [vmem:[%s946] sm:$0xff]
    %v948 = vld [vmem:[%s946 + $0x8] sm:$0xff]
    %v949 = vld [vmem:[%s946 + $0x10] sm:$0xff]
    %v950 = vld [vmem:[%s946 + $0x18] sm:$0xff]
    %v951 = vpack.c.bf16 %v945, %v945
    %952 = vmatprep.subr.bf16.mxu0 %v221
    %953 = vmatpush1.bf16.msra.mxu0 %v220
    %954 = vmatprep.subr.bf16.mxu0 %v217
    %955 = vmatpush1.bf16.msra.mxu0 %v216
    %956 = vmatprep.subr.bf16.mxu0 %v213
    %957 = vmatpush1.bf16.msra.mxu0 %v212
    %958 = vmatprep.subr.bf16.mxu0 %v209
    %959 = vmatpush1.bf16.msra.mxu0 %v208
    %960 = vmatprep.subr.bf16.mxu0 %v205
    %961 = vmatpush1.bf16.msra.mxu0 %v204
    %962 = vmatprep.subr.bf16.mxu0 %v201
    %963 = vmatpush1.bf16.msra.mxu0 %v200
    %964 = vmatprep.subr.bf16.mxu0 %v197
    %965 = vmatpush1.bf16.msra.mxu0 %v196
    %966 = vmatprep.subr.bf16.mxu0 %v193
    %967 = vmatpush1.bf16.msra.mxu0 %v192
    %968 = vmatprep.subr.bf16.mxu0 0
    %969 = vmatpush2.bf16.msra.mxu0 0
    %970 = vmatprep.subr.bf16.mxu0 0
    %971 = vmatpush2.bf16.msra.mxu0 0
    %972 = vmatprep.subr.bf16.mxu0 0
    %973 = vmatpush2.bf16.msra.mxu0 0
    %974 = vmatprep.subr.bf16.mxu0 0
    %975 = vmatpush2.bf16.msra.mxu0 0
    %976 = vmatprep.subr.bf16.mxu0 0
    %977 = vmatpush2.bf16.msra.mxu0 0
    %978 = vmatprep.subr.bf16.mxu0 0
    %979 = vmatpush2.bf16.msra.mxu0 0
    %980 = vmatprep.subr.bf16.mxu0 0
    %981 = vmatpush2.bf16.msra.mxu0 0
    %982 = vmatprep.subr.bf16.mxu0 0
    %983 = vmatpush2.bf16.msra.mxu0 0
    %984 = vmatprep.mubr.bf16.mxu0 0
    %985 = vmatmul.mubr.bf16.gmra.mxu0 %v951
    %v986 = vpop.f32.mrf.mxu0
    %v987 = vadd.f32 0.0, %v986
    %v988 = vpop.f32.mrf.mxu0
    %v989 = vadd.f32 0.0, %v988
    %v990 = vpop.f32.mrf.mxu0
    %v991 = vpop.f32.mrf.mxu0
    %992 = vdwg.mxu0
    %993 = vmatprep.subr.bf16.mxu0 %v223
    %994 = vmatpush1.bf16.msra.mxu0 %v222
    %995 = vmatprep.subr.bf16.mxu0 %v219
    %996 = vmatpush1.bf16.msra.mxu0 %v218
    %997 = vmatprep.subr.bf16.mxu0 %v215
    %998 = vmatpush1.bf16.msra.mxu0 %v214
    %999 = vmatprep.subr.bf16.mxu0 %v211
    %1000 = vmatpush1.bf16.msra.mxu0 %v210
    %1001 = vmatprep.subr.bf16.mxu0 %v207
    %1002 = vmatpush1.bf16.msra.mxu0 %v206
    %1003 = vmatprep.subr.bf16.mxu0 %v203
    %1004 = vmatpush1.bf16.msra.mxu0 %v202
    %1005 = vmatprep.subr.bf16.mxu0 %v199
    %1006 = vmatpush1.bf16.msra.mxu0 %v198
    %1007 = vmatprep.subr.bf16.mxu0 %v195
    %1008 = vmatpush1.bf16.msra.mxu0 %v194
    %1009 = vmatprep.subr.bf16.mxu0 0
    %1010 = vmatpush2.bf16.msra.mxu0 0
    %1011 = vmatprep.subr.bf16.mxu0 0
    %1012 = vmatpush2.bf16.msra.mxu0 0
    %1013 = vmatprep.subr.bf16.mxu0 0
    %1014 = vmatpush2.bf16.msra.mxu0 0
    %1015 = vmatprep.subr.bf16.mxu0 0
    %1016 = vmatpush2.bf16.msra.mxu0 0
    %1017 = vmatprep.subr.bf16.mxu0 0
    %1018 = vmatpush2.bf16.msra.mxu0 0
    %1019 = vmatprep.subr.bf16.mxu0 0
    %1020 = vmatpush2.bf16.msra.mxu0 0
    %1021 = vmatprep.subr.bf16.mxu0 0
    %1022 = vmatpush2.bf16.msra.mxu0 0
    %1023 = vmatprep.subr.bf16.mxu0 0
    %1024 = vmatpush2.bf16.msra.mxu0 0
    %1025 = vmatprep.mubr.bf16.mxu0 0
    %1026 = vmatmul.mubr.bf16.gmra.mxu0 %v951
    %v1027 = vpop.f32.mrf.mxu0
    %v1028 = vadd.f32 0.0, %v1027
    %v1029 = vpop.f32.mrf.mxu0
    %v1030 = vadd.f32 0.0, %v1029
    %v1031 = vpop.f32.mrf.mxu0
    %v1032 = vpop.f32.mrf.mxu0
    %1033 = vdwg.mxu0
    %v1034 = vadd.f32 %v947, %v987
    %v1035 = vadd.f32 %v948, %v989
    %v1036 = vadd.f32 %v949, %v1028
    %v1037 = vadd.f32 %v950, %v1030
    %v1038 = vxor.u32 %v1034, 2147483648
    %v1039 = vxor.u32 %v1035, 2147483648
    %v1040 = vxor.u32 %v1036, 2147483648
    %v1041 = vmul.f32 %v1038, 1.442695
    %v1042 = vpow.pop %v1041
    %v1043 = vmul.f32 %v1039, 1.442695
    %v1044 = vpow.pop %v1043
    %v1045 = vmul.f32 %v1040, 1.442695
    %v1046 = vpow.pop %v1045
    %v1047 = vadd.f32 %v1042, 1.0
    %v1048 = vadd.f32 %v1044, 1.0
    %v1049 = vadd.f32 %v1046, 1.0
    %v1050 = vrcp.pop %v1047
    %v1051 = vmul.f32 1.0, %v1050
    %v1052 = vrcp.pop %v1048
    %v1053 = vmul.f32 1.0, %v1052
    %v1054 = vrcp.pop %v1049
    %v1055 = vmul.f32 1.0, %v1054
    %v1056 = vtanh.pop %v1037
    %v1057 = vmul.f32 %v1053, %v943
    %v1058 = vmul.f32 %v1051, %v1056
    %v1059 = vadd.f32 %v1057, %v1058
    %v1060 = vtanh.pop %v1059
    %v1061 = vmul.f32 %v1055, %v1060
    %s1062 = scalar_lea.vmem [#allocation2], 224
    %v1063 = vld [vmem:[%s1062] sm:$0xff]
    %v1064 = vld [vmem:[%s1062 + $0x8] sm:$0xff]
    %v1065 = vld [vmem:[%s1062 + $0x10] sm:$0xff]
    %v1066 = vld [vmem:[%s1062 + $0x18] sm:$0xff]
    %v1067 = vpack.c.bf16 %v1061, %v1061
    %1068 = vmatprep.subr.bf16.mxu0 %v221
    %1069 = vmatpush1.bf16.msra.mxu0 %v220
    %1070 = vmatprep.subr.bf16.mxu0 %v217
    %1071 = vmatpush1.bf16.msra.mxu0 %v216
    %1072 = vmatprep.subr.bf16.mxu0 %v213
    %1073 = vmatpush1.bf16.msra.mxu0 %v212
    %1074 = vmatprep.subr.bf16.mxu0 %v209
    %1075 = vmatpush1.bf16.msra.mxu0 %v208
    %1076 = vmatprep.subr.bf16.mxu0 %v205
    %1077 = vmatpush1.bf16.msra.mxu0 %v204
    %1078 = vmatprep.subr.bf16.mxu0 %v201
    %1079 = vmatpush1.bf16.msra.mxu0 %v200
    %1080 = vmatprep.subr.bf16.mxu0 %v197
    %1081 = vmatpush1.bf16.msra.mxu0 %v196
    %1082 = vmatprep.subr.bf16.mxu0 %v193
    %1083 = vmatpush1.bf16.msra.mxu0 %v192
    %1084 = vmatprep.subr.bf16.mxu0 0
    %1085 = vmatpush2.bf16.msra.mxu0 0
    %1086 = vmatprep.subr.bf16.mxu0 0
    %1087 = vmatpush2.bf16.msra.mxu0 0
    %1088 = vmatprep.subr.bf16.mxu0 0
    %1089 = vmatpush2.bf16.msra.mxu0 0
    %1090 = vmatprep.subr.bf16.mxu0 0
    %1091 = vmatpush2.bf16.msra.mxu0 0
    %1092 = vmatprep.subr.bf16.mxu0 0
    %1093 = vmatpush2.bf16.msra.mxu0 0
    %1094 = vmatprep.subr.bf16.mxu0 0
    %1095 = vmatpush2.bf16.msra.mxu0 0
    %1096 = vmatprep.subr.bf16.mxu0 0
    %1097 = vmatpush2.bf16.msra.mxu0 0
    %1098 = vmatprep.subr.bf16.mxu0 0
    %1099 = vmatpush2.bf16.msra.mxu0 0
    %1100 = vmatprep.mubr.bf16.mxu0 0
    %1101 = vmatmul.mubr.bf16.gmra.mxu0 %v1067
    %v1102 = vpop.f32.mrf.mxu0
    %v1103 = vadd.f32 0.0, %v1102
    %v1104 = vpop.f32.mrf.mxu0
    %v1105 = vadd.f32 0.0, %v1104
    %v1106 = vpop.f32.mrf.mxu0
    %v1107 = vpop.f32.mrf.mxu0
    %1108 = vdwg.mxu0
    %1109 = vmatprep.subr.bf16.mxu0 %v223
    %1110 = vmatpush1.bf16.msra.mxu0 %v222
    %1111 = vmatprep.subr.bf16.mxu0 %v219
    %1112 = vmatpush1.bf16.msra.mxu0 %v218
    %1113 = vmatprep.subr.bf16.mxu0 %v215
    %1114 = vmatpush1.bf16.msra.mxu0 %v214
    %1115 = vmatprep.subr.bf16.mxu0 %v211
    %1116 = vmatpush1.bf16.msra.mxu0 %v210
    %1117 = vmatprep.subr.bf16.mxu0 %v207
    %1118 = vmatpush1.bf16.msra.mxu0 %v206
    %1119 = vmatprep.subr.bf16.mxu0 %v203
    %1120 = vmatpush1.bf16.msra.mxu0 %v202
    %1121 = vmatprep.subr.bf16.mxu0 %v199
    %1122 = vmatpush1.bf16.msra.mxu0 %v198
    %1123 = vmatprep.subr.bf16.mxu0 %v195
    %1124 = vmatpush1.bf16.msra.mxu0 %v194
    %1125 = vmatprep.subr.bf16.mxu0 0
    %1126 = vmatpush2.bf16.msra.mxu0 0
    %1127 = vmatprep.subr.bf16.mxu0 0
    %1128 = vmatpush2.bf16.msra.mxu0 0
    %1129 = vmatprep.subr.bf16.mxu0 0
    %1130 = vmatpush2.bf16.msra.mxu0 0
    %1131 = vmatprep.subr.bf16.mxu0 0
    %1132 = vmatpush2.bf16.msra.mxu0 0
    %1133 = vmatprep.subr.bf16.mxu0 0
    %1134 = vmatpush2.bf16.msra.mxu0 0
    %1135 = vmatprep.subr.bf16.mxu0 0
    %1136 = vmatpush2.bf16.msra.mxu0 0
    %1137 = vmatprep.subr.bf16.mxu0 0
    %1138 = vmatpush2.bf16.msra.mxu0 0
    %1139 = vmatprep.subr.bf16.mxu0 0
    %1140 = vmatpush2.bf16.msra.mxu0 0
    %1141 = vmatprep.mubr.bf16.mxu0 0
    %1142 = vmatmul.mubr.bf16.gmra.mxu0 %v1067
    %v1143 = vpop.f32.mrf.mxu0
    %v1144 = vadd.f32 0.0, %v1143
    %v1145 = vpop.f32.mrf.mxu0
    %v1146 = vadd.f32 0.0, %v1145
    %v1147 = vpop.f32.mrf.mxu0
    %v1148 = vpop.f32.mrf.mxu0
    %1149 = vdwg.mxu0
    %v1150 = vadd.f32 %v1063, %v1103
    %v1151 = vadd.f32 %v1064, %v1105
    %v1152 = vadd.f32 %v1065, %v1144
    %v1153 = vadd.f32 %v1066, %v1146
    %v1154 = vxor.u32 %v1150, 2147483648
    %v1155 = vxor.u32 %v1151, 2147483648
    %v1156 = vxor.u32 %v1152, 2147483648
    %v1157 = vmul.f32 %v1154, 1.442695
    %v1158 = vpow.pop %v1157
    %v1159 = vmul.f32 %v1155, 1.442695
    %v1160 = vpow.pop %v1159
    %v1161 = vmul.f32 %v1156, 1.442695
    %v1162 = vpow.pop %v1161
    %v1163 = vadd.f32 %v1158, 1.0
    %v1164 = vadd.f32 %v1160, 1.0
    %v1165 = vadd.f32 %v1162, 1.0
    %v1166 = vrcp.pop %v1163
    %v1167 = vmul.f32 1.0, %v1166
    %v1168 = vrcp.pop %v1164
    %v1169 = vmul.f32 1.0, %v1168
    %v1170 = vrcp.pop %v1165
    %v1171 = vmul.f32 1.0, %v1170
    %v1172 = vtanh.pop %v1153
    %v1173 = vmul.f32 %v1169, %v1059
    %v1174 = vmul.f32 %v1167, %v1172
    %v1175 = vadd.f32 %v1173, %v1174
    %v1176 = vtanh.pop %v1175
    %v1177 = vmul.f32 %v1171, %v1176
    %s1178 = scalar_lea.vmem [#allocation2], 256
    %v1179 = vld [vmem:[%s1178] sm:$0xff]
    %v1180 = vld [vmem:[%s1178 + $0x8] sm:$0xff]
    %v1181 = vld [vmem:[%s1178 + $0x10] sm:$0xff]
    %v1182 = vld [vmem:[%s1178 + $0x18] sm:$0xff]
    %v1183 = vpack.c.bf16 %v1177, %v1177
    %1184 = vmatprep.subr.bf16.mxu0 %v221
    %1185 = vmatpush1.bf16.msra.mxu0 %v220
    %1186 = vmatprep.subr.bf16.mxu0 %v217
    %1187 = vmatpush1.bf16.msra.mxu0 %v216
    %1188 = vmatprep.subr.bf16.mxu0 %v213
    %1189 = vmatpush1.bf16.msra.mxu0 %v212
    %1190 = vmatprep.subr.bf16.mxu0 %v209
    %1191 = vmatpush1.bf16.msra.mxu0 %v208
    %1192 = vmatprep.subr.bf16.mxu0 %v205
    %1193 = vmatpush1.bf16.msra.mxu0 %v204
    %1194 = vmatprep.subr.bf16.mxu0 %v201
    %1195 = vmatpush1.bf16.msra.mxu0 %v200
    %1196 = vmatprep.subr.bf16.mxu0 %v197
    %1197 = vmatpush1.bf16.msra.mxu0 %v196
    %1198 = vmatprep.subr.bf16.mxu0 %v193
    %1199 = vmatpush1.bf16.msra.mxu0 %v192
    %1200 = vmatprep.subr.bf16.mxu0 0
    %1201 = vmatpush2.bf16.msra.mxu0 0
    %1202 = vmatprep.subr.bf16.mxu0 0
    %1203 = vmatpush2.bf16.msra.mxu0 0
    %1204 = vmatprep.subr.bf16.mxu0 0
    %1205 = vmatpush2.bf16.msra.mxu0 0
    %1206 = vmatprep.subr.bf16.mxu0 0
    %1207 = vmatpush2.bf16.msra.mxu0 0
    %1208 = vmatprep.subr.bf16.mxu0 0
    %1209 = vmatpush2.bf16.msra.mxu0 0
    %1210 = vmatprep.subr.bf16.mxu0 0
    %1211 = vmatpush2.bf16.msra.mxu0 0
    %1212 = vmatprep.subr.bf16.mxu0 0
    %1213 = vmatpush2.bf16.msra.mxu0 0
    %1214 = vmatprep.subr.bf16.mxu0 0
    %1215 = vmatpush2.bf16.msra.mxu0 0
    %1216 = vmatprep.mubr.bf16.mxu0 0
    %1217 = vmatmul.mubr.bf16.gmra.mxu0 %v1183
    %v1218 = vpop.f32.mrf.mxu0
    %v1219 = vadd.f32 0.0, %v1218
    %v1220 = vpop.f32.mrf.mxu0
    %v1221 = vadd.f32 0.0, %v1220
    %v1222 = vpop.f32.mrf.mxu0
    %v1223 = vpop.f32.mrf.mxu0
    %1224 = vdwg.mxu0
    %1225 = vmatprep.subr.bf16.mxu0 %v223
    %1226 = vmatpush1.bf16.msra.mxu0 %v222
    %1227 = vmatprep.subr.bf16.mxu0 %v219
    %1228 = vmatpush1.bf16.msra.mxu0 %v218
    %1229 = vmatprep.subr.bf16.mxu0 %v215
    %1230 = vmatpush1.bf16.msra.mxu0 %v214
    %1231 = vmatprep.subr.bf16.mxu0 %v211
    %1232 = vmatpush1.bf16.msra.mxu0 %v210
    %1233 = vmatprep.subr.bf16.mxu0 %v207
    %1234 = vmatpush1.bf16.msra.mxu0 %v206
    %1235 = vmatprep.subr.bf16.mxu0 %v203
    %1236 = vmatpush1.bf16.msra.mxu0 %v202
    %1237 = vmatprep.subr.bf16.mxu0 %v199
    %1238 = vmatpush1.bf16.msra.mxu0 %v198
    %1239 = vmatprep.subr.bf16.mxu0 %v195
    %1240 = vmatpush1.bf16.msra.mxu0 %v194
    %1241 = vmatprep.subr.bf16.mxu0 0
    %1242 = vmatpush2.bf16.msra.mxu0 0
    %1243 = vmatprep.subr.bf16.mxu0 0
    %1244 = vmatpush2.bf16.msra.mxu0 0
    %1245 = vmatprep.subr.bf16.mxu0 0
    %1246 = vmatpush2.bf16.msra.mxu0 0
    %1247 = vmatprep.subr.bf16.mxu0 0
    %1248 = vmatpush2.bf16.msra.mxu0 0
    %1249 = vmatprep.subr.bf16.mxu0 0
    %1250 = vmatpush2.bf16.msra.mxu0 0
    %1251 = vmatprep.subr.bf16.mxu0 0
    %1252 = vmatpush2.bf16.msra.mxu0 0
    %1253 = vmatprep.subr.bf16.mxu0 0
    %1254 = vmatpush2.bf16.msra.mxu0 0
    %1255 = vmatprep.subr.bf16.mxu0 0
    %1256 = vmatpush2.bf16.msra.mxu0 0
    %1257 = vmatprep.mubr.bf16.mxu0 0
    %1258 = vmatmul.mubr.bf16.gmra.mxu0 %v1183
    %v1259 = vpop.f32.mrf.mxu0
    %v1260 = vadd.f32 0.0, %v1259
    %v1261 = vpop.f32.mrf.mxu0
    %v1262 = vadd.f32 0.0, %v1261
    %v1263 = vpop.f32.mrf.mxu0
    %v1264 = vpop.f32.mrf.mxu0
    %1265 = vdwg.mxu0
    %v1266 = vadd.f32 %v1179, %v1219
    %v1267 = vadd.f32 %v1180, %v1221
    %v1268 = vadd.f32 %v1181, %v1260
    %v1269 = vadd.f32 %v1182, %v1262
    %v1270 = vxor.u32 %v1266, 2147483648
    %v1271 = vxor.u32 %v1267, 2147483648
    %v1272 = vxor.u32 %v1268, 2147483648
    %v1273 = vmul.f32 %v1270, 1.442695
    %v1274 = vpow.pop %v1273
    %v1275 = vmul.f32 %v1271, 1.442695
    %v1276 = vpow.pop %v1275
    %v1277 = vmul.f32 %v1272, 1.442695
    %v1278 = vpow.pop %v1277
    %v1279 = vadd.f32 %v1274, 1.0
    %v1280 = vadd.f32 %v1276, 1.0
    %v1281 = vadd.f32 %v1278, 1.0
    %v1282 = vrcp.pop %v1279
    %v1283 = vmul.f32 1.0, %v1282
    %v1284 = vrcp.pop %v1280
    %v1285 = vmul.f32 1.0, %v1284
    %v1286 = vrcp.pop %v1281
    %v1287 = vmul.f32 1.0, %v1286
    %v1288 = vtanh.pop %v1269
    %v1289 = vmul.f32 %v1285, %v1175
    %v1290 = vmul.f32 %v1283, %v1288
    %v1291 = vadd.f32 %v1289, %v1290
    %v1292 = vtanh.pop %v1291
    %v1293 = vmul.f32 %v1287, %v1292
    %s1294 = scalar_lea.vmem [#allocation2], 288
    %v1295 = vld [vmem:[%s1294] sm:$0xff]
    %v1296 = vld [vmem:[%s1294 + $0x8] sm:$0xff]
    %v1297 = vld [vmem:[%s1294 + $0x10] sm:$0xff]
    %v1298 = vld [vmem:[%s1294 + $0x18] sm:$0xff]
    %v1299 = vpack.c.bf16 %v1293, %v1293
    %1300 = vmatprep.subr.bf16.mxu0 %v221
    %1301 = vmatpush1.bf16.msra.mxu0 %v220
    %1302 = vmatprep.subr.bf16.mxu0 %v217
    %1303 = vmatpush1.bf16.msra.mxu0 %v216
    %1304 = vmatprep.subr.bf16.mxu0 %v213
    %1305 = vmatpush1.bf16.msra.mxu0 %v212
    %1306 = vmatprep.subr.bf16.mxu0 %v209
    %1307 = vmatpush1.bf16.msra.mxu0 %v208
    %1308 = vmatprep.subr.bf16.mxu0 %v205
    %1309 = vmatpush1.bf16.msra.mxu0 %v204
    %1310 = vmatprep.subr.bf16.mxu0 %v201
    %1311 = vmatpush1.bf16.msra.mxu0 %v200
    %1312 = vmatprep.subr.bf16.mxu0 %v197
    %1313 = vmatpush1.bf16.msra.mxu0 %v196
    %1314 = vmatprep.subr.bf16.mxu0 %v193
    %1315 = vmatpush1.bf16.msra.mxu0 %v192
    %1316 = vmatprep.subr.bf16.mxu0 0
    %1317 = vmatpush2.bf16.msra.mxu0 0
    %1318 = vmatprep.subr.bf16.mxu0 0
    %1319 = vmatpush2.bf16.msra.mxu0 0
    %1320 = vmatprep.subr.bf16.mxu0 0
    %1321 = vmatpush2.bf16.msra.mxu0 0
    %1322 = vmatprep.subr.bf16.mxu0 0
    %1323 = vmatpush2.bf16.msra.mxu0 0
    %1324 = vmatprep.subr.bf16.mxu0 0
    %1325 = vmatpush2.bf16.msra.mxu0 0
    %1326 = vmatprep.subr.bf16.mxu0 0
    %1327 = vmatpush2.bf16.msra.mxu0 0
    %1328 = vmatprep.subr.bf16.mxu0 0
    %1329 = vmatpush2.bf16.msra.mxu0 0
    %1330 = vmatprep.subr.bf16.mxu0 0
    %1331 = vmatpush2.bf16.msra.mxu0 0
    %1332 = vmatprep.mubr.bf16.mxu0 0
    %1333 = vmatmul.mubr.bf16.gmra.mxu0 %v1299
    %v1334 = vpop.f32.mrf.mxu0
    %v1335 = vadd.f32 0.0, %v1334
    %v1336 = vpop.f32.mrf.mxu0
    %v1337 = vadd.f32 0.0, %v1336
    %v1338 = vpop.f32.mrf.mxu0
    %v1339 = vpop.f32.mrf.mxu0
    %1340 = vdwg.mxu0
    %1341 = vmatprep.subr.bf16.mxu0 %v223
    %1342 = vmatpush1.bf16.msra.mxu0 %v222
    %1343 = vmatprep.subr.bf16.mxu0 %v219
    %1344 = vmatpush1.bf16.msra.mxu0 %v218
    %1345 = vmatprep.subr.bf16.mxu0 %v215
    %1346 = vmatpush1.bf16.msra.mxu0 %v214
    %1347 = vmatprep.subr.bf16.mxu0 %v211
    %1348 = vmatpush1.bf16.msra.mxu0 %v210
    %1349 = vmatprep.subr.bf16.mxu0 %v207
    %1350 = vmatpush1.bf16.msra.mxu0 %v206
    %1351 = vmatprep.subr.bf16.mxu0 %v203
    %1352 = vmatpush1.bf16.msra.mxu0 %v202
    %1353 = vmatprep.subr.bf16.mxu0 %v199
    %1354 = vmatpush1.bf16.msra.mxu0 %v198
    %1355 = vmatprep.subr.bf16.mxu0 %v195
    %1356 = vmatpush1.bf16.msra.mxu0 %v194
    %1357 = vmatprep.subr.bf16.mxu0 0
    %1358 = vmatpush2.bf16.msra.mxu0 0
    %1359 = vmatprep.subr.bf16.mxu0 0
    %1360 = vmatpush2.bf16.msra.mxu0 0
    %1361 = vmatprep.subr.bf16.mxu0 0
    %1362 = vmatpush2.bf16.msra.mxu0 0
    %1363 = vmatprep.subr.bf16.mxu0 0
    %1364 = vmatpush2.bf16.msra.mxu0 0
    %1365 = vmatprep.subr.bf16.mxu0 0
    %1366 = vmatpush2.bf16.msra.mxu0 0
    %1367 = vmatprep.subr.bf16.mxu0 0
    %1368 = vmatpush2.bf16.msra.mxu0 0
    %1369 = vmatprep.subr.bf16.mxu0 0
    %1370 = vmatpush2.bf16.msra.mxu0 0
    %1371 = vmatprep.subr.bf16.mxu0 0
    %1372 = vmatpush2.bf16.msra.mxu0 0
    %1373 = vmatprep.mubr.bf16.mxu0 0
    %1374 = vmatmul.mubr.bf16.gmra.mxu0 %v1299
    %v1375 = vpop.f32.mrf.mxu0
    %v1376 = vadd.f32 0.0, %v1375
    %v1377 = vpop.f32.mrf.mxu0
    %v1378 = vadd.f32 0.0, %v1377
    %v1379 = vpop.f32.mrf.mxu0
    %v1380 = vpop.f32.mrf.mxu0
    %1381 = vdwg.mxu0
    %v1382 = vadd.f32 %v1295, %v1335
    %v1383 = vadd.f32 %v1296, %v1337
    %v1384 = vadd.f32 %v1297, %v1376
    %v1385 = vadd.f32 %v1298, %v1378
    %v1386 = vxor.u32 %v1382, 2147483648
    %v1387 = vxor.u32 %v1383, 2147483648
    %v1388 = vxor.u32 %v1384, 2147483648
    %v1389 = vmul.f32 %v1386, 1.442695
    %v1390 = vpow.pop %v1389
    %v1391 = vmul.f32 %v1387, 1.442695
    %v1392 = vpow.pop %v1391
    %v1393 = vmul.f32 %v1388, 1.442695
    %v1394 = vpow.pop %v1393
    %v1395 = vadd.f32 %v1390, 1.0
    %v1396 = vadd.f32 %v1392, 1.0
    %v1397 = vadd.f32 %v1394, 1.0
    %v1398 = vrcp.pop %v1395
    %v1399 = vmul.f32 1.0, %v1398
    %v1400 = vrcp.pop %v1396
    %v1401 = vmul.f32 1.0, %v1400
    %v1402 = vrcp.pop %v1397
    %v1403 = vmul.f32 1.0, %v1402
    %v1404 = vtanh.pop %v1385
    %v1405 = vmul.f32 %v1401, %v1291
    %v1406 = vmul.f32 %v1399, %v1404
    %v1407 = vadd.f32 %v1405, %v1406
    %v1408 = vtanh.pop %v1407
    %v1409 = vmul.f32 %v1403, %v1408
    %s1410 = scalar_lea.vmem [#allocation2], 320
    %v1411 = vld [vmem:[%s1410] sm:$0xff]
    %v1412 = vld [vmem:[%s1410 + $0x8] sm:$0xff]
    %v1413 = vld [vmem:[%s1410 + $0x10] sm:$0xff]
    %v1414 = vld [vmem:[%s1410 + $0x18] sm:$0xff]
    %v1415 = vpack.c.bf16 %v1409, %v1409
    %1416 = vmatprep.subr.bf16.mxu0 %v221
    %1417 = vmatpush1.bf16.msra.mxu0 %v220
    %1418 = vmatprep.subr.bf16.mxu0 %v217
    %1419 = vmatpush1.bf16.msra.mxu0 %v216
    %1420 = vmatprep.subr.bf16.mxu0 %v213
    %1421 = vmatpush1.bf16.msra.mxu0 %v212
    %1422 = vmatprep.subr.bf16.mxu0 %v209
    %1423 = vmatpush1.bf16.msra.mxu0 %v208
    %1424 = vmatprep.subr.bf16.mxu0 %v205
    %1425 = vmatpush1.bf16.msra.mxu0 %v204
    %1426 = vmatprep.subr.bf16.mxu0 %v201
    %1427 = vmatpush1.bf16.msra.mxu0 %v200
    %1428 = vmatprep.subr.bf16.mxu0 %v197
    %1429 = vmatpush1.bf16.msra.mxu0 %v196
    %1430 = vmatprep.subr.bf16.mxu0 %v193
    %1431 = vmatpush1.bf16.msra.mxu0 %v192
    %1432 = vmatprep.subr.bf16.mxu0 0
    %1433 = vmatpush2.bf16.msra.mxu0 0
    %1434 = vmatprep.subr.bf16.mxu0 0
    %1435 = vmatpush2.bf16.msra.mxu0 0
    %1436 = vmatprep.subr.bf16.mxu0 0
    %1437 = vmatpush2.bf16.msra.mxu0 0
    %1438 = vmatprep.subr.bf16.mxu0 0
    %1439 = vmatpush2.bf16.msra.mxu0 0
    %1440 = vmatprep.subr.bf16.mxu0 0
    %1441 = vmatpush2.bf16.msra.mxu0 0
    %1442 = vmatprep.subr.bf16.mxu0 0
    %1443 = vmatpush2.bf16.msra.mxu0 0
    %1444 = vmatprep.subr.bf16.mxu0 0
    %1445 = vmatpush2.bf16.msra.mxu0 0
    %1446 = vmatprep.subr.bf16.mxu0 0
    %1447 = vmatpush2.bf16.msra.mxu0 0
    %1448 = vmatprep.mubr.bf16.mxu0 0
    %1449 = vmatmul.mubr.bf16.gmra.mxu0 %v1415
    %v1450 = vpop.f32.mrf.mxu0
    %v1451 = vadd.f32 0.0, %v1450
    %v1452 = vpop.f32.mrf.mxu0
    %v1453 = vadd.f32 0.0, %v1452
    %v1454 = vpop.f32.mrf.mxu0
    %v1455 = vpop.f32.mrf.mxu0
    %1456 = vdwg.mxu0
    %1457 = vmatprep.subr.bf16.mxu0 %v223
    %1458 = vmatpush1.bf16.msra.mxu0 %v222
    %1459 = vmatprep.subr.bf16.mxu0 %v219
    %1460 = vmatpush1.bf16.msra.mxu0 %v218
    %1461 = vmatprep.subr.bf16.mxu0 %v215
    %1462 = vmatpush1.bf16.msra.mxu0 %v214
    %1463 = vmatprep.subr.bf16.mxu0 %v211
    %1464 = vmatpush1.bf16.msra.mxu0 %v210
    %1465 = vmatprep.subr.bf16.mxu0 %v207
    %1466 = vmatpush1.bf16.msra.mxu0 %v206
    %1467 = vmatprep.subr.bf16.mxu0 %v203
    %1468 = vmatpush1.bf16.msra.mxu0 %v202
    %1469 = vmatprep.subr.bf16.mxu0 %v199
    %1470 = vmatpush1.bf16.msra.mxu0 %v198
    %1471 = vmatprep.subr.bf16.mxu0 %v195
    %1472 = vmatpush1.bf16.msra.mxu0 %v194
    %1473 = vmatprep.subr.bf16.mxu0 0
    %1474 = vmatpush2.bf16.msra.mxu0 0
    %1475 = vmatprep.subr.bf16.mxu0 0
    %1476 = vmatpush2.bf16.msra.mxu0 0
    %1477 = vmatprep.subr.bf16.mxu0 0
    %1478 = vmatpush2.bf16.msra.mxu0 0
    %1479 = vmatprep.subr.bf16.mxu0 0
    %1480 = vmatpush2.bf16.msra.mxu0 0
    %1481 = vmatprep.subr.bf16.mxu0 0
    %1482 = vmatpush2.bf16.msra.mxu0 0
    %1483 = vmatprep.subr.bf16.mxu0 0
    %1484 = vmatpush2.bf16.msra.mxu0 0
    %1485 = vmatprep.subr.bf16.mxu0 0
    %1486 = vmatpush2.bf16.msra.mxu0 0
    %1487 = vmatprep.subr.bf16.mxu0 0
    %1488 = vmatpush2.bf16.msra.mxu0 0
    %1489 = vmatprep.mubr.bf16.mxu0 0
    %1490 = vmatmul.mubr.bf16.gmra.mxu0 %v1415
    %v1491 = vpop.f32.mrf.mxu0
    %v1492 = vadd.f32 0.0, %v1491
    %v1493 = vpop.f32.mrf.mxu0
    %v1494 = vadd.f32 0.0, %v1493
    %v1495 = vpop.f32.mrf.mxu0
    %v1496 = vpop.f32.mrf.mxu0
    %1497 = vdwg.mxu0
    %v1498 = vadd.f32 %v1411, %v1451
    %v1499 = vadd.f32 %v1412, %v1453
    %v1500 = vadd.f32 %v1413, %v1492
    %v1501 = vadd.f32 %v1414, %v1494
    %v1502 = vxor.u32 %v1498, 2147483648
    %v1503 = vxor.u32 %v1499, 2147483648
    %v1504 = vxor.u32 %v1500, 2147483648
    %v1505 = vmul.f32 %v1502, 1.442695
    %v1506 = vpow.pop %v1505
    %v1507 = vmul.f32 %v1503, 1.442695
    %v1508 = vpow.pop %v1507
    %v1509 = vmul.f32 %v1504, 1.442695
    %v1510 = vpow.pop %v1509
    %v1511 = vadd.f32 %v1506, 1.0
    %v1512 = vadd.f32 %v1508, 1.0
    %v1513 = vadd.f32 %v1510, 1.0
    %v1514 = vrcp.pop %v1511
    %v1515 = vmul.f32 1.0, %v1514
    %v1516 = vrcp.pop %v1512
    %v1517 = vmul.f32 1.0, %v1516
    %v1518 = vrcp.pop %v1513
    %v1519 = vmul.f32 1.0, %v1518
    %v1520 = vtanh.pop %v1501
    %v1521 = vmul.f32 %v1517, %v1407
    %v1522 = vmul.f32 %v1515, %v1520
    %v1523 = vadd.f32 %v1521, %v1522
    %v1524 = vtanh.pop %v1523
    %v1525 = vmul.f32 %v1519, %v1524
    %s1526 = scalar_lea.vmem [#allocation2], 352
    %v1527 = vld [vmem:[%s1526] sm:$0xff]
    %v1528 = vld [vmem:[%s1526 + $0x8] sm:$0xff]
    %v1529 = vld [vmem:[%s1526 + $0x10] sm:$0xff]
    %v1530 = vld [vmem:[%s1526 + $0x18] sm:$0xff]
    %v1531 = vpack.c.bf16 %v1525, %v1525
    %1532 = vmatprep.subr.bf16.mxu0 %v221
    %1533 = vmatpush1.bf16.msra.mxu0 %v220
    %1534 = vmatprep.subr.bf16.mxu0 %v217
    %1535 = vmatpush1.bf16.msra.mxu0 %v216
    %1536 = vmatprep.subr.bf16.mxu0 %v213
    %1537 = vmatpush1.bf16.msra.mxu0 %v212
    %1538 = vmatprep.subr.bf16.mxu0 %v209
    %1539 = vmatpush1.bf16.msra.mxu0 %v208
    %1540 = vmatprep.subr.bf16.mxu0 %v205
    %1541 = vmatpush1.bf16.msra.mxu0 %v204
    %1542 = vmatprep.subr.bf16.mxu0 %v201
    %1543 = vmatpush1.bf16.msra.mxu0 %v200
    %1544 = vmatprep.subr.bf16.mxu0 %v197
    %1545 = vmatpush1.bf16.msra.mxu0 %v196
    %1546 = vmatprep.subr.bf16.mxu0 %v193
    %1547 = vmatpush1.bf16.msra.mxu0 %v192
    %1548 = vmatprep.subr.bf16.mxu0 0
    %1549 = vmatpush2.bf16.msra.mxu0 0
    %1550 = vmatprep.subr.bf16.mxu0 0
    %1551 = vmatpush2.bf16.msra.mxu0 0
    %1552 = vmatprep.subr.bf16.mxu0 0
    %1553 = vmatpush2.bf16.msra.mxu0 0
    %1554 = vmatprep.subr.bf16.mxu0 0
    %1555 = vmatpush2.bf16.msra.mxu0 0
    %1556 = vmatprep.subr.bf16.mxu0 0
    %1557 = vmatpush2.bf16.msra.mxu0 0
    %1558 = vmatprep.subr.bf16.mxu0 0
    %1559 = vmatpush2.bf16.msra.mxu0 0
    %1560 = vmatprep.subr.bf16.mxu0 0
    %1561 = vmatpush2.bf16.msra.mxu0 0
    %1562 = vmatprep.subr.bf16.mxu0 0
    %1563 = vmatpush2.bf16.msra.mxu0 0
    %1564 = vmatprep.mubr.bf16.mxu0 0
    %1565 = vmatmul.mubr.bf16.gmra.mxu0 %v1531
    %v1566 = vpop.f32.mrf.mxu0
    %v1567 = vadd.f32 0.0, %v1566
    %v1568 = vpop.f32.mrf.mxu0
    %v1569 = vadd.f32 0.0, %v1568
    %v1570 = vpop.f32.mrf.mxu0
    %v1571 = vpop.f32.mrf.mxu0
    %1572 = vdwg.mxu0
    %1573 = vmatprep.subr.bf16.mxu0 %v223
    %1574 = vmatpush1.bf16.msra.mxu0 %v222
    %1575 = vmatprep.subr.bf16.mxu0 %v219
    %1576 = vmatpush1.bf16.msra.mxu0 %v218
    %1577 = vmatprep.subr.bf16.mxu0 %v215
    %1578 = vmatpush1.bf16.msra.mxu0 %v214
    %1579 = vmatprep.subr.bf16.mxu0 %v211
    %1580 = vmatpush1.bf16.msra.mxu0 %v210
    %1581 = vmatprep.subr.bf16.mxu0 %v207
    %1582 = vmatpush1.bf16.msra.mxu0 %v206
    %1583 = vmatprep.subr.bf16.mxu0 %v203
    %1584 = vmatpush1.bf16.msra.mxu0 %v202
    %1585 = vmatprep.subr.bf16.mxu0 %v199
    %1586 = vmatpush1.bf16.msra.mxu0 %v198
    %1587 = vmatprep.subr.bf16.mxu0 %v195
    %1588 = vmatpush1.bf16.msra.mxu0 %v194
    %1589 = vmatprep.subr.bf16.mxu0 0
    %1590 = vmatpush2.bf16.msra.mxu0 0
    %1591 = vmatprep.subr.bf16.mxu0 0
    %1592 = vmatpush2.bf16.msra.mxu0 0
    %1593 = vmatprep.subr.bf16.mxu0 0
    %1594 = vmatpush2.bf16.msra.mxu0 0
    %1595 = vmatprep.subr.bf16.mxu0 0
    %1596 = vmatpush2.bf16.msra.mxu0 0
    %1597 = vmatprep.subr.bf16.mxu0 0
    %1598 = vmatpush2.bf16.msra.mxu0 0
    %1599 = vmatprep.subr.bf16.mxu0 0
    %1600 = vmatpush2.bf16.msra.mxu0 0
    %1601 = vmatprep.subr.bf16.mxu0 0
    %1602 = vmatpush2.bf16.msra.mxu0 0
    %1603 = vmatprep.subr.bf16.mxu0 0
    %1604 = vmatpush2.bf16.msra.mxu0 0
    %1605 = vmatprep.mubr.bf16.mxu0 0
    %1606 = vmatmul.mubr.bf16.gmra.mxu0 %v1531
    %v1607 = vpop.f32.mrf.mxu0
    %v1608 = vadd.f32 0.0, %v1607
    %v1609 = vpop.f32.mrf.mxu0
    %v1610 = vadd.f32 0.0, %v1609
    %v1611 = vpop.f32.mrf.mxu0
    %v1612 = vpop.f32.mrf.mxu0
    %1613 = vdwg.mxu0
    %v1614 = vadd.f32 %v1527, %v1567
    %v1615 = vadd.f32 %v1528, %v1569
    %v1616 = vadd.f32 %v1529, %v1608
    %v1617 = vadd.f32 %v1530, %v1610
    %v1618 = vxor.u32 %v1614, 2147483648
    %v1619 = vxor.u32 %v1615, 2147483648
    %v1620 = vxor.u32 %v1616, 2147483648
    %v1621 = vmul.f32 %v1618, 1.442695
    %v1622 = vpow.pop %v1621
    %v1623 = vmul.f32 %v1619, 1.442695
    %v1624 = vpow.pop %v1623
    %v1625 = vmul.f32 %v1620, 1.442695
    %v1626 = vpow.pop %v1625
    %v1627 = vadd.f32 %v1622, 1.0
    %v1628 = vadd.f32 %v1624, 1.0
    %v1629 = vadd.f32 %v1626, 1.0
    %v1630 = vrcp.pop %v1627
    %v1631 = vmul.f32 1.0, %v1630
    %v1632 = vrcp.pop %v1628
    %v1633 = vmul.f32 1.0, %v1632
    %v1634 = vrcp.pop %v1629
    %v1635 = vmul.f32 1.0, %v1634
    %v1636 = vtanh.pop %v1617
    %v1637 = vmul.f32 %v1633, %v1523
    %v1638 = vmul.f32 %v1631, %v1636
    %v1639 = vadd.f32 %v1637, %v1638
    %v1640 = vtanh.pop %v1639
    %v1641 = vmul.f32 %v1635, %v1640
    %s1642 = scalar_lea.vmem [#allocation2], 384
    %v1643 = vld [vmem:[%s1642] sm:$0xff]
    %v1644 = vld [vmem:[%s1642 + $0x8] sm:$0xff]
    %v1645 = vld [vmem:[%s1642 + $0x10] sm:$0xff]
    %v1646 = vld [vmem:[%s1642 + $0x18] sm:$0xff]
    %v1647 = vpack.c.bf16 %v1641, %v1641
    %1648 = vmatprep.subr.bf16.mxu0 %v221
    %1649 = vmatpush1.bf16.msra.mxu0 %v220
    %1650 = vmatprep.subr.bf16.mxu0 %v217
    %1651 = vmatpush1.bf16.msra.mxu0 %v216
    %1652 = vmatprep.subr.bf16.mxu0 %v213
    %1653 = vmatpush1.bf16.msra.mxu0 %v212
    %1654 = vmatprep.subr.bf16.mxu0 %v209
    %1655 = vmatpush1.bf16.msra.mxu0 %v208
    %1656 = vmatprep.subr.bf16.mxu0 %v205
    %1657 = vmatpush1.bf16.msra.mxu0 %v204
    %1658 = vmatprep.subr.bf16.mxu0 %v201
    %1659 = vmatpush1.bf16.msra.mxu0 %v200
    %1660 = vmatprep.subr.bf16.mxu0 %v197
    %1661 = vmatpush1.bf16.msra.mxu0 %v196
    %1662 = vmatprep.subr.bf16.mxu0 %v193
    %1663 = vmatpush1.bf16.msra.mxu0 %v192
    %1664 = vmatprep.subr.bf16.mxu0 0
    %1665 = vmatpush2.bf16.msra.mxu0 0
    %1666 = vmatprep.subr.bf16.mxu0 0
    %1667 = vmatpush2.bf16.msra.mxu0 0
    %1668 = vmatprep.subr.bf16.mxu0 0
    %1669 = vmatpush2.bf16.msra.mxu0 0
    %1670 = vmatprep.subr.bf16.mxu0 0
    %1671 = vmatpush2.bf16.msra.mxu0 0
    %1672 = vmatprep.subr.bf16.mxu0 0
    %1673 = vmatpush2.bf16.msra.mxu0 0
    %1674 = vmatprep.subr.bf16.mxu0 0
    %1675 = vmatpush2.bf16.msra.mxu0 0
    %1676 = vmatprep.subr.bf16.mxu0 0
    %1677 = vmatpush2.bf16.msra.mxu0 0
    %1678 = vmatprep.subr.bf16.mxu0 0
    %1679 = vmatpush2.bf16.msra.mxu0 0
    %1680 = vmatprep.mubr.bf16.mxu0 0
    %1681 = vmatmul.mubr.bf16.gmra.mxu0 %v1647
    %v1682 = vpop.f32.mrf.mxu0
    %v1683 = vadd.f32 0.0, %v1682
    %v1684 = vpop.f32.mrf.mxu0
    %v1685 = vadd.f32 0.0, %v1684
    %v1686 = vpop.f32.mrf.mxu0
    %v1687 = vpop.f32.mrf.mxu0
    %1688 = vdwg.mxu0
    %1689 = vmatprep.subr.bf16.mxu0 %v223
    %1690 = vmatpush1.bf16.msra.mxu0 %v222
    %1691 = vmatprep.subr.bf16.mxu0 %v219
    %1692 = vmatpush1.bf16.msra.mxu0 %v218
    %1693 = vmatprep.subr.bf16.mxu0 %v215
    %1694 = vmatpush1.bf16.msra.mxu0 %v214
    %1695 = vmatprep.subr.bf16.mxu0 %v211
    %1696 = vmatpush1.bf16.msra.mxu0 %v210
    %1697 = vmatprep.subr.bf16.mxu0 %v207
    %1698 = vmatpush1.bf16.msra.mxu0 %v206
    %1699 = vmatprep.subr.bf16.mxu0 %v203
    %1700 = vmatpush1.bf16.msra.mxu0 %v202
    %1701 = vmatprep.subr.bf16.mxu0 %v199
    %1702 = vmatpush1.bf16.msra.mxu0 %v198
    %1703 = vmatprep.subr.bf16.mxu0 %v195
    %1704 = vmatpush1.bf16.msra.mxu0 %v194
    %1705 = vmatprep.subr.bf16.mxu0 0
    %1706 = vmatpush2.bf16.msra.mxu0 0
    %1707 = vmatprep.subr.bf16.mxu0 0
    %1708 = vmatpush2.bf16.msra.mxu0 0
    %1709 = vmatprep.subr.bf16.mxu0 0
    %1710 = vmatpush2.bf16.msra.mxu0 0
    %1711 = vmatprep.subr.bf16.mxu0 0
    %1712 = vmatpush2.bf16.msra.mxu0 0
    %1713 = vmatprep.subr.bf16.mxu0 0
    %1714 = vmatpush2.bf16.msra.mxu0 0
    %1715 = vmatprep.subr.bf16.mxu0 0
    %1716 = vmatpush2.bf16.msra.mxu0 0
    %1717 = vmatprep.subr.bf16.mxu0 0
    %1718 = vmatpush2.bf16.msra.mxu0 0
    %1719 = vmatprep.subr.bf16.mxu0 0
    %1720 = vmatpush2.bf16.msra.mxu0 0
    %1721 = vmatprep.mubr.bf16.mxu0 0
    %1722 = vmatmul.mubr.bf16.gmra.mxu0 %v1647
    %v1723 = vpop.f32.mrf.mxu0
    %v1724 = vadd.f32 0.0, %v1723
    %v1725 = vpop.f32.mrf.mxu0
    %v1726 = vadd.f32 0.0, %v1725
    %v1727 = vpop.f32.mrf.mxu0
    %v1728 = vpop.f32.mrf.mxu0
    %1729 = vdwg.mxu0
    %v1730 = vadd.f32 %v1643, %v1683
    %v1731 = vadd.f32 %v1644, %v1685
    %v1732 = vadd.f32 %v1645, %v1724
    %v1733 = vadd.f32 %v1646, %v1726
    %v1734 = vxor.u32 %v1730, 2147483648
    %v1735 = vxor.u32 %v1731, 2147483648
    %v1736 = vxor.u32 %v1732, 2147483648
    %v1737 = vmul.f32 %v1734, 1.442695
    %v1738 = vpow.pop %v1737
    %v1739 = vmul.f32 %v1735, 1.442695
    %v1740 = vpow.pop %v1739
    %v1741 = vmul.f32 %v1736, 1.442695
    %v1742 = vpow.pop %v1741
    %v1743 = vadd.f32 %v1738, 1.0
    %v1744 = vadd.f32 %v1740, 1.0
    %v1745 = vadd.f32 %v1742, 1.0
    %v1746 = vrcp.pop %v1743
    %v1747 = vmul.f32 1.0, %v1746
    %v1748 = vrcp.pop %v1744
    %v1749 = vmul.f32 1.0, %v1748
    %v1750 = vrcp.pop %v1745
    %v1751 = vmul.f32 1.0, %v1750
    %v1752 = vtanh.pop %v1733
    %v1753 = vmul.f32 %v1749, %v1639
    %v1754 = vmul.f32 %v1747, %v1752
    %v1755 = vadd.f32 %v1753, %v1754
    %v1756 = vtanh.pop %v1755
    %v1757 = vmul.f32 %v1751, %v1756
    %s1758 = scalar_lea.vmem [#allocation2], 416
    %v1759 = vld [vmem:[%s1758] sm:$0xff]
    %v1760 = vld [vmem:[%s1758 + $0x8] sm:$0xff]
    %v1761 = vld [vmem:[%s1758 + $0x10] sm:$0xff]
    %v1762 = vld [vmem:[%s1758 + $0x18] sm:$0xff]
    %v1763 = vpack.c.bf16 %v1757, %v1757
    %1764 = vmatprep.subr.bf16.mxu0 %v221
    %1765 = vmatpush1.bf16.msra.mxu0 %v220
    %1766 = vmatprep.subr.bf16.mxu0 %v217
    %1767 = vmatpush1.bf16.msra.mxu0 %v216
    %1768 = vmatprep.subr.bf16.mxu0 %v213
    %1769 = vmatpush1.bf16.msra.mxu0 %v212
    %1770 = vmatprep.subr.bf16.mxu0 %v209
    %1771 = vmatpush1.bf16.msra.mxu0 %v208
    %1772 = vmatprep.subr.bf16.mxu0 %v205
    %1773 = vmatpush1.bf16.msra.mxu0 %v204
    %1774 = vmatprep.subr.bf16.mxu0 %v201
    %1775 = vmatpush1.bf16.msra.mxu0 %v200
    %1776 = vmatprep.subr.bf16.mxu0 %v197
    %1777 = vmatpush1.bf16.msra.mxu0 %v196
    %1778 = vmatprep.subr.bf16.mxu0 %v193
    %1779 = vmatpush1.bf16.msra.mxu0 %v192
    %1780 = vmatprep.subr.bf16.mxu0 0
    %1781 = vmatpush2.bf16.msra.mxu0 0
    %1782 = vmatprep.subr.bf16.mxu0 0
    %1783 = vmatpush2.bf16.msra.mxu0 0
    %1784 = vmatprep.subr.bf16.mxu0 0
    %1785 = vmatpush2.bf16.msra.mxu0 0
    %1786 = vmatprep.subr.bf16.mxu0 0
    %1787 = vmatpush2.bf16.msra.mxu0 0
    %1788 = vmatprep.subr.bf16.mxu0 0
    %1789 = vmatpush2.bf16.msra.mxu0 0
    %1790 = vmatprep.subr.bf16.mxu0 0
    %1791 = vmatpush2.bf16.msra.mxu0 0
    %1792 = vmatprep.subr.bf16.mxu0 0
    %1793 = vmatpush2.bf16.msra.mxu0 0
    %1794 = vmatprep.subr.bf16.mxu0 0
    %1795 = vmatpush2.bf16.msra.mxu0 0
    %1796 = vmatprep.mubr.bf16.mxu0 0
    %1797 = vmatmul.mubr.bf16.gmra.mxu0 %v1763
    %v1798 = vpop.f32.mrf.mxu0
    %v1799 = vadd.f32 0.0, %v1798
    %v1800 = vpop.f32.mrf.mxu0
    %v1801 = vadd.f32 0.0, %v1800
    %v1802 = vpop.f32.mrf.mxu0
    %v1803 = vpop.f32.mrf.mxu0
    %1804 = vdwg.mxu0
    %1805 = vmatprep.subr.bf16.mxu0 %v223
    %1806 = vmatpush1.bf16.msra.mxu0 %v222
    %1807 = vmatprep.subr.bf16.mxu0 %v219
    %1808 = vmatpush1.bf16.msra.mxu0 %v218
    %1809 = vmatprep.subr.bf16.mxu0 %v215
    %1810 = vmatpush1.bf16.msra.mxu0 %v214
    %1811 = vmatprep.subr.bf16.mxu0 %v211
    %1812 = vmatpush1.bf16.msra.mxu0 %v210
    %1813 = vmatprep.subr.bf16.mxu0 %v207
    %1814 = vmatpush1.bf16.msra.mxu0 %v206
    %1815 = vmatprep.subr.bf16.mxu0 %v203
    %1816 = vmatpush1.bf16.msra.mxu0 %v202
    %1817 = vmatprep.subr.bf16.mxu0 %v199
    %1818 = vmatpush1.bf16.msra.mxu0 %v198
    %1819 = vmatprep.subr.bf16.mxu0 %v195
    %1820 = vmatpush1.bf16.msra.mxu0 %v194
    %1821 = vmatprep.subr.bf16.mxu0 0
    %1822 = vmatpush2.bf16.msra.mxu0 0
    %1823 = vmatprep.subr.bf16.mxu0 0
    %1824 = vmatpush2.bf16.msra.mxu0 0
    %1825 = vmatprep.subr.bf16.mxu0 0
    %1826 = vmatpush2.bf16.msra.mxu0 0
    %1827 = vmatprep.subr.bf16.mxu0 0
    %1828 = vmatpush2.bf16.msra.mxu0 0
    %1829 = vmatprep.subr.bf16.mxu0 0
    %1830 = vmatpush2.bf16.msra.mxu0 0
    %1831 = vmatprep.subr.bf16.mxu0 0
    %1832 = vmatpush2.bf16.msra.mxu0 0
    %1833 = vmatprep.subr.bf16.mxu0 0
    %1834 = vmatpush2.bf16.msra.mxu0 0
    %1835 = vmatprep.subr.bf16.mxu0 0
    %1836 = vmatpush2.bf16.msra.mxu0 0
    %1837 = vmatprep.mubr.bf16.mxu0 0
    %1838 = vmatmul.mubr.bf16.gmra.mxu0 %v1763
    %v1839 = vpop.f32.mrf.mxu0
    %v1840 = vadd.f32 0.0, %v1839
    %v1841 = vpop.f32.mrf.mxu0
    %v1842 = vadd.f32 0.0, %v1841
    %v1843 = vpop.f32.mrf.mxu0
    %v1844 = vpop.f32.mrf.mxu0
    %1845 = vdwg.mxu0
    %v1846 = vadd.f32 %v1759, %v1799
    %v1847 = vadd.f32 %v1760, %v1801
    %v1848 = vadd.f32 %v1761, %v1840
    %v1849 = vadd.f32 %v1762, %v1842
    %v1850 = vxor.u32 %v1846, 2147483648
    %v1851 = vxor.u32 %v1847, 2147483648
    %v1852 = vxor.u32 %v1848, 2147483648
    %v1853 = vmul.f32 %v1850, 1.442695
    %v1854 = vpow.pop %v1853
    %v1855 = vmul.f32 %v1851, 1.442695
    %v1856 = vpow.pop %v1855
    %v1857 = vmul.f32 %v1852, 1.442695
    %v1858 = vpow.pop %v1857
    %v1859 = vadd.f32 %v1854, 1.0
    %v1860 = vadd.f32 %v1856, 1.0
    %v1861 = vadd.f32 %v1858, 1.0
    %v1862 = vrcp.pop %v1859
    %v1863 = vmul.f32 1.0, %v1862
    %v1864 = vrcp.pop %v1860
    %v1865 = vmul.f32 1.0, %v1864
    %v1866 = vrcp.pop %v1861
    %v1867 = vmul.f32 1.0, %v1866
    %v1868 = vtanh.pop %v1849
    %v1869 = vmul.f32 %v1865, %v1755
    %v1870 = vmul.f32 %v1863, %v1868
    %v1871 = vadd.f32 %v1869, %v1870
    %v1872 = vtanh.pop %v1871
    %v1873 = vmul.f32 %v1867, %v1872
    %s1874 = scalar_lea.vmem [#allocation2], 448
    %v1875 = vld [vmem:[%s1874] sm:$0xff]
    %v1876 = vld [vmem:[%s1874 + $0x8] sm:$0xff]
    %v1877 = vld [vmem:[%s1874 + $0x10] sm:$0xff]
    %v1878 = vld [vmem:[%s1874 + $0x18] sm:$0xff]
    %v1879 = vpack.c.bf16 %v1873, %v1873
    %1880 = vmatprep.subr.bf16.mxu0 %v221
    %1881 = vmatpush1.bf16.msra.mxu0 %v220
    %1882 = vmatprep.subr.bf16.mxu0 %v217
    %1883 = vmatpush1.bf16.msra.mxu0 %v216
    %1884 = vmatprep.subr.bf16.mxu0 %v213
    %1885 = vmatpush1.bf16.msra.mxu0 %v212
    %1886 = vmatprep.subr.bf16.mxu0 %v209
    %1887 = vmatpush1.bf16.msra.mxu0 %v208
    %1888 = vmatprep.subr.bf16.mxu0 %v205
    %1889 = vmatpush1.bf16.msra.mxu0 %v204
    %1890 = vmatprep.subr.bf16.mxu0 %v201
    %1891 = vmatpush1.bf16.msra.mxu0 %v200
    %1892 = vmatprep.subr.bf16.mxu0 %v197
    %1893 = vmatpush1.bf16.msra.mxu0 %v196
    %1894 = vmatprep.subr.bf16.mxu0 %v193
    %1895 = vmatpush1.bf16.msra.mxu0 %v192
    %1896 = vmatprep.subr.bf16.mxu0 0
    %1897 = vmatpush2.bf16.msra.mxu0 0
    %1898 = vmatprep.subr.bf16.mxu0 0
    %1899 = vmatpush2.bf16.msra.mxu0 0
    %1900 = vmatprep.subr.bf16.mxu0 0
    %1901 = vmatpush2.bf16.msra.mxu0 0
    %1902 = vmatprep.subr.bf16.mxu0 0
    %1903 = vmatpush2.bf16.msra.mxu0 0
    %1904 = vmatprep.subr.bf16.mxu0 0
    %1905 = vmatpush2.bf16.msra.mxu0 0
    %1906 = vmatprep.subr.bf16.mxu0 0
    %1907 = vmatpush2.bf16.msra.mxu0 0
    %1908 = vmatprep.subr.bf16.mxu0 0
    %1909 = vmatpush2.bf16.msra.mxu0 0
    %1910 = vmatprep.subr.bf16.mxu0 0
    %1911 = vmatpush2.bf16.msra.mxu0 0
    %1912 = vmatprep.mubr.bf16.mxu0 0
    %1913 = vmatmul.mubr.bf16.gmra.mxu0 %v1879
    %v1914 = vpop.f32.mrf.mxu0
    %v1915 = vadd.f32 0.0, %v1914
    %v1916 = vpop.f32.mrf.mxu0
    %v1917 = vadd.f32 0.0, %v1916
    %v1918 = vpop.f32.mrf.mxu0
    %v1919 = vpop.f32.mrf.mxu0
    %1920 = vdwg.mxu0
    %1921 = vmatprep.subr.bf16.mxu0 %v223
    %1922 = vmatpush1.bf16.msra.mxu0 %v222
    %1923 = vmatprep.subr.bf16.mxu0 %v219
    %1924 = vmatpush1.bf16.msra.mxu0 %v218
    %1925 = vmatprep.subr.bf16.mxu0 %v215
    %1926 = vmatpush1.bf16.msra.mxu0 %v214
    %1927 = vmatprep.subr.bf16.mxu0 %v211
    %1928 = vmatpush1.bf16.msra.mxu0 %v210
    %1929 = vmatprep.subr.bf16.mxu0 %v207
    %1930 = vmatpush1.bf16.msra.mxu0 %v206
    %1931 = vmatprep.subr.bf16.mxu0 %v203
    %1932 = vmatpush1.bf16.msra.mxu0 %v202
    %1933 = vmatprep.subr.bf16.mxu0 %v199
    %1934 = vmatpush1.bf16.msra.mxu0 %v198
    %1935 = vmatprep.subr.bf16.mxu0 %v195
    %1936 = vmatpush1.bf16.msra.mxu0 %v194
    %1937 = vmatprep.subr.bf16.mxu0 0
    %1938 = vmatpush2.bf16.msra.mxu0 0
    %1939 = vmatprep.subr.bf16.mxu0 0
    %1940 = vmatpush2.bf16.msra.mxu0 0
    %1941 = vmatprep.subr.bf16.mxu0 0
    %1942 = vmatpush2.bf16.msra.mxu0 0
    %1943 = vmatprep.subr.bf16.mxu0 0
    %1944 = vmatpush2.bf16.msra.mxu0 0
    %1945 = vmatprep.subr.bf16.mxu0 0
    %1946 = vmatpush2.bf16.msra.mxu0 0
    %1947 = vmatprep.subr.bf16.mxu0 0
    %1948 = vmatpush2.bf16.msra.mxu0 0
    %1949 = vmatprep.subr.bf16.mxu0 0
    %1950 = vmatpush2.bf16.msra.mxu0 0
    %1951 = vmatprep.subr.bf16.mxu0 0
    %1952 = vmatpush2.bf16.msra.mxu0 0
    %1953 = vmatprep.mubr.bf16.mxu0 0
    %1954 = vmatmul.mubr.bf16.gmra.mxu0 %v1879
    %v1955 = vpop.f32.mrf.mxu0
    %v1956 = vadd.f32 0.0, %v1955
    %v1957 = vpop.f32.mrf.mxu0
    %v1958 = vadd.f32 0.0, %v1957
    %v1959 = vpop.f32.mrf.mxu0
    %v1960 = vpop.f32.mrf.mxu0
    %1961 = vdwg.mxu0
    %v1962 = vadd.f32 %v1875, %v1915
    %v1963 = vadd.f32 %v1876, %v1917
    %v1964 = vadd.f32 %v1877, %v1956
    %v1965 = vadd.f32 %v1878, %v1958
    %v1966 = vxor.u32 %v1962, 2147483648
    %v1967 = vxor.u32 %v1963, 2147483648
    %v1968 = vxor.u32 %v1964, 2147483648
    %v1969 = vmul.f32 %v1966, 1.442695
    %v1970 = vpow.pop %v1969
    %v1971 = vmul.f32 %v1967, 1.442695
    %v1972 = vpow.pop %v1971
    %v1973 = vmul.f32 %v1968, 1.442695
    %v1974 = vpow.pop %v1973
    %v1975 = vadd.f32 %v1970, 1.0
    %v1976 = vadd.f32 %v1972, 1.0
    %v1977 = vadd.f32 %v1974, 1.0
    %v1978 = vrcp.pop %v1975
    %v1979 = vmul.f32 1.0, %v1978
    %v1980 = vrcp.pop %v1976
    %v1981 = vmul.f32 1.0, %v1980
    %v1982 = vrcp.pop %v1977
    %v1983 = vmul.f32 1.0, %v1982
    %v1984 = vtanh.pop %v1965
    %v1985 = vmul.f32 %v1981, %v1871
    %v1986 = vmul.f32 %v1979, %v1984
    %v1987 = vadd.f32 %v1985, %v1986
    %v1988 = vtanh.pop %v1987
    %v1989 = vmul.f32 %v1983, %v1988
    %s1990 = scalar_lea.vmem [#allocation2], 480
    %v1991 = vld [vmem:[%s1990] sm:$0xff]
    %v1992 = vld [vmem:[%s1990 + $0x8] sm:$0xff]
    %v1993 = vld [vmem:[%s1990 + $0x10] sm:$0xff]
    %v1994 = vld [vmem:[%s1990 + $0x18] sm:$0xff]
    %v1995 = vpack.c.bf16 %v1989, %v1989
    %1996 = vmatprep.subr.bf16.mxu0 %v221
    %1997 = vmatpush1.bf16.msra.mxu0 %v220
    %1998 = vmatprep.subr.bf16.mxu0 %v217
    %1999 = vmatpush1.bf16.msra.mxu0 %v216
    %2000 = vmatprep.subr.bf16.mxu0 %v213
    %2001 = vmatpush1.bf16.msra.mxu0 %v212
    %2002 = vmatprep.subr.bf16.mxu0 %v209
    %2003 = vmatpush1.bf16.msra.mxu0 %v208
    %2004 = vmatprep.subr.bf16.mxu0 %v205
    %2005 = vmatpush1.bf16.msra.mxu0 %v204
    %2006 = vmatprep.subr.bf16.mxu0 %v201
    %2007 = vmatpush1.bf16.msra.mxu0 %v200
    %2008 = vmatprep.subr.bf16.mxu0 %v197
    %2009 = vmatpush1.bf16.msra.mxu0 %v196
    %2010 = vmatprep.subr.bf16.mxu0 %v193
    %2011 = vmatpush1.bf16.msra.mxu0 %v192
    %2012 = vmatprep.subr.bf16.mxu0 0
    %2013 = vmatpush2.bf16.msra.mxu0 0
    %2014 = vmatprep.subr.bf16.mxu0 0
    %2015 = vmatpush2.bf16.msra.mxu0 0
    %2016 = vmatprep.subr.bf16.mxu0 0
    %2017 = vmatpush2.bf16.msra.mxu0 0
    %2018 = vmatprep.subr.bf16.mxu0 0
    %2019 = vmatpush2.bf16.msra.mxu0 0
    %2020 = vmatprep.subr.bf16.mxu0 0
    %2021 = vmatpush2.bf16.msra.mxu0 0
    %2022 = vmatprep.subr.bf16.mxu0 0
    %2023 = vmatpush2.bf16.msra.mxu0 0
    %2024 = vmatprep.subr.bf16.mxu0 0
    %2025 = vmatpush2.bf16.msra.mxu0 0
    %2026 = vmatprep.subr.bf16.mxu0 0
    %2027 = vmatpush2.bf16.msra.mxu0 0
    %2028 = vmatprep.mubr.bf16.mxu0 0
    %2029 = vmatmul.mubr.bf16.gmra.mxu0 %v1995
    %v2030 = vpop.f32.mrf.mxu0
    %v2031 = vadd.f32 0.0, %v2030
    %v2032 = vpop.f32.mrf.mxu0
    %v2033 = vadd.f32 0.0, %v2032
    %v2034 = vpop.f32.mrf.mxu0
    %v2035 = vpop.f32.mrf.mxu0
    %2036 = vdwg.mxu0
    %2037 = vmatprep.subr.bf16.mxu0 %v223
    %2038 = vmatpush1.bf16.msra.mxu0 %v222
    %2039 = vmatprep.subr.bf16.mxu0 %v219
    %2040 = vmatpush1.bf16.msra.mxu0 %v218
    %2041 = vmatprep.subr.bf16.mxu0 %v215
    %2042 = vmatpush1.bf16.msra.mxu0 %v214
    %2043 = vmatprep.subr.bf16.mxu0 %v211
    %2044 = vmatpush1.bf16.msra.mxu0 %v210
    %2045 = vmatprep.subr.bf16.mxu0 %v207
    %2046 = vmatpush1.bf16.msra.mxu0 %v206
    %2047 = vmatprep.subr.bf16.mxu0 %v203
    %2048 = vmatpush1.bf16.msra.mxu0 %v202
    %2049 = vmatprep.subr.bf16.mxu0 %v199
    %2050 = vmatpush1.bf16.msra.mxu0 %v198
    %2051 = vmatprep.subr.bf16.mxu0 %v195
    %2052 = vmatpush1.bf16.msra.mxu0 %v194
    %2053 = vmatprep.subr.bf16.mxu0 0
    %2054 = vmatpush2.bf16.msra.mxu0 0
    %2055 = vmatprep.subr.bf16.mxu0 0
    %2056 = vmatpush2.bf16.msra.mxu0 0
    %2057 = vmatprep.subr.bf16.mxu0 0
    %2058 = vmatpush2.bf16.msra.mxu0 0
    %2059 = vmatprep.subr.bf16.mxu0 0
    %2060 = vmatpush2.bf16.msra.mxu0 0
    %2061 = vmatprep.subr.bf16.mxu0 0
    %2062 = vmatpush2.bf16.msra.mxu0 0
    %2063 = vmatprep.subr.bf16.mxu0 0
    %2064 = vmatpush2.bf16.msra.mxu0 0
    %2065 = vmatprep.subr.bf16.mxu0 0
    %2066 = vmatpush2.bf16.msra.mxu0 0
    %2067 = vmatprep.subr.bf16.mxu0 0
    %2068 = vmatpush2.bf16.msra.mxu0 0
    %2069 = vmatprep.mubr.bf16.mxu0 0
    %2070 = vmatmul.mubr.bf16.gmra.mxu0 %v1995
    %v2071 = vpop.f32.mrf.mxu0
    %v2072 = vadd.f32 0.0, %v2071
    %v2073 = vpop.f32.mrf.mxu0
    %v2074 = vadd.f32 0.0, %v2073
    %v2075 = vpop.f32.mrf.mxu0
    %v2076 = vpop.f32.mrf.mxu0
    %2077 = vdwg.mxu0
    %v2078 = vadd.f32 %v1991, %v2031
    %v2079 = vadd.f32 %v1992, %v2033
    %v2080 = vadd.f32 %v1993, %v2072
    %v2081 = vadd.f32 %v1994, %v2074
    %v2082 = vxor.u32 %v2078, 2147483648
    %v2083 = vxor.u32 %v2079, 2147483648
    %v2084 = vxor.u32 %v2080, 2147483648
    %v2085 = vmul.f32 %v2082, 1.442695
    %v2086 = vpow.pop %v2085
    %v2087 = vmul.f32 %v2083, 1.442695
    %v2088 = vpow.pop %v2087
    %v2089 = vmul.f32 %v2084, 1.442695
    %v2090 = vpow.pop %v2089
    %v2091 = vadd.f32 %v2086, 1.0
    %v2092 = vadd.f32 %v2088, 1.0
    %v2093 = vadd.f32 %v2090, 1.0
    %v2094 = vrcp.pop %v2091
    %v2095 = vmul.f32 1.0, %v2094
    %v2096 = vrcp.pop %v2092
    %v2097 = vmul.f32 1.0, %v2096
    %v2098 = vrcp.pop %v2093
    %v2099 = vmul.f32 1.0, %v2098
    %v2100 = vtanh.pop %v2081
    %v2101 = vmul.f32 %v2097, %v1987
    %v2102 = vmul.f32 %v2095, %v2100
    %v2103 = vadd.f32 %v2101, %v2102
    %v2104 = vtanh.pop %v2103
    %v2105 = vmul.f32 %v2099, %v2104
    %s2106 = scalar_lea.vmem [#allocation2], 512
    %v2107 = vld [vmem:[%s2106] sm:$0xff]
    %v2108 = vld [vmem:[%s2106 + $0x8] sm:$0xff]
    %v2109 = vld [vmem:[%s2106 + $0x10] sm:$0xff]
    %v2110 = vld [vmem:[%s2106 + $0x18] sm:$0xff]
    %v2111 = vpack.c.bf16 %v2105, %v2105
    %2112 = vmatprep.subr.bf16.mxu0 %v221
    %2113 = vmatpush1.bf16.msra.mxu0 %v220
    %2114 = vmatprep.subr.bf16.mxu0 %v217
    %2115 = vmatpush1.bf16.msra.mxu0 %v216
    %2116 = vmatprep.subr.bf16.mxu0 %v213
    %2117 = vmatpush1.bf16.msra.mxu0 %v212
    %2118 = vmatprep.subr.bf16.mxu0 %v209
    %2119 = vmatpush1.bf16.msra.mxu0 %v208
    %2120 = vmatprep.subr.bf16.mxu0 %v205
    %2121 = vmatpush1.bf16.msra.mxu0 %v204
    %2122 = vmatprep.subr.bf16.mxu0 %v201
    %2123 = vmatpush1.bf16.msra.mxu0 %v200
    %2124 = vmatprep.subr.bf16.mxu0 %v197
    %2125 = vmatpush1.bf16.msra.mxu0 %v196
    %2126 = vmatprep.subr.bf16.mxu0 %v193
    %2127 = vmatpush1.bf16.msra.mxu0 %v192
    %2128 = vmatprep.subr.bf16.mxu0 0
    %2129 = vmatpush2.bf16.msra.mxu0 0
    %2130 = vmatprep.subr.bf16.mxu0 0
    %2131 = vmatpush2.bf16.msra.mxu0 0
    %2132 = vmatprep.subr.bf16.mxu0 0
    %2133 = vmatpush2.bf16.msra.mxu0 0
    %2134 = vmatprep.subr.bf16.mxu0 0
    %2135 = vmatpush2.bf16.msra.mxu0 0
    %2136 = vmatprep.subr.bf16.mxu0 0
    %2137 = vmatpush2.bf16.msra.mxu0 0
    %2138 = vmatprep.subr.bf16.mxu0 0
    %2139 = vmatpush2.bf16.msra.mxu0 0
    %2140 = vmatprep.subr.bf16.mxu0 0
    %2141 = vmatpush2.bf16.msra.mxu0 0
    %2142 = vmatprep.subr.bf16.mxu0 0
    %2143 = vmatpush2.bf16.msra.mxu0 0
    %2144 = vmatprep.mubr.bf16.mxu0 0
    %2145 = vmatmul.mubr.bf16.gmra.mxu0 %v2111
    %v2146 = vpop.f32.mrf.mxu0
    %v2147 = vadd.f32 0.0, %v2146
    %v2148 = vpop.f32.mrf.mxu0
    %v2149 = vadd.f32 0.0, %v2148
    %v2150 = vpop.f32.mrf.mxu0
    %v2151 = vpop.f32.mrf.mxu0
    %2152 = vdwg.mxu0
    %2153 = vmatprep.subr.bf16.mxu0 %v223
    %2154 = vmatpush1.bf16.msra.mxu0 %v222
    %2155 = vmatprep.subr.bf16.mxu0 %v219
    %2156 = vmatpush1.bf16.msra.mxu0 %v218
    %2157 = vmatprep.subr.bf16.mxu0 %v215
    %2158 = vmatpush1.bf16.msra.mxu0 %v214
    %2159 = vmatprep.subr.bf16.mxu0 %v211
    %2160 = vmatpush1.bf16.msra.mxu0 %v210
    %2161 = vmatprep.subr.bf16.mxu0 %v207
    %2162 = vmatpush1.bf16.msra.mxu0 %v206
    %2163 = vmatprep.subr.bf16.mxu0 %v203
    %2164 = vmatpush1.bf16.msra.mxu0 %v202
    %2165 = vmatprep.subr.bf16.mxu0 %v199
    %2166 = vmatpush1.bf16.msra.mxu0 %v198
    %2167 = vmatprep.subr.bf16.mxu0 %v195
    %2168 = vmatpush1.bf16.msra.mxu0 %v194
    %2169 = vmatprep.subr.bf16.mxu0 0
    %2170 = vmatpush2.bf16.msra.mxu0 0
    %2171 = vmatprep.subr.bf16.mxu0 0
    %2172 = vmatpush2.bf16.msra.mxu0 0
    %2173 = vmatprep.subr.bf16.mxu0 0
    %2174 = vmatpush2.bf16.msra.mxu0 0
    %2175 = vmatprep.subr.bf16.mxu0 0
    %2176 = vmatpush2.bf16.msra.mxu0 0
    %2177 = vmatprep.subr.bf16.mxu0 0
    %2178 = vmatpush2.bf16.msra.mxu0 0
    %2179 = vmatprep.subr.bf16.mxu0 0
    %2180 = vmatpush2.bf16.msra.mxu0 0
    %2181 = vmatprep.subr.bf16.mxu0 0
    %2182 = vmatpush2.bf16.msra.mxu0 0
    %2183 = vmatprep.subr.bf16.mxu0 0
    %2184 = vmatpush2.bf16.msra.mxu0 0
    %2185 = vmatprep.mubr.bf16.mxu0 0
    %2186 = vmatmul.mubr.bf16.gmra.mxu0 %v2111
    %v2187 = vpop.f32.mrf.mxu0
    %v2188 = vadd.f32 0.0, %v2187
    %v2189 = vpop.f32.mrf.mxu0
    %v2190 = vadd.f32 0.0, %v2189
    %v2191 = vpop.f32.mrf.mxu0
    %v2192 = vpop.f32.mrf.mxu0
    %2193 = vdwg.mxu0
    %v2194 = vadd.f32 %v2107, %v2147
    %v2195 = vadd.f32 %v2108, %v2149
    %v2196 = vadd.f32 %v2109, %v2188
    %v2197 = vadd.f32 %v2110, %v2190
    %v2198 = vxor.u32 %v2194, 2147483648
    %v2199 = vxor.u32 %v2195, 2147483648
    %v2200 = vxor.u32 %v2196, 2147483648
    %v2201 = vmul.f32 %v2198, 1.442695
    %v2202 = vpow.pop %v2201
    %v2203 = vmul.f32 %v2199, 1.442695
    %v2204 = vpow.pop %v2203
    %v2205 = vmul.f32 %v2200, 1.442695
    %v2206 = vpow.pop %v2205
    %v2207 = vadd.f32 %v2202, 1.0
    %v2208 = vadd.f32 %v2204, 1.0
    %v2209 = vadd.f32 %v2206, 1.0
    %v2210 = vrcp.pop %v2207
    %v2211 = vmul.f32 1.0, %v2210
    %v2212 = vrcp.pop %v2208
    %v2213 = vmul.f32 1.0, %v2212
    %v2214 = vrcp.pop %v2209
    %v2215 = vmul.f32 1.0, %v2214
    %v2216 = vtanh.pop %v2197
    %v2217 = vmul.f32 %v2213, %v2103
    %v2218 = vmul.f32 %v2211, %v2216
    %v2219 = vadd.f32 %v2217, %v2218
    %v2220 = vtanh.pop %v2219
    %v2221 = vmul.f32 %v2215, %v2220
    %s2222 = scalar_lea.vmem [#allocation2], 544
    %v2223 = vld [vmem:[%s2222] sm:$0xff]
    %v2224 = vld [vmem:[%s2222 + $0x8] sm:$0xff]
    %v2225 = vld [vmem:[%s2222 + $0x10] sm:$0xff]
    %v2226 = vld [vmem:[%s2222 + $0x18] sm:$0xff]
    %v2227 = vpack.c.bf16 %v2221, %v2221
    %2228 = vmatprep.subr.bf16.mxu0 %v221
    %2229 = vmatpush1.bf16.msra.mxu0 %v220
    %2230 = vmatprep.subr.bf16.mxu0 %v217
    %2231 = vmatpush1.bf16.msra.mxu0 %v216
    %2232 = vmatprep.subr.bf16.mxu0 %v213
    %2233 = vmatpush1.bf16.msra.mxu0 %v212
    %2234 = vmatprep.subr.bf16.mxu0 %v209
    %2235 = vmatpush1.bf16.msra.mxu0 %v208
    %2236 = vmatprep.subr.bf16.mxu0 %v205
    %2237 = vmatpush1.bf16.msra.mxu0 %v204
    %2238 = vmatprep.subr.bf16.mxu0 %v201
    %2239 = vmatpush1.bf16.msra.mxu0 %v200
    %2240 = vmatprep.subr.bf16.mxu0 %v197
    %2241 = vmatpush1.bf16.msra.mxu0 %v196
    %2242 = vmatprep.subr.bf16.mxu0 %v193
    %2243 = vmatpush1.bf16.msra.mxu0 %v192
    %2244 = vmatprep.subr.bf16.mxu0 0
    %2245 = vmatpush2.bf16.msra.mxu0 0
    %2246 = vmatprep.subr.bf16.mxu0 0
    %2247 = vmatpush2.bf16.msra.mxu0 0
    %2248 = vmatprep.subr.bf16.mxu0 0
    %2249 = vmatpush2.bf16.msra.mxu0 0
    %2250 = vmatprep.subr.bf16.mxu0 0
    %2251 = vmatpush2.bf16.msra.mxu0 0
    %2252 = vmatprep.subr.bf16.mxu0 0
    %2253 = vmatpush2.bf16.msra.mxu0 0
    %2254 = vmatprep.subr.bf16.mxu0 0
    %2255 = vmatpush2.bf16.msra.mxu0 0
    %2256 = vmatprep.subr.bf16.mxu0 0
    %2257 = vmatpush2.bf16.msra.mxu0 0
    %2258 = vmatprep.subr.bf16.mxu0 0
    %2259 = vmatpush2.bf16.msra.mxu0 0
    %2260 = vmatprep.mubr.bf16.mxu0 0
    %2261 = vmatmul.mubr.bf16.gmra.mxu0 %v2227
    %v2262 = vpop.f32.mrf.mxu0
    %v2263 = vadd.f32 0.0, %v2262
    %v2264 = vpop.f32.mrf.mxu0
    %v2265 = vadd.f32 0.0, %v2264
    %v2266 = vpop.f32.mrf.mxu0
    %v2267 = vpop.f32.mrf.mxu0
    %2268 = vdwg.mxu0
    %2269 = vmatprep.subr.bf16.mxu0 %v223
    %2270 = vmatpush1.bf16.msra.mxu0 %v222
    %2271 = vmatprep.subr.bf16.mxu0 %v219
    %2272 = vmatpush1.bf16.msra.mxu0 %v218
    %2273 = vmatprep.subr.bf16.mxu0 %v215
    %2274 = vmatpush1.bf16.msra.mxu0 %v214
    %2275 = vmatprep.subr.bf16.mxu0 %v211
    %2276 = vmatpush1.bf16.msra.mxu0 %v210
    %2277 = vmatprep.subr.bf16.mxu0 %v207
    %2278 = vmatpush1.bf16.msra.mxu0 %v206
    %2279 = vmatprep.subr.bf16.mxu0 %v203
    %2280 = vmatpush1.bf16.msra.mxu0 %v202
    %2281 = vmatprep.subr.bf16.mxu0 %v199
    %2282 = vmatpush1.bf16.msra.mxu0 %v198
    %2283 = vmatprep.subr.bf16.mxu0 %v195
    %2284 = vmatpush1.bf16.msra.mxu0 %v194
    %2285 = vmatprep.subr.bf16.mxu0 0
    %2286 = vmatpush2.bf16.msra.mxu0 0
    %2287 = vmatprep.subr.bf16.mxu0 0
    %2288 = vmatpush2.bf16.msra.mxu0 0
    %2289 = vmatprep.subr.bf16.mxu0 0
    %2290 = vmatpush2.bf16.msra.mxu0 0
    %2291 = vmatprep.subr.bf16.mxu0 0
    %2292 = vmatpush2.bf16.msra.mxu0 0
    %2293 = vmatprep.subr.bf16.mxu0 0
    %2294 = vmatpush2.bf16.msra.mxu0 0
    %2295 = vmatprep.subr.bf16.mxu0 0
    %2296 = vmatpush2.bf16.msra.mxu0 0
    %2297 = vmatprep.subr.bf16.mxu0 0
    %2298 = vmatpush2.bf16.msra.mxu0 0
    %2299 = vmatprep.subr.bf16.mxu0 0
    %2300 = vmatpush2.bf16.msra.mxu0 0
    %2301 = vmatprep.mubr.bf16.mxu0 0
    %2302 = vmatmul.mubr.bf16.gmra.mxu0 %v2227
    %v2303 = vpop.f32.mrf.mxu0
    %v2304 = vadd.f32 0.0, %v2303
    %v2305 = vpop.f32.mrf.mxu0
    %v2306 = vadd.f32 0.0, %v2305
    %v2307 = vpop.f32.mrf.mxu0
    %v2308 = vpop.f32.mrf.mxu0
    %2309 = vdwg.mxu0
    %v2310 = vadd.f32 %v2223, %v2263
    %v2311 = vadd.f32 %v2224, %v2265
    %v2312 = vadd.f32 %v2225, %v2304
    %v2313 = vadd.f32 %v2226, %v2306
    %v2314 = vxor.u32 %v2310, 2147483648
    %v2315 = vxor.u32 %v2311, 2147483648
    %v2316 = vxor.u32 %v2312, 2147483648
    %v2317 = vmul.f32 %v2314, 1.442695
    %v2318 = vpow.pop %v2317
    %v2319 = vmul.f32 %v2315, 1.442695
    %v2320 = vpow.pop %v2319
    %v2321 = vmul.f32 %v2316, 1.442695
    %v2322 = vpow.pop %v2321
    %v2323 = vadd.f32 %v2318, 1.0
    %v2324 = vadd.f32 %v2320, 1.0
    %v2325 = vadd.f32 %v2322, 1.0
    %v2326 = vrcp.pop %v2323
    %v2327 = vmul.f32 1.0, %v2326
    %v2328 = vrcp.pop %v2324
    %v2329 = vmul.f32 1.0, %v2328
    %v2330 = vrcp.pop %v2325
    %v2331 = vmul.f32 1.0, %v2330
    %v2332 = vtanh.pop %v2313
    %v2333 = vmul.f32 %v2329, %v2219
    %v2334 = vmul.f32 %v2327, %v2332
    %v2335 = vadd.f32 %v2333, %v2334
    %v2336 = vtanh.pop %v2335
    %v2337 = vmul.f32 %v2331, %v2336
    %s2338 = scalar_lea.vmem [#allocation2], 576
    %v2339 = vld [vmem:[%s2338] sm:$0xff]
    %v2340 = vld [vmem:[%s2338 + $0x8] sm:$0xff]
    %v2341 = vld [vmem:[%s2338 + $0x10] sm:$0xff]
    %v2342 = vld [vmem:[%s2338 + $0x18] sm:$0xff]
    %v2343 = vpack.c.bf16 %v2337, %v2337
    %2344 = vmatprep.subr.bf16.mxu0 %v221
    %2345 = vmatpush1.bf16.msra.mxu0 %v220
    %2346 = vmatprep.subr.bf16.mxu0 %v217
    %2347 = vmatpush1.bf16.msra.mxu0 %v216
    %2348 = vmatprep.subr.bf16.mxu0 %v213
    %2349 = vmatpush1.bf16.msra.mxu0 %v212
    %2350 = vmatprep.subr.bf16.mxu0 %v209
    %2351 = vmatpush1.bf16.msra.mxu0 %v208
    %2352 = vmatprep.subr.bf16.mxu0 %v205
    %2353 = vmatpush1.bf16.msra.mxu0 %v204
    %2354 = vmatprep.subr.bf16.mxu0 %v201
    %2355 = vmatpush1.bf16.msra.mxu0 %v200
    %2356 = vmatprep.subr.bf16.mxu0 %v197
    %2357 = vmatpush1.bf16.msra.mxu0 %v196
    %2358 = vmatprep.subr.bf16.mxu0 %v193
    %2359 = vmatpush1.bf16.msra.mxu0 %v192
    %2360 = vmatprep.subr.bf16.mxu0 0
    %2361 = vmatpush2.bf16.msra.mxu0 0
    %2362 = vmatprep.subr.bf16.mxu0 0
    %2363 = vmatpush2.bf16.msra.mxu0 0
    %2364 = vmatprep.subr.bf16.mxu0 0
    %2365 = vmatpush2.bf16.msra.mxu0 0
    %2366 = vmatprep.subr.bf16.mxu0 0
    %2367 = vmatpush2.bf16.msra.mxu0 0
    %2368 = vmatprep.subr.bf16.mxu0 0
    %2369 = vmatpush2.bf16.msra.mxu0 0
    %2370 = vmatprep.subr.bf16.mxu0 0
    %2371 = vmatpush2.bf16.msra.mxu0 0
    %2372 = vmatprep.subr.bf16.mxu0 0
    %2373 = vmatpush2.bf16.msra.mxu0 0
    %2374 = vmatprep.subr.bf16.mxu0 0
    %2375 = vmatpush2.bf16.msra.mxu0 0
    %2376 = vmatprep.mubr.bf16.mxu0 0
    %2377 = vmatmul.mubr.bf16.gmra.mxu0 %v2343
    %v2378 = vpop.f32.mrf.mxu0
    %v2379 = vadd.f32 0.0, %v2378
    %v2380 = vpop.f32.mrf.mxu0
    %v2381 = vadd.f32 0.0, %v2380
    %v2382 = vpop.f32.mrf.mxu0
    %v2383 = vpop.f32.mrf.mxu0
    %2384 = vdwg.mxu0
    %2385 = vmatprep.subr.bf16.mxu0 %v223
    %2386 = vmatpush1.bf16.msra.mxu0 %v222
    %2387 = vmatprep.subr.bf16.mxu0 %v219
    %2388 = vmatpush1.bf16.msra.mxu0 %v218
    %2389 = vmatprep.subr.bf16.mxu0 %v215
    %2390 = vmatpush1.bf16.msra.mxu0 %v214
    %2391 = vmatprep.subr.bf16.mxu0 %v211
    %2392 = vmatpush1.bf16.msra.mxu0 %v210
    %2393 = vmatprep.subr.bf16.mxu0 %v207
    %2394 = vmatpush1.bf16.msra.mxu0 %v206
    %2395 = vmatprep.subr.bf16.mxu0 %v203
    %2396 = vmatpush1.bf16.msra.mxu0 %v202
    %2397 = vmatprep.subr.bf16.mxu0 %v199
    %2398 = vmatpush1.bf16.msra.mxu0 %v198
    %2399 = vmatprep.subr.bf16.mxu0 %v195
    %2400 = vmatpush1.bf16.msra.mxu0 %v194
    %2401 = vmatprep.subr.bf16.mxu0 0
    %2402 = vmatpush2.bf16.msra.mxu0 0
    %2403 = vmatprep.subr.bf16.mxu0 0
    %2404 = vmatpush2.bf16.msra.mxu0 0
    %2405 = vmatprep.subr.bf16.mxu0 0
    %2406 = vmatpush2.bf16.msra.mxu0 0
    %2407 = vmatprep.subr.bf16.mxu0 0
    %2408 = vmatpush2.bf16.msra.mxu0 0
    %2409 = vmatprep.subr.bf16.mxu0 0
    %2410 = vmatpush2.bf16.msra.mxu0 0
    %2411 = vmatprep.subr.bf16.mxu0 0
    %2412 = vmatpush2.bf16.msra.mxu0 0
    %2413 = vmatprep.subr.bf16.mxu0 0
    %2414 = vmatpush2.bf16.msra.mxu0 0
    %2415 = vmatprep.subr.bf16.mxu0 0
    %2416 = vmatpush2.bf16.msra.mxu0 0
    %2417 = vmatprep.mubr.bf16.mxu0 0
    %2418 = vmatmul.mubr.bf16.gmra.mxu0 %v2343
    %v2419 = vpop.f32.mrf.mxu0
    %v2420 = vadd.f32 0.0, %v2419
    %v2421 = vpop.f32.mrf.mxu0
    %v2422 = vadd.f32 0.0, %v2421
    %v2423 = vpop.f32.mrf.mxu0
    %v2424 = vpop.f32.mrf.mxu0
    %2425 = vdwg.mxu0
    %v2426 = vadd.f32 %v2339, %v2379
    %v2427 = vadd.f32 %v2340, %v2381
    %v2428 = vadd.f32 %v2341, %v2420
    %v2429 = vadd.f32 %v2342, %v2422
    %v2430 = vxor.u32 %v2426, 2147483648
    %v2431 = vxor.u32 %v2427, 2147483648
    %v2432 = vxor.u32 %v2428, 2147483648
    %v2433 = vmul.f32 %v2430, 1.442695
    %v2434 = vpow.pop %v2433
    %v2435 = vmul.f32 %v2431, 1.442695
    %v2436 = vpow.pop %v2435
    %v2437 = vmul.f32 %v2432, 1.442695
    %v2438 = vpow.pop %v2437
    %v2439 = vadd.f32 %v2434, 1.0
    %v2440 = vadd.f32 %v2436, 1.0
    %v2441 = vadd.f32 %v2438, 1.0
    %v2442 = vrcp.pop %v2439
    %v2443 = vmul.f32 1.0, %v2442
    %v2444 = vrcp.pop %v2440
    %v2445 = vmul.f32 1.0, %v2444
    %v2446 = vrcp.pop %v2441
    %v2447 = vmul.f32 1.0, %v2446
    %v2448 = vtanh.pop %v2429
    %v2449 = vmul.f32 %v2445, %v2335
    %v2450 = vmul.f32 %v2443, %v2448
    %v2451 = vadd.f32 %v2449, %v2450
    %v2452 = vtanh.pop %v2451
    %v2453 = vmul.f32 %v2447, %v2452
    %s2454 = scalar_lea.vmem [#allocation2], 608
    %v2455 = vld [vmem:[%s2454] sm:$0xff]
    %v2456 = vld [vmem:[%s2454 + $0x8] sm:$0xff]
    %v2457 = vld [vmem:[%s2454 + $0x10] sm:$0xff]
    %v2458 = vld [vmem:[%s2454 + $0x18] sm:$0xff]
    %v2459 = vpack.c.bf16 %v2453, %v2453
    %2460 = vmatprep.subr.bf16.mxu0 %v221
    %2461 = vmatpush1.bf16.msra.mxu0 %v220
    %2462 = vmatprep.subr.bf16.mxu0 %v217
    %2463 = vmatpush1.bf16.msra.mxu0 %v216
    %2464 = vmatprep.subr.bf16.mxu0 %v213
    %2465 = vmatpush1.bf16.msra.mxu0 %v212
    %2466 = vmatprep.subr.bf16.mxu0 %v209
    %2467 = vmatpush1.bf16.msra.mxu0 %v208
    %2468 = vmatprep.subr.bf16.mxu0 %v205
    %2469 = vmatpush1.bf16.msra.mxu0 %v204
    %2470 = vmatprep.subr.bf16.mxu0 %v201
    %2471 = vmatpush1.bf16.msra.mxu0 %v200
    %2472 = vmatprep.subr.bf16.mxu0 %v197
    %2473 = vmatpush1.bf16.msra.mxu0 %v196
    %2474 = vmatprep.subr.bf16.mxu0 %v193
    %2475 = vmatpush1.bf16.msra.mxu0 %v192
    %2476 = vmatprep.subr.bf16.mxu0 0
    %2477 = vmatpush2.bf16.msra.mxu0 0
    %2478 = vmatprep.subr.bf16.mxu0 0
    %2479 = vmatpush2.bf16.msra.mxu0 0
    %2480 = vmatprep.subr.bf16.mxu0 0
    %2481 = vmatpush2.bf16.msra.mxu0 0
    %2482 = vmatprep.subr.bf16.mxu0 0
    %2483 = vmatpush2.bf16.msra.mxu0 0
    %2484 = vmatprep.subr.bf16.mxu0 0
    %2485 = vmatpush2.bf16.msra.mxu0 0
    %2486 = vmatprep.subr.bf16.mxu0 0
    %2487 = vmatpush2.bf16.msra.mxu0 0
    %2488 = vmatprep.subr.bf16.mxu0 0
    %2489 = vmatpush2.bf16.msra.mxu0 0
    %2490 = vmatprep.subr.bf16.mxu0 0
    %2491 = vmatpush2.bf16.msra.mxu0 0
    %2492 = vmatprep.mubr.bf16.mxu0 0
    %2493 = vmatmul.mubr.bf16.gmra.mxu0 %v2459
    %v2494 = vpop.f32.mrf.mxu0
    %v2495 = vadd.f32 0.0, %v2494
    %v2496 = vpop.f32.mrf.mxu0
    %v2497 = vadd.f32 0.0, %v2496
    %v2498 = vpop.f32.mrf.mxu0
    %v2499 = vpop.f32.mrf.mxu0
    %2500 = vdwg.mxu0
    %2501 = vmatprep.subr.bf16.mxu0 %v223
    %2502 = vmatpush1.bf16.msra.mxu0 %v222
    %2503 = vmatprep.subr.bf16.mxu0 %v219
    %2504 = vmatpush1.bf16.msra.mxu0 %v218
    %2505 = vmatprep.subr.bf16.mxu0 %v215
    %2506 = vmatpush1.bf16.msra.mxu0 %v214
    %2507 = vmatprep.subr.bf16.mxu0 %v211
    %2508 = vmatpush1.bf16.msra.mxu0 %v210
    %2509 = vmatprep.subr.bf16.mxu0 %v207
    %2510 = vmatpush1.bf16.msra.mxu0 %v206
    %2511 = vmatprep.subr.bf16.mxu0 %v203
    %2512 = vmatpush1.bf16.msra.mxu0 %v202
    %2513 = vmatprep.subr.bf16.mxu0 %v199
    %2514 = vmatpush1.bf16.msra.mxu0 %v198
    %2515 = vmatprep.subr.bf16.mxu0 %v195
    %2516 = vmatpush1.bf16.msra.mxu0 %v194
    %2517 = vmatprep.subr.bf16.mxu0 0
    %2518 = vmatpush2.bf16.msra.mxu0 0
    %2519 = vmatprep.subr.bf16.mxu0 0
    %2520 = vmatpush2.bf16.msra.mxu0 0
    %2521 = vmatprep.subr.bf16.mxu0 0
    %2522 = vmatpush2.bf16.msra.mxu0 0
    %2523 = vmatprep.subr.bf16.mxu0 0
    %2524 = vmatpush2.bf16.msra.mxu0 0
    %2525 = vmatprep.subr.bf16.mxu0 0
    %2526 = vmatpush2.bf16.msra.mxu0 0
    %2527 = vmatprep.subr.bf16.mxu0 0
    %2528 = vmatpush2.bf16.msra.mxu0 0
    %2529 = vmatprep.subr.bf16.mxu0 0
    %2530 = vmatpush2.bf16.msra.mxu0 0
    %2531 = vmatprep.subr.bf16.mxu0 0
    %2532 = vmatpush2.bf16.msra.mxu0 0
    %2533 = vmatprep.mubr.bf16.mxu0 0
    %2534 = vmatmul.mubr.bf16.gmra.mxu0 %v2459
    %v2535 = vpop.f32.mrf.mxu0
    %v2536 = vadd.f32 0.0, %v2535
    %v2537 = vpop.f32.mrf.mxu0
    %v2538 = vadd.f32 0.0, %v2537
    %v2539 = vpop.f32.mrf.mxu0
    %v2540 = vpop.f32.mrf.mxu0
    %2541 = vdwg.mxu0
    %v2542 = vadd.f32 %v2455, %v2495
    %v2543 = vadd.f32 %v2456, %v2497
    %v2544 = vadd.f32 %v2457, %v2536
    %v2545 = vadd.f32 %v2458, %v2538
    %v2546 = vxor.u32 %v2542, 2147483648
    %v2547 = vxor.u32 %v2543, 2147483648
    %v2548 = vxor.u32 %v2544, 2147483648
    %v2549 = vmul.f32 %v2546, 1.442695
    %v2550 = vpow.pop %v2549
    %v2551 = vmul.f32 %v2547, 1.442695
    %v2552 = vpow.pop %v2551
    %v2553 = vmul.f32 %v2548, 1.442695
    %v2554 = vpow.pop %v2553
    %v2555 = vadd.f32 %v2550, 1.0
    %v2556 = vadd.f32 %v2552, 1.0
    %v2557 = vadd.f32 %v2554, 1.0
    %v2558 = vrcp.pop %v2555
    %v2559 = vmul.f32 1.0, %v2558
    %v2560 = vrcp.pop %v2556
    %v2561 = vmul.f32 1.0, %v2560
    %v2562 = vrcp.pop %v2557
    %v2563 = vmul.f32 1.0, %v2562
    %v2564 = vtanh.pop %v2545
    %v2565 = vmul.f32 %v2561, %v2451
    %v2566 = vmul.f32 %v2559, %v2564
    %v2567 = vadd.f32 %v2565, %v2566
    %v2568 = vtanh.pop %v2567
    %v2569 = vmul.f32 %v2563, %v2568
    %s2570 = scalar_lea.vmem [#allocation2], 640
    %v2571 = vld [vmem:[%s2570] sm:$0xff]
    %v2572 = vld [vmem:[%s2570 + $0x8] sm:$0xff]
    %v2573 = vld [vmem:[%s2570 + $0x10] sm:$0xff]
    %v2574 = vld [vmem:[%s2570 + $0x18] sm:$0xff]
    %v2575 = vpack.c.bf16 %v2569, %v2569
    %2576 = vmatprep.subr.bf16.mxu0 %v221
    %2577 = vmatpush1.bf16.msra.mxu0 %v220
    %2578 = vmatprep.subr.bf16.mxu0 %v217
    %2579 = vmatpush1.bf16.msra.mxu0 %v216
    %2580 = vmatprep.subr.bf16.mxu0 %v213
    %2581 = vmatpush1.bf16.msra.mxu0 %v212
    %2582 = vmatprep.subr.bf16.mxu0 %v209
    %2583 = vmatpush1.bf16.msra.mxu0 %v208
    %2584 = vmatprep.subr.bf16.mxu0 %v205
    %2585 = vmatpush1.bf16.msra.mxu0 %v204
    %2586 = vmatprep.subr.bf16.mxu0 %v201
    %2587 = vmatpush1.bf16.msra.mxu0 %v200
    %2588 = vmatprep.subr.bf16.mxu0 %v197
    %2589 = vmatpush1.bf16.msra.mxu0 %v196
    %2590 = vmatprep.subr.bf16.mxu0 %v193
    %2591 = vmatpush1.bf16.msra.mxu0 %v192
    %2592 = vmatprep.subr.bf16.mxu0 0
    %2593 = vmatpush2.bf16.msra.mxu0 0
    %2594 = vmatprep.subr.bf16.mxu0 0
    %2595 = vmatpush2.bf16.msra.mxu0 0
    %2596 = vmatprep.subr.bf16.mxu0 0
    %2597 = vmatpush2.bf16.msra.mxu0 0
    %2598 = vmatprep.subr.bf16.mxu0 0
    %2599 = vmatpush2.bf16.msra.mxu0 0
    %2600 = vmatprep.subr.bf16.mxu0 0
    %2601 = vmatpush2.bf16.msra.mxu0 0
    %2602 = vmatprep.subr.bf16.mxu0 0
    %2603 = vmatpush2.bf16.msra.mxu0 0
    %2604 = vmatprep.subr.bf16.mxu0 0
    %2605 = vmatpush2.bf16.msra.mxu0 0
    %2606 = vmatprep.subr.bf16.mxu0 0
    %2607 = vmatpush2.bf16.msra.mxu0 0
    %2608 = vmatprep.mubr.bf16.mxu0 0
    %2609 = vmatmul.mubr.bf16.gmra.mxu0 %v2575
    %v2610 = vpop.f32.mrf.mxu0
    %v2611 = vadd.f32 0.0, %v2610
    %v2612 = vpop.f32.mrf.mxu0
    %v2613 = vadd.f32 0.0, %v2612
    %v2614 = vpop.f32.mrf.mxu0
    %v2615 = vpop.f32.mrf.mxu0
    %2616 = vdwg.mxu0
    %2617 = vmatprep.subr.bf16.mxu0 %v223
    %2618 = vmatpush1.bf16.msra.mxu0 %v222
    %2619 = vmatprep.subr.bf16.mxu0 %v219
    %2620 = vmatpush1.bf16.msra.mxu0 %v218
    %2621 = vmatprep.subr.bf16.mxu0 %v215
    %2622 = vmatpush1.bf16.msra.mxu0 %v214
    %2623 = vmatprep.subr.bf16.mxu0 %v211
    %2624 = vmatpush1.bf16.msra.mxu0 %v210
    %2625 = vmatprep.subr.bf16.mxu0 %v207
    %2626 = vmatpush1.bf16.msra.mxu0 %v206
    %2627 = vmatprep.subr.bf16.mxu0 %v203
    %2628 = vmatpush1.bf16.msra.mxu0 %v202
    %2629 = vmatprep.subr.bf16.mxu0 %v199
    %2630 = vmatpush1.bf16.msra.mxu0 %v198
    %2631 = vmatprep.subr.bf16.mxu0 %v195
    %2632 = vmatpush1.bf16.msra.mxu0 %v194
    %2633 = vmatprep.subr.bf16.mxu0 0
    %2634 = vmatpush2.bf16.msra.mxu0 0
    %2635 = vmatprep.subr.bf16.mxu0 0
    %2636 = vmatpush2.bf16.msra.mxu0 0
    %2637 = vmatprep.subr.bf16.mxu0 0
    %2638 = vmatpush2.bf16.msra.mxu0 0
    %2639 = vmatprep.subr.bf16.mxu0 0
    %2640 = vmatpush2.bf16.msra.mxu0 0
    %2641 = vmatprep.subr.bf16.mxu0 0
    %2642 = vmatpush2.bf16.msra.mxu0 0
    %2643 = vmatprep.subr.bf16.mxu0 0
    %2644 = vmatpush2.bf16.msra.mxu0 0
    %2645 = vmatprep.subr.bf16.mxu0 0
    %2646 = vmatpush2.bf16.msra.mxu0 0
    %2647 = vmatprep.subr.bf16.mxu0 0
    %2648 = vmatpush2.bf16.msra.mxu0 0
    %2649 = vmatprep.mubr.bf16.mxu0 0
    %2650 = vmatmul.mubr.bf16.gmra.mxu0 %v2575
    %v2651 = vpop.f32.mrf.mxu0
    %v2652 = vadd.f32 0.0, %v2651
    %v2653 = vpop.f32.mrf.mxu0
    %v2654 = vadd.f32 0.0, %v2653
    %v2655 = vpop.f32.mrf.mxu0
    %v2656 = vpop.f32.mrf.mxu0
    %2657 = vdwg.mxu0
    %v2658 = vadd.f32 %v2571, %v2611
    %v2659 = vadd.f32 %v2572, %v2613
    %v2660 = vadd.f32 %v2573, %v2652
    %v2661 = vadd.f32 %v2574, %v2654
    %v2662 = vxor.u32 %v2658, 2147483648
    %v2663 = vxor.u32 %v2659, 2147483648
    %v2664 = vxor.u32 %v2660, 2147483648
    %v2665 = vmul.f32 %v2662, 1.442695
    %v2666 = vpow.pop %v2665
    %v2667 = vmul.f32 %v2663, 1.442695
    %v2668 = vpow.pop %v2667
    %v2669 = vmul.f32 %v2664, 1.442695
    %v2670 = vpow.pop %v2669
    %v2671 = vadd.f32 %v2666, 1.0
    %v2672 = vadd.f32 %v2668, 1.0
    %v2673 = vadd.f32 %v2670, 1.0
    %v2674 = vrcp.pop %v2671
    %v2675 = vmul.f32 1.0, %v2674
    %v2676 = vrcp.pop %v2672
    %v2677 = vmul.f32 1.0, %v2676
    %v2678 = vrcp.pop %v2673
    %v2679 = vmul.f32 1.0, %v2678
    %v2680 = vtanh.pop %v2661
    %v2681 = vmul.f32 %v2677, %v2567
    %v2682 = vmul.f32 %v2675, %v2680
    %v2683 = vadd.f32 %v2681, %v2682
    %v2684 = vtanh.pop %v2683
    %v2685 = vmul.f32 %v2679, %v2684
    %s2686 = scalar_lea.vmem [#allocation2], 672
    %v2687 = vld [vmem:[%s2686] sm:$0xff]
    %v2688 = vld [vmem:[%s2686 + $0x8] sm:$0xff]
    %v2689 = vld [vmem:[%s2686 + $0x10] sm:$0xff]
    %v2690 = vld [vmem:[%s2686 + $0x18] sm:$0xff]
    %v2691 = vpack.c.bf16 %v2685, %v2685
    %2692 = vmatprep.subr.bf16.mxu0 %v221
    %2693 = vmatpush1.bf16.msra.mxu0 %v220
    %2694 = vmatprep.subr.bf16.mxu0 %v217
    %2695 = vmatpush1.bf16.msra.mxu0 %v216
    %2696 = vmatprep.subr.bf16.mxu0 %v213
    %2697 = vmatpush1.bf16.msra.mxu0 %v212
    %2698 = vmatprep.subr.bf16.mxu0 %v209
    %2699 = vmatpush1.bf16.msra.mxu0 %v208
    %2700 = vmatprep.subr.bf16.mxu0 %v205
    %2701 = vmatpush1.bf16.msra.mxu0 %v204
    %2702 = vmatprep.subr.bf16.mxu0 %v201
    %2703 = vmatpush1.bf16.msra.mxu0 %v200
    %2704 = vmatprep.subr.bf16.mxu0 %v197
    %2705 = vmatpush1.bf16.msra.mxu0 %v196
    %2706 = vmatprep.subr.bf16.mxu0 %v193
    %2707 = vmatpush1.bf16.msra.mxu0 %v192
    %2708 = vmatprep.subr.bf16.mxu0 0
    %2709 = vmatpush2.bf16.msra.mxu0 0
    %2710 = vmatprep.subr.bf16.mxu0 0
    %2711 = vmatpush2.bf16.msra.mxu0 0
    %2712 = vmatprep.subr.bf16.mxu0 0
    %2713 = vmatpush2.bf16.msra.mxu0 0
    %2714 = vmatprep.subr.bf16.mxu0 0
    %2715 = vmatpush2.bf16.msra.mxu0 0
    %2716 = vmatprep.subr.bf16.mxu0 0
    %2717 = vmatpush2.bf16.msra.mxu0 0
    %2718 = vmatprep.subr.bf16.mxu0 0
    %2719 = vmatpush2.bf16.msra.mxu0 0
    %2720 = vmatprep.subr.bf16.mxu0 0
    %2721 = vmatpush2.bf16.msra.mxu0 0
    %2722 = vmatprep.subr.bf16.mxu0 0
    %2723 = vmatpush2.bf16.msra.mxu0 0
    %2724 = vmatprep.mubr.bf16.mxu0 0
    %2725 = vmatmul.mubr.bf16.gmra.mxu0 %v2691
    %v2726 = vpop.f32.mrf.mxu0
    %v2727 = vadd.f32 0.0, %v2726
    %v2728 = vpop.f32.mrf.mxu0
    %v2729 = vadd.f32 0.0, %v2728
    %v2730 = vpop.f32.mrf.mxu0
    %v2731 = vpop.f32.mrf.mxu0
    %2732 = vdwg.mxu0
    %2733 = vmatprep.subr.bf16.mxu0 %v223
    %2734 = vmatpush1.bf16.msra.mxu0 %v222
    %2735 = vmatprep.subr.bf16.mxu0 %v219
    %2736 = vmatpush1.bf16.msra.mxu0 %v218
    %2737 = vmatprep.subr.bf16.mxu0 %v215
    %2738 = vmatpush1.bf16.msra.mxu0 %v214
    %2739 = vmatprep.subr.bf16.mxu0 %v211
    %2740 = vmatpush1.bf16.msra.mxu0 %v210
    %2741 = vmatprep.subr.bf16.mxu0 %v207
    %2742 = vmatpush1.bf16.msra.mxu0 %v206
    %2743 = vmatprep.subr.bf16.mxu0 %v203
    %2744 = vmatpush1.bf16.msra.mxu0 %v202
    %2745 = vmatprep.subr.bf16.mxu0 %v199
    %2746 = vmatpush1.bf16.msra.mxu0 %v198
    %2747 = vmatprep.subr.bf16.mxu0 %v195
    %2748 = vmatpush1.bf16.msra.mxu0 %v194
    %2749 = vmatprep.subr.bf16.mxu0 0
    %2750 = vmatpush2.bf16.msra.mxu0 0
    %2751 = vmatprep.subr.bf16.mxu0 0
    %2752 = vmatpush2.bf16.msra.mxu0 0
    %2753 = vmatprep.subr.bf16.mxu0 0
    %2754 = vmatpush2.bf16.msra.mxu0 0
    %2755 = vmatprep.subr.bf16.mxu0 0
    %2756 = vmatpush2.bf16.msra.mxu0 0
    %2757 = vmatprep.subr.bf16.mxu0 0
    %2758 = vmatpush2.bf16.msra.mxu0 0
    %2759 = vmatprep.subr.bf16.mxu0 0
    %2760 = vmatpush2.bf16.msra.mxu0 0
    %2761 = vmatprep.subr.bf16.mxu0 0
    %2762 = vmatpush2.bf16.msra.mxu0 0
    %2763 = vmatprep.subr.bf16.mxu0 0
    %2764 = vmatpush2.bf16.msra.mxu0 0
    %2765 = vmatprep.mubr.bf16.mxu0 0
    %2766 = vmatmul.mubr.bf16.gmra.mxu0 %v2691
    %v2767 = vpop.f32.mrf.mxu0
    %v2768 = vadd.f32 0.0, %v2767
    %v2769 = vpop.f32.mrf.mxu0
    %v2770 = vadd.f32 0.0, %v2769
    %v2771 = vpop.f32.mrf.mxu0
    %v2772 = vpop.f32.mrf.mxu0
    %2773 = vdwg.mxu0
    %v2774 = vadd.f32 %v2687, %v2727
    %v2775 = vadd.f32 %v2688, %v2729
    %v2776 = vadd.f32 %v2689, %v2768
    %v2777 = vadd.f32 %v2690, %v2770
    %v2778 = vxor.u32 %v2774, 2147483648
    %v2779 = vxor.u32 %v2775, 2147483648
    %v2780 = vxor.u32 %v2776, 2147483648
    %v2781 = vmul.f32 %v2778, 1.442695
    %v2782 = vpow.pop %v2781
    %v2783 = vmul.f32 %v2779, 1.442695
    %v2784 = vpow.pop %v2783
    %v2785 = vmul.f32 %v2780, 1.442695
    %v2786 = vpow.pop %v2785
    %v2787 = vadd.f32 %v2782, 1.0
    %v2788 = vadd.f32 %v2784, 1.0
    %v2789 = vadd.f32 %v2786, 1.0
    %v2790 = vrcp.pop %v2787
    %v2791 = vmul.f32 1.0, %v2790
    %v2792 = vrcp.pop %v2788
    %v2793 = vmul.f32 1.0, %v2792
    %v2794 = vrcp.pop %v2789
    %v2795 = vmul.f32 1.0, %v2794
    %v2796 = vtanh.pop %v2777
    %v2797 = vmul.f32 %v2793, %v2683
    %v2798 = vmul.f32 %v2791, %v2796
    %v2799 = vadd.f32 %v2797, %v2798
    %v2800 = vtanh.pop %v2799
    %v2801 = vmul.f32 %v2795, %v2800
    %s2802 = scalar_lea.vmem [#allocation2], 704
    %v2803 = vld [vmem:[%s2802] sm:$0xff]
    %v2804 = vld [vmem:[%s2802 + $0x8] sm:$0xff]
    %v2805 = vld [vmem:[%s2802 + $0x10] sm:$0xff]
    %v2806 = vld [vmem:[%s2802 + $0x18] sm:$0xff]
    %v2807 = vpack.c.bf16 %v2801, %v2801
    %2808 = vmatprep.subr.bf16.mxu0 %v221
    %2809 = vmatpush1.bf16.msra.mxu0 %v220
    %2810 = vmatprep.subr.bf16.mxu0 %v217
    %2811 = vmatpush1.bf16.msra.mxu0 %v216
    %2812 = vmatprep.subr.bf16.mxu0 %v213
    %2813 = vmatpush1.bf16.msra.mxu0 %v212
    %2814 = vmatprep.subr.bf16.mxu0 %v209
    %2815 = vmatpush1.bf16.msra.mxu0 %v208
    %2816 = vmatprep.subr.bf16.mxu0 %v205
    %2817 = vmatpush1.bf16.msra.mxu0 %v204
    %2818 = vmatprep.subr.bf16.mxu0 %v201
    %2819 = vmatpush1.bf16.msra.mxu0 %v200
    %2820 = vmatprep.subr.bf16.mxu0 %v197
    %2821 = vmatpush1.bf16.msra.mxu0 %v196
    %2822 = vmatprep.subr.bf16.mxu0 %v193
    %2823 = vmatpush1.bf16.msra.mxu0 %v192
    %2824 = vmatprep.subr.bf16.mxu0 0
    %2825 = vmatpush2.bf16.msra.mxu0 0
    %2826 = vmatprep.subr.bf16.mxu0 0
    %2827 = vmatpush2.bf16.msra.mxu0 0
    %2828 = vmatprep.subr.bf16.mxu0 0
    %2829 = vmatpush2.bf16.msra.mxu0 0
    %2830 = vmatprep.subr.bf16.mxu0 0
    %2831 = vmatpush2.bf16.msra.mxu0 0
    %2832 = vmatprep.subr.bf16.mxu0 0
    %2833 = vmatpush2.bf16.msra.mxu0 0
    %2834 = vmatprep.subr.bf16.mxu0 0
    %2835 = vmatpush2.bf16.msra.mxu0 0
    %2836 = vmatprep.subr.bf16.mxu0 0
    %2837 = vmatpush2.bf16.msra.mxu0 0
    %2838 = vmatprep.subr.bf16.mxu0 0
    %2839 = vmatpush2.bf16.msra.mxu0 0
    %2840 = vmatprep.mubr.bf16.mxu0 0
    %2841 = vmatmul.mubr.bf16.gmra.mxu0 %v2807
    %v2842 = vpop.f32.mrf.mxu0
    %v2843 = vadd.f32 0.0, %v2842
    %v2844 = vpop.f32.mrf.mxu0
    %v2845 = vadd.f32 0.0, %v2844
    %v2846 = vpop.f32.mrf.mxu0
    %v2847 = vpop.f32.mrf.mxu0
    %2848 = vdwg.mxu0
    %2849 = vmatprep.subr.bf16.mxu0 %v223
    %2850 = vmatpush1.bf16.msra.mxu0 %v222
    %2851 = vmatprep.subr.bf16.mxu0 %v219
    %2852 = vmatpush1.bf16.msra.mxu0 %v218
    %2853 = vmatprep.subr.bf16.mxu0 %v215
    %2854 = vmatpush1.bf16.msra.mxu0 %v214
    %2855 = vmatprep.subr.bf16.mxu0 %v211
    %2856 = vmatpush1.bf16.msra.mxu0 %v210
    %2857 = vmatprep.subr.bf16.mxu0 %v207
    %2858 = vmatpush1.bf16.msra.mxu0 %v206
    %2859 = vmatprep.subr.bf16.mxu0 %v203
    %2860 = vmatpush1.bf16.msra.mxu0 %v202
    %2861 = vmatprep.subr.bf16.mxu0 %v199
    %2862 = vmatpush1.bf16.msra.mxu0 %v198
    %2863 = vmatprep.subr.bf16.mxu0 %v195
    %2864 = vmatpush1.bf16.msra.mxu0 %v194
    %2865 = vmatprep.subr.bf16.mxu0 0
    %2866 = vmatpush2.bf16.msra.mxu0 0
    %2867 = vmatprep.subr.bf16.mxu0 0
    %2868 = vmatpush2.bf16.msra.mxu0 0
    %2869 = vmatprep.subr.bf16.mxu0 0
    %2870 = vmatpush2.bf16.msra.mxu0 0
    %2871 = vmatprep.subr.bf16.mxu0 0
    %2872 = vmatpush2.bf16.msra.mxu0 0
    %2873 = vmatprep.subr.bf16.mxu0 0
    %2874 = vmatpush2.bf16.msra.mxu0 0
    %2875 = vmatprep.subr.bf16.mxu0 0
    %2876 = vmatpush2.bf16.msra.mxu0 0
    %2877 = vmatprep.subr.bf16.mxu0 0
    %2878 = vmatpush2.bf16.msra.mxu0 0
    %2879 = vmatprep.subr.bf16.mxu0 0
    %2880 = vmatpush2.bf16.msra.mxu0 0
    %2881 = vmatprep.mubr.bf16.mxu0 0
    %2882 = vmatmul.mubr.bf16.gmra.mxu0 %v2807
    %v2883 = vpop.f32.mrf.mxu0
    %v2884 = vadd.f32 0.0, %v2883
    %v2885 = vpop.f32.mrf.mxu0
    %v2886 = vadd.f32 0.0, %v2885
    %v2887 = vpop.f32.mrf.mxu0
    %v2888 = vpop.f32.mrf.mxu0
    %2889 = vdwg.mxu0
    %v2890 = vadd.f32 %v2803, %v2843
    %v2891 = vadd.f32 %v2804, %v2845
    %v2892 = vadd.f32 %v2805, %v2884
    %v2893 = vadd.f32 %v2806, %v2886
    %v2894 = vxor.u32 %v2890, 2147483648
    %v2895 = vxor.u32 %v2891, 2147483648
    %v2896 = vxor.u32 %v2892, 2147483648
    %v2897 = vmul.f32 %v2894, 1.442695
    %v2898 = vpow.pop %v2897
    %v2899 = vmul.f32 %v2895, 1.442695
    %v2900 = vpow.pop %v2899
    %v2901 = vmul.f32 %v2896, 1.442695
    %v2902 = vpow.pop %v2901
    %v2903 = vadd.f32 %v2898, 1.0
    %v2904 = vadd.f32 %v2900, 1.0
    %v2905 = vadd.f32 %v2902, 1.0
    %v2906 = vrcp.pop %v2903
    %v2907 = vmul.f32 1.0, %v2906
    %v2908 = vrcp.pop %v2904
    %v2909 = vmul.f32 1.0, %v2908
    %v2910 = vrcp.pop %v2905
    %v2911 = vmul.f32 1.0, %v2910
    %v2912 = vtanh.pop %v2893
    %v2913 = vmul.f32 %v2909, %v2799
    %v2914 = vmul.f32 %v2907, %v2912
    %v2915 = vadd.f32 %v2913, %v2914
    %v2916 = vtanh.pop %v2915
    %v2917 = vmul.f32 %v2911, %v2916
    %s2918 = scalar_lea.vmem [#allocation2], 736
    %v2919 = vld [vmem:[%s2918] sm:$0xff]
    %v2920 = vld [vmem:[%s2918 + $0x8] sm:$0xff]
    %v2921 = vld [vmem:[%s2918 + $0x10] sm:$0xff]
    %v2922 = vld [vmem:[%s2918 + $0x18] sm:$0xff]
    %v2923 = vpack.c.bf16 %v2917, %v2917
    %2924 = vmatprep.subr.bf16.mxu0 %v221
    %2925 = vmatpush1.bf16.msra.mxu0 %v220
    %2926 = vmatprep.subr.bf16.mxu0 %v217
    %2927 = vmatpush1.bf16.msra.mxu0 %v216
    %2928 = vmatprep.subr.bf16.mxu0 %v213
    %2929 = vmatpush1.bf16.msra.mxu0 %v212
    %2930 = vmatprep.subr.bf16.mxu0 %v209
    %2931 = vmatpush1.bf16.msra.mxu0 %v208
    %2932 = vmatprep.subr.bf16.mxu0 %v205
    %2933 = vmatpush1.bf16.msra.mxu0 %v204
    %2934 = vmatprep.subr.bf16.mxu0 %v201
    %2935 = vmatpush1.bf16.msra.mxu0 %v200
    %2936 = vmatprep.subr.bf16.mxu0 %v197
    %2937 = vmatpush1.bf16.msra.mxu0 %v196
    %2938 = vmatprep.subr.bf16.mxu0 %v193
    %2939 = vmatpush1.bf16.msra.mxu0 %v192
    %2940 = vmatprep.subr.bf16.mxu0 0
    %2941 = vmatpush2.bf16.msra.mxu0 0
    %2942 = vmatprep.subr.bf16.mxu0 0
    %2943 = vmatpush2.bf16.msra.mxu0 0
    %2944 = vmatprep.subr.bf16.mxu0 0
    %2945 = vmatpush2.bf16.msra.mxu0 0
    %2946 = vmatprep.subr.bf16.mxu0 0
    %2947 = vmatpush2.bf16.msra.mxu0 0
    %2948 = vmatprep.subr.bf16.mxu0 0
    %2949 = vmatpush2.bf16.msra.mxu0 0
    %2950 = vmatprep.subr.bf16.mxu0 0
    %2951 = vmatpush2.bf16.msra.mxu0 0
    %2952 = vmatprep.subr.bf16.mxu0 0
    %2953 = vmatpush2.bf16.msra.mxu0 0
    %2954 = vmatprep.subr.bf16.mxu0 0
    %2955 = vmatpush2.bf16.msra.mxu0 0
    %2956 = vmatprep.mubr.bf16.mxu0 0
    %2957 = vmatmul.mubr.bf16.gmra.mxu0 %v2923
    %v2958 = vpop.f32.mrf.mxu0
    %v2959 = vadd.f32 0.0, %v2958
    %v2960 = vpop.f32.mrf.mxu0
    %v2961 = vadd.f32 0.0, %v2960
    %v2962 = vpop.f32.mrf.mxu0
    %v2963 = vpop.f32.mrf.mxu0
    %2964 = vdwg.mxu0
    %2965 = vmatprep.subr.bf16.mxu0 %v223
    %2966 = vmatpush1.bf16.msra.mxu0 %v222
    %2967 = vmatprep.subr.bf16.mxu0 %v219
    %2968 = vmatpush1.bf16.msra.mxu0 %v218
    %2969 = vmatprep.subr.bf16.mxu0 %v215
    %2970 = vmatpush1.bf16.msra.mxu0 %v214
    %2971 = vmatprep.subr.bf16.mxu0 %v211
    %2972 = vmatpush1.bf16.msra.mxu0 %v210
    %2973 = vmatprep.subr.bf16.mxu0 %v207
    %2974 = vmatpush1.bf16.msra.mxu0 %v206
    %2975 = vmatprep.subr.bf16.mxu0 %v203
    %2976 = vmatpush1.bf16.msra.mxu0 %v202
    %2977 = vmatprep.subr.bf16.mxu0 %v199
    %2978 = vmatpush1.bf16.msra.mxu0 %v198
    %2979 = vmatprep.subr.bf16.mxu0 %v195
    %2980 = vmatpush1.bf16.msra.mxu0 %v194
    %2981 = vmatprep.subr.bf16.mxu0 0
    %2982 = vmatpush2.bf16.msra.mxu0 0
    %2983 = vmatprep.subr.bf16.mxu0 0
    %2984 = vmatpush2.bf16.msra.mxu0 0
    %2985 = vmatprep.subr.bf16.mxu0 0
    %2986 = vmatpush2.bf16.msra.mxu0 0
    %2987 = vmatprep.subr.bf16.mxu0 0
    %2988 = vmatpush2.bf16.msra.mxu0 0
    %2989 = vmatprep.subr.bf16.mxu0 0
    %2990 = vmatpush2.bf16.msra.mxu0 0
    %2991 = vmatprep.subr.bf16.mxu0 0
    %2992 = vmatpush2.bf16.msra.mxu0 0
    %2993 = vmatprep.subr.bf16.mxu0 0
    %2994 = vmatpush2.bf16.msra.mxu0 0
    %2995 = vmatprep.subr.bf16.mxu0 0
    %2996 = vmatpush2.bf16.msra.mxu0 0
    %2997 = vmatprep.mubr.bf16.mxu0 0
    %2998 = vmatmul.mubr.bf16.gmra.mxu0 %v2923
    %v2999 = vpop.f32.mrf.mxu0
    %v3000 = vadd.f32 0.0, %v2999
    %v3001 = vpop.f32.mrf.mxu0
    %v3002 = vadd.f32 0.0, %v3001
    %v3003 = vpop.f32.mrf.mxu0
    %v3004 = vpop.f32.mrf.mxu0
    %3005 = vdwg.mxu0
    %v3006 = vadd.f32 %v2919, %v2959
    %v3007 = vadd.f32 %v2920, %v2961
    %v3008 = vadd.f32 %v2921, %v3000
    %v3009 = vadd.f32 %v2922, %v3002
    %v3010 = vxor.u32 %v3006, 2147483648
    %v3011 = vxor.u32 %v3007, 2147483648
    %v3012 = vxor.u32 %v3008, 2147483648
    %v3013 = vmul.f32 %v3010, 1.442695
    %v3014 = vpow.pop %v3013
    %v3015 = vmul.f32 %v3011, 1.442695
    %v3016 = vpow.pop %v3015
    %v3017 = vmul.f32 %v3012, 1.442695
    %v3018 = vpow.pop %v3017
    %v3019 = vadd.f32 %v3014, 1.0
    %v3020 = vadd.f32 %v3016, 1.0
    %v3021 = vadd.f32 %v3018, 1.0
    %v3022 = vrcp.pop %v3019
    %v3023 = vmul.f32 1.0, %v3022
    %v3024 = vrcp.pop %v3020
    %v3025 = vmul.f32 1.0, %v3024
    %v3026 = vrcp.pop %v3021
    %v3027 = vmul.f32 1.0, %v3026
    %v3028 = vtanh.pop %v3009
    %v3029 = vmul.f32 %v3025, %v2915
    %v3030 = vmul.f32 %v3023, %v3028
    %v3031 = vadd.f32 %v3029, %v3030
    %v3032 = vtanh.pop %v3031
    %v3033 = vmul.f32 %v3027, %v3032
    %s3034 = scalar_lea.vmem [#allocation2], 768
    %v3035 = vld [vmem:[%s3034] sm:$0xff]
    %v3036 = vld [vmem:[%s3034 + $0x8] sm:$0xff]
    %v3037 = vld [vmem:[%s3034 + $0x10] sm:$0xff]
    %v3038 = vld [vmem:[%s3034 + $0x18] sm:$0xff]
    %v3039 = vpack.c.bf16 %v3033, %v3033
    %3040 = vmatprep.subr.bf16.mxu0 %v221
    %3041 = vmatpush1.bf16.msra.mxu0 %v220
    %3042 = vmatprep.subr.bf16.mxu0 %v217
    %3043 = vmatpush1.bf16.msra.mxu0 %v216
    %3044 = vmatprep.subr.bf16.mxu0 %v213
    %3045 = vmatpush1.bf16.msra.mxu0 %v212
    %3046 = vmatprep.subr.bf16.mxu0 %v209
    %3047 = vmatpush1.bf16.msra.mxu0 %v208
    %3048 = vmatprep.subr.bf16.mxu0 %v205
    %3049 = vmatpush1.bf16.msra.mxu0 %v204
    %3050 = vmatprep.subr.bf16.mxu0 %v201
    %3051 = vmatpush1.bf16.msra.mxu0 %v200
    %3052 = vmatprep.subr.bf16.mxu0 %v197
    %3053 = vmatpush1.bf16.msra.mxu0 %v196
    %3054 = vmatprep.subr.bf16.mxu0 %v193
    %3055 = vmatpush1.bf16.msra.mxu0 %v192
    %3056 = vmatprep.subr.bf16.mxu0 0
    %3057 = vmatpush2.bf16.msra.mxu0 0
    %3058 = vmatprep.subr.bf16.mxu0 0
    %3059 = vmatpush2.bf16.msra.mxu0 0
    %3060 = vmatprep.subr.bf16.mxu0 0
    %3061 = vmatpush2.bf16.msra.mxu0 0
    %3062 = vmatprep.subr.bf16.mxu0 0
    %3063 = vmatpush2.bf16.msra.mxu0 0
    %3064 = vmatprep.subr.bf16.mxu0 0
    %3065 = vmatpush2.bf16.msra.mxu0 0
    %3066 = vmatprep.subr.bf16.mxu0 0
    %3067 = vmatpush2.bf16.msra.mxu0 0
    %3068 = vmatprep.subr.bf16.mxu0 0
    %3069 = vmatpush2.bf16.msra.mxu0 0
    %3070 = vmatprep.subr.bf16.mxu0 0
    %3071 = vmatpush2.bf16.msra.mxu0 0
    %3072 = vmatprep.mubr.bf16.mxu0 0
    %3073 = vmatmul.mubr.bf16.gmra.mxu0 %v3039
    %v3074 = vpop.f32.mrf.mxu0
    %v3075 = vadd.f32 0.0, %v3074
    %v3076 = vpop.f32.mrf.mxu0
    %v3077 = vadd.f32 0.0, %v3076
    %v3078 = vpop.f32.mrf.mxu0
    %v3079 = vpop.f32.mrf.mxu0
    %3080 = vdwg.mxu0
    %3081 = vmatprep.subr.bf16.mxu0 %v223
    %3082 = vmatpush1.bf16.msra.mxu0 %v222
    %3083 = vmatprep.subr.bf16.mxu0 %v219
    %3084 = vmatpush1.bf16.msra.mxu0 %v218
    %3085 = vmatprep.subr.bf16.mxu0 %v215
    %3086 = vmatpush1.bf16.msra.mxu0 %v214
    %3087 = vmatprep.subr.bf16.mxu0 %v211
    %3088 = vmatpush1.bf16.msra.mxu0 %v210
    %3089 = vmatprep.subr.bf16.mxu0 %v207
    %3090 = vmatpush1.bf16.msra.mxu0 %v206
    %3091 = vmatprep.subr.bf16.mxu0 %v203
    %3092 = vmatpush1.bf16.msra.mxu0 %v202
    %3093 = vmatprep.subr.bf16.mxu0 %v199
    %3094 = vmatpush1.bf16.msra.mxu0 %v198
    %3095 = vmatprep.subr.bf16.mxu0 %v195
    %3096 = vmatpush1.bf16.msra.mxu0 %v194
    %3097 = vmatprep.subr.bf16.mxu0 0
    %3098 = vmatpush2.bf16.msra.mxu0 0
    %3099 = vmatprep.subr.bf16.mxu0 0
    %3100 = vmatpush2.bf16.msra.mxu0 0
    %3101 = vmatprep.subr.bf16.mxu0 0
    %3102 = vmatpush2.bf16.msra.mxu0 0
    %3103 = vmatprep.subr.bf16.mxu0 0
    %3104 = vmatpush2.bf16.msra.mxu0 0
    %3105 = vmatprep.subr.bf16.mxu0 0
    %3106 = vmatpush2.bf16.msra.mxu0 0
    %3107 = vmatprep.subr.bf16.mxu0 0
    %3108 = vmatpush2.bf16.msra.mxu0 0
    %3109 = vmatprep.subr.bf16.mxu0 0
    %3110 = vmatpush2.bf16.msra.mxu0 0
    %3111 = vmatprep.subr.bf16.mxu0 0
    %3112 = vmatpush2.bf16.msra.mxu0 0
    %3113 = vmatprep.mubr.bf16.mxu0 0
    %3114 = vmatmul.mubr.bf16.gmra.mxu0 %v3039
    %v3115 = vpop.f32.mrf.mxu0
    %v3116 = vadd.f32 0.0, %v3115
    %v3117 = vpop.f32.mrf.mxu0
    %v3118 = vadd.f32 0.0, %v3117
    %v3119 = vpop.f32.mrf.mxu0
    %v3120 = vpop.f32.mrf.mxu0
    %3121 = vdwg.mxu0
    %v3122 = vadd.f32 %v3035, %v3075
    %v3123 = vadd.f32 %v3036, %v3077
    %v3124 = vadd.f32 %v3037, %v3116
    %v3125 = vadd.f32 %v3038, %v3118
    %v3126 = vxor.u32 %v3122, 2147483648
    %v3127 = vxor.u32 %v3123, 2147483648
    %v3128 = vxor.u32 %v3124, 2147483648
    %v3129 = vmul.f32 %v3126, 1.442695
    %v3130 = vpow.pop %v3129
    %v3131 = vmul.f32 %v3127, 1.442695
    %v3132 = vpow.pop %v3131
    %v3133 = vmul.f32 %v3128, 1.442695
    %v3134 = vpow.pop %v3133
    %v3135 = vadd.f32 %v3130, 1.0
    %v3136 = vadd.f32 %v3132, 1.0
    %v3137 = vadd.f32 %v3134, 1.0
    %v3138 = vrcp.pop %v3135
    %v3139 = vmul.f32 1.0, %v3138
    %v3140 = vrcp.pop %v3136
    %v3141 = vmul.f32 1.0, %v3140
    %v3142 = vrcp.pop %v3137
    %v3143 = vmul.f32 1.0, %v3142
    %v3144 = vtanh.pop %v3125
    %v3145 = vmul.f32 %v3141, %v3031
    %v3146 = vmul.f32 %v3139, %v3144
    %v3147 = vadd.f32 %v3145, %v3146
    %v3148 = vtanh.pop %v3147
    %v3149 = vmul.f32 %v3143, %v3148
    %v3150 = vld [vmem:[#allocation7] sm:$0xf]
    %v3151 = vld [vmem:[#allocation7 + $0x4] sm:$0xf]
    %v3152 = vld [vmem:[#allocation7 + $0x8] sm:$0xf]
    %v3153 = vld [vmem:[#allocation7 + $0xc] sm:$0xf]
    %v3154 = vld [vmem:[#allocation7 + $0x10] sm:$0xf]
    %v3155 = vld [vmem:[#allocation7 + $0x14] sm:$0xf]
    %v3156 = vld [vmem:[#allocation7 + $0x18] sm:$0xf]
    %v3157 = vld [vmem:[#allocation7 + $0x1c] sm:$0xf]
    %v3158 = vld [vmem:[#allocation7 + $0x20] sm:$0xf]
    %v3159 = vld [vmem:[#allocation7 + $0x24] sm:$0xf]
    %v3160 = vld [vmem:[#allocation7 + $0x28] sm:$0xf]
    %v3161 = vld [vmem:[#allocation7 + $0x2c] sm:$0xf]
    %v3162 = vld [vmem:[#allocation7 + $0x30] sm:$0xf]
    %v3163 = vld [vmem:[#allocation7 + $0x34] sm:$0xf]
    %v3164 = vld [vmem:[#allocation7 + $0x38] sm:$0xf]
    %v3165 = vld [vmem:[#allocation7 + $0x3c] sm:$0xf]
    %v3166 = vld [vmem:[%s3] sm:$0x1]
    %v3167 = vpack.c.bf16 %v3149, %v3149
    %v3169 = vlaneseq
    %v3170 = vshrl.u32 %v3169, 7
    %v3171 = vsub.s32 0, %v3170
    %v3172 = vrot.slane %v3166, %v3171
    %v3190 = vunpack.c.l.b16 %v3150
    %v3191 = vunpack.c.l.b16 %v3151
    %v3192 = vunpack.c.l.b16 %v3152
    %v3193 = vunpack.c.l.b16 %v3153
    %v3194 = vunpack.c.l.b16 %v3154
    %v3195 = vunpack.c.l.b16 %v3155
    %v3196 = vunpack.c.l.b16 %v3156
    %v3197 = vunpack.c.l.b16 %v3157
    %v3198 = vunpack.c.l.b16 %v3158
    %v3199 = vunpack.c.l.b16 %v3159
    %v3200 = vunpack.c.l.b16 %v3160
    %v3201 = vunpack.c.l.b16 %v3161
    %v3202 = vunpack.c.l.b16 %v3162
    %v3203 = vunpack.c.l.b16 %v3163
    %v3204 = vunpack.c.l.b16 %v3164
    %v3205 = vunpack.c.l.b16 %v3165
    %v3206 = vpack.c.b16 %v3191, %v3190
    %v3207 = vpack.c.b16 %v3193, %v3192
    %v3208 = vpack.c.b16 %v3195, %v3194
    %v3209 = vpack.c.b16 %v3197, %v3196
    %v3210 = vpack.c.b16 %v3199, %v3198
    %v3211 = vpack.c.b16 %v3201, %v3200
    %v3212 = vpack.c.b16 %v3203, %v3202
    %v3213 = vpack.c.b16 %v3205, %v3204
    %3222 = vmatprep.subr.bf16.mxu0 0
    %3223 = vmatpush1.bf16.msra.mxu0 %v3213
    %3224 = vmatprep.subr.bf16.mxu0 0
    %3225 = vmatpush1.bf16.msra.mxu0 %v3212
    %3226 = vmatprep.subr.bf16.mxu0 0
    %3227 = vmatpush1.bf16.msra.mxu0 %v3211
    %3228 = vmatprep.subr.bf16.mxu0 0
    %3229 = vmatpush1.bf16.msra.mxu0 %v3210
    %3230 = vmatprep.subr.bf16.mxu0 0
    %3231 = vmatpush1.bf16.msra.mxu0 %v3209
    %3232 = vmatprep.subr.bf16.mxu0 0
    %3233 = vmatpush1.bf16.msra.mxu0 %v3208
    %3234 = vmatprep.subr.bf16.mxu0 0
    %3235 = vmatpush1.bf16.msra.mxu0 %v3207
    %3236 = vmatprep.subr.bf16.mxu0 0
    %3237 = vmatpush1.bf16.msra.mxu0 %v3206
    %3238 = vmatprep.subr.bf16.mxu0 0
    %3239 = vmatpush2.bf16.msra.mxu0 0
    %3240 = vmatprep.subr.bf16.mxu0 0
    %3241 = vmatpush2.bf16.msra.mxu0 0
    %3242 = vmatprep.subr.bf16.mxu0 0
    %3243 = vmatpush2.bf16.msra.mxu0 0
    %3244 = vmatprep.subr.bf16.mxu0 0
    %3245 = vmatpush2.bf16.msra.mxu0 0
    %3246 = vmatprep.subr.bf16.mxu0 0
    %3247 = vmatpush2.bf16.msra.mxu0 0
    %3248 = vmatprep.subr.bf16.mxu0 0
    %3249 = vmatpush2.bf16.msra.mxu0 0
    %3250 = vmatprep.subr.bf16.mxu0 0
    %3251 = vmatpush2.bf16.msra.mxu0 0
    %3252 = vmatprep.subr.bf16.mxu0 0
    %3253 = vmatpush2.bf16.msra.mxu0 0
    %3254 = vmatprep.mubr.bf16.mxu0 0
    %3255 = vmatmul.mubr.bf16.gmra.mxu0 %v3167
    %v3256 = vpop.f32.mrf.mxu0
    %v3257 = vadd.f32 %v3172, %v3256
    %v3258 = vpop.f32.mrf.mxu0
    %v3259 = vpop.f32.mrf.mxu0
    %v3260 = vpop.f32.mrf.mxu0
    %3261 = vdwg.mxu0
    %3262 = vst [vmem:[#allocation8] sm:$0xff] %v3257
    // Predicated region
    $region30: #{tpu_custom_call.1} parent=1 // pred_check
      _
    $region31: #{tpu_custom_call.1} parent=1 // pred_check_branch
      %3264 = sbr.rel (0) target = $region33
    $region32: #{tpu_custom_call.1} parent=1 // pred_region
      %s3266 = ssub.s32 128, 128
      %3267 = vsyncadd [#allocation4], %s3266
      %s3269 = sshll.u32 [#allocation8], 4
      %s3270 = int_to_ptr.vmem [resolvable:$true] %s3269
      %3272 = dma.vmem_to_hbm [thread:$0]  %s3270, 128, %s4, [#allocation4]
    $region33: #{tpu_custom_call.1} parent=1 // pred_fallthru
      _
    // Predicated region
    $region34: #{tpu_custom_call.1} parent=1 // pred_check
      _
    $region35: #{tpu_custom_call.1} parent=1 // pred_check_branch
      %3274 = sbr.rel (0) target = $region37
    $region36: #{tpu_custom_call.1} parent=1 // pred_region
      %3275 = dma.done [#allocation4], 128
    $region37: #{tpu_custom_call.1} parent=1 // pred_fallthru
      _
    %3276 = vsyncpa [#allocation3], 1
    %3277 = vsyncpa [#allocation6], 1
    %3278 = vsyncpa [#allocation4], 1

</llo_original>
